<compile_context>
chip_gen: v7x
topology: tpu7x:2x2x1
jax: 0.10.0
libtpu: 0.0.40
codegen_flags: <defaults>
</compile_context>

<pallas_src>
import jax
import jax.numpy as jnp
from jax.experimental import pallas as pl
from jax.experimental.pallas import tpu as pltpu


# ----------------------------------------------------------------------------
# Kernel
# ----------------------------------------------------------------------------
def _bilstm_kernel(xf_ref, xb_ref, w_in_ref, w_hh_ref, b_ref,
                   out_f_ref, out_b_ref, hn_ref, h_sc, c_sc):
    """Fused bidirectional LSTM recurrence over one block of Tb timesteps.

    xf_ref : (B, Tb, E) input block, forward time window [j*Tb, (j+1)*Tb).
    xb_ref : (B, Tb, E) input block, backward time window [T-(j+1)*Tb, T-j*Tb).
    w_in_ref : (2, E, 4H) input-projection weights, gate order (i, f, g, o).
    w_hh_ref : (2, H, 4H) recurrent weights (no block-diagonal zeros).
    b_ref    : (2, 1, 4H) fused biases (b_ih + b_hh).
    out_f_ref: (B, Tb, H) forward hidden states, natural time order.
    out_b_ref: (B, Tb, H) backward hidden states, natural time order
               (this output block's time window is chosen by its index_map).
    hn_ref   : (2, B, H) final hidden state [fwd, bwd]; written on last step.
    h_sc,c_sc: (2, B, H) hidden / cell state carried across grid steps.
    """
    j = pl.program_id(0)
    nb = pl.num_programs(0)

    @pl.when(j == 0)
    def _():
        h_sc[...] = jnp.zeros_like(h_sc)
        c_sc[...] = jnp.zeros_like(c_sc)

    B, tb, E = xf_ref.shape
    H = w_hh_ref.shape[1]

    w_in = w_in_ref[...]              # (2, E, 4H)
    w_hh = w_hh_ref[...]              # (2, H, 4H)
    b = b_ref[...]                    # (2, 1, 4H)

    # In-kernel input projection for the whole time block: one small MXU GEMM
    # per direction (instead of a precomputed (T, B, 8H) gates array in HBM).
    xf2 = xf_ref[...].reshape(B * tb, E)
    xb2 = xb_ref[...].reshape(B * tb, E)
    gin_f = (jnp.dot(xf2, w_in[0], preferred_element_type=jnp.float32)
             .reshape(B, tb, 4 * H) + b[0])          # (B, Tb, 4H)
    gin_b = (jnp.dot(xb2, w_in[1], preferred_element_type=jnp.float32)
             .reshape(B, tb, 4 * H) + b[1])          # (B, Tb, 4H)

    # Serial recurrence over the block.  Tb is small (capped in the wrapper),
    # so a fully static Python loop keeps every slice / store index static.
    h = h_sc[...]                      # (2, B, H)
    c = c_sc[...]                      # (2, B, H)
    for s in range(tb):
        # Forward consumes block step s; backward consumes block step tb-1-s
        # (its HBM window is already the mirrored one via the index_map).
        g_in = jnp.stack([gin_f[:, s, :], gin_b[:, tb - 1 - s, :]], axis=0)
        gates = g_in + jnp.einsum('dbh,dhg->dbg', h, w_hh,
                                  preferred_element_type=jnp.float32)  # (2,B,4H)
        i = jax.nn.sigmoid(gates[..., 0 * H:1 * H])
        f = jax.nn.sigmoid(gates[..., 1 * H:2 * H])
        g = jnp.tanh(gates[..., 2 * H:3 * H])
        o = jax.nn.sigmoid(gates[..., 3 * H:4 * H])
        c = f * c + i * g
        h = o * jnp.tanh(c)
        out_f_ref[:, s, :] = h[0]               # natural time order
        out_b_ref[:, tb - 1 - s, :] = h[1]      # un-reversed in HBM

    h_sc[...] = h
    c_sc[...] = c

    @pl.when(j == nb - 1)
    def _():
        hn_ref[...] = h


# ----------------------------------------------------------------------------
# Wrapper
# ----------------------------------------------------------------------------
def _pick_time_block(T, max_tb=16):
    """Largest divisor of T not exceeding max_tb."""
    tb = min(T, max_tb)
    while T % tb:
        tb -= 1
    return tb


def bidirectional_lstm(x, params, *, time_block=None):
    """x: (B, T, E) float32, batch_first (PyTorch convention).

    Returns (out (B, T, 2H), final_hn (B, 2H)) matching the PyTorch module.
    """
    B, T, E = x.shape
    H = params["w_hh"].shape[1]
    tb = _pick_time_block(T) if time_block is None else time_block
    nb = T // tb

    grid_spec = pltpu.PrefetchScalarGridSpec(
        num_scalar_prefetch=0,
        grid=(nb,),
        in_specs=[
            pl.BlockSpec((B, tb, E), lambda j: (0, j, 0)),            # x, fwd win
            pl.BlockSpec((B, tb, E), lambda j: (0, nb - 1 - j, 0)),   # x, bwd win
            pl.BlockSpec((2, E, 4 * H), lambda j: (0, 0, 0)),         # w_in
            pl.BlockSpec((2, H, 4 * H), lambda j: (0, 0, 0)),         # w_hh
            pl.BlockSpec((2, 1, 4 * H), lambda j: (0, 0, 0)),         # bias
        ],
        out_specs=[
            pl.BlockSpec((B, tb, H), lambda j: (0, j, 0)),            # fwd out
            pl.BlockSpec((B, tb, H), lambda j: (0, nb - 1 - j, 0)),   # bwd out
            pl.BlockSpec((2, B, H), lambda j: (0, 0, 0)),             # final hn
        ],
        scratch_shapes=[pltpu.VMEM((2, B, H), jnp.float32)] * 2,      # h, c
    )

    out_f, out_b, hn = pl.pallas_call(
        _bilstm_kernel,
        out_shape=(
            jax.ShapeDtypeStruct((B, T, H), jnp.float32),
            jax.ShapeDtypeStruct((B, T, H), jnp.float32),
            jax.ShapeDtypeStruct((2, B, H), jnp.float32),
        ),
        grid_spec=grid_spec,
        compiler_params=pltpu.CompilerParams(
            dimension_semantics=("arbitrary",),
            vmem_limit_bytes=32 * 1024 * 1024,
        ),
    )(x, x, params["w_in"], params["w_hh"], params["b"])

    out = jnp.concatenate([out_f, out_b], axis=-1)        # (B, T, 2H)
    final_hn = jnp.concatenate([hn[0], hn[1]], axis=-1)   # (B, 2H)
    return out, final_hn


# ----------------------------------------------------------------------------
# Parameter construction (PyTorch nn.LSTM layout) + kernel repacking.
# ----------------------------------------------------------------------------
def pack_params(p):
    """Repack PyTorch nn.LSTM params into the direction-stacked kernel layout."""
    w_in = jnp.stack([p["w_ih_f"].T, p["w_ih_b"].T], axis=0)       # (2, E, 4H)
    w_hh = jnp.stack([p["w_hh_f"].T, p["w_hh_b"].T], axis=0)       # (2, H, 4H)
    b = jnp.stack([p["b_ih_f"] + p["b_hh_f"],
                   p["b_ih_b"] + p["b_hh_b"]], axis=0)[:, None, :]  # (2, 1, 4H)
    return dict(w_in=w_in, w_hh=w_hh, b=b)


def init_params(key, embed_dim, model_size):
    H, E = model_size, embed_dim
    k = 1.0 / jnp.sqrt(H)
    keys = jax.random.split(key, 8)
    u = lambda kk, shape: jax.random.uniform(kk, shape, jnp.float32, -k, k)

    # PyTorch layout: weight_ih (4H, E), weight_hh (4H, H), biases (4H,).
    params_pt = dict(
        w_ih_f=u(keys[0], (4 * H, E)), w_hh_f=u(keys[1], (4 * H, H)),
        b_ih_f=u(keys[2], (4 * H,)), b_hh_f=u(keys[3], (4 * H,)),
        w_ih_b=u(keys[4], (4 * H, E)), w_hh_b=u(keys[5], (4 * H, H)),
        b_ih_b=u(keys[6], (4 * H,)), b_hh_b=u(keys[7], (4 * H,)),
    )
    return params_pt, pack_params(params_pt)


# ----------------------------------------------------------------------------
# Pure-JAX reference (PyTorch LSTM semantics) for verification.
# ----------------------------------------------------------------------------
def _lstm_dir_ref(x, w_ih, w_hh, b_ih, b_hh, H):
    B, T, _ = x.shape
    h = jnp.zeros((B, H), jnp.float32)
    c = jnp.zeros((B, H), jnp.float32)
    outs = []
    for t in range(T):
        g = x[:, t] @ w_ih.T + h @ w_hh.T + b_ih + b_hh
        i = jax.nn.sigmoid(g[:, :H])
        f = jax.nn.sigmoid(g[:, H:2 * H])
        gg = jnp.tanh(g[:, 2 * H:3 * H])
        o = jax.nn.sigmoid(g[:, 3 * H:])
        c = f * c + i * gg
        h = o * jnp.tanh(c)
        outs.append(h)
    return jnp.stack(outs, axis=1), h


def bidirectional_lstm_ref(x, p, H):
    out_f, hn_f = _lstm_dir_ref(x, p["w_ih_f"], p["w_hh_f"],
                                p["b_ih_f"], p["b_hh_f"], H)
    out_b_rev, hn_b = _lstm_dir_ref(x[:, ::-1], p["w_ih_b"], p["w_hh_b"],
                                    p["b_ih_b"], p["b_hh_b"], H)
    out = jnp.concatenate([out_f, out_b_rev[:, ::-1]], axis=-1)
    final_hn = jnp.concatenate([hn_f, hn_b], axis=-1)
    return out, final_hn


if __name__ == "__main__":
    B, T, E, H = 2, 8, 4, 32   # batch, seq_len, embed_dim, model_size

    key = jax.random.PRNGKey(0)
    k_x, k_p = jax.random.split(key)
    x = jax.random.normal(k_x, (B, T, E), jnp.float32)

    params_pt, params_kernel = init_params(k_p, E, H)

    out, final_hn = jax.jit(bidirectional_lstm)(x, params_kernel)
    out = jax.block_until_ready(out)
    final_hn = jax.block_until_ready(final_hn)

    out_exp, hn_exp = bidirectional_lstm_ref(x, params_pt, H)

    assert out.shape == (B, T, 2 * H)
    assert final_hn.shape == (B, 2 * H)
    # Tolerance accounts for TPU MXU matmul rounding (default precision).
    err_out = float(jnp.max(jnp.abs(out - out_exp)))
    err_hn = float(jnp.max(jnp.abs(final_hn - hn_exp)))
    assert err_out < 5e-3, err_out
    assert err_hn < 5e-3, err_hn

    print("KERNEL_OK")
</pallas_src>

<mosaic_0001>
module attributes {stable_mosaic.version = 11 : i64} {
  func.func @_bilstm_kernel(%arg0: i32, %arg1: memref<2x8x4xf32, #tpu.memory_space<vmem>>, %arg2: memref<2x8x4xf32, #tpu.memory_space<vmem>>, %arg3: memref<2x4x128xf32, #tpu.memory_space<vmem>>, %arg4: memref<2x32x128xf32, #tpu.memory_space<vmem>>, %arg5: memref<2x1x128xf32, #tpu.memory_space<vmem>>, %arg6: memref<2x8x32xf32, #tpu.memory_space<vmem>>, %arg7: memref<2x8x32xf32, #tpu.memory_space<vmem>>, %arg8: memref<2x2x32xf32, #tpu.memory_space<vmem>>, %arg9: memref<2x2x32xf32, #tpu.memory_space<vmem>>, %arg10: memref<2x2x32xf32, #tpu.memory_space<vmem>>) attributes {dimension_semantics = [#tpu.dimension_semantics<arbitrary>], iteration_bounds = array<i64: 1>, scalar_prefetch = 0 : i64, scratch_operands = 2 : i64, tpu.core_type = #tpu.core_type<tc>, window_params = [{transform_indices = @transform_0, window_bounds = array<i64: 2, 8, 4>}, {transform_indices = @transform_1, window_bounds = array<i64: 2, 8, 4>}, {pipeline_mode = #tpu.pipeline_mode<synchronous>, transform_indices = @transform_2, window_bounds = array<i64: 2, 4, 128>}, {pipeline_mode = #tpu.pipeline_mode<synchronous>, transform_indices = @transform_3, window_bounds = array<i64: 2, 32, 128>}, {pipeline_mode = #tpu.pipeline_mode<synchronous>, transform_indices = @transform_4, window_bounds = array<i64: 2, 1, 128>}, {transform_indices = @transform_5, window_bounds = array<i64: 2, 8, 32>}, {transform_indices = @transform_6, window_bounds = array<i64: 2, 8, 32>}, {pipeline_mode = #tpu.pipeline_mode<synchronous>, transform_indices = @transform_7, window_bounds = array<i64: 2, 2, 32>}]} {
    %c0_i32 = arith.constant 0 : i32
    %0 = arith.cmpi eq, %arg0, %c0_i32 : i32
    %1 = arith.extui %0 : i1 to i32
    %c0_i32_0 = arith.constant 0 : i32
    %2 = arith.cmpi ne, %1, %c0_i32_0 : i32
    scf.if %2 {
      %cst_103 = arith.constant 0.000000e+00 : f32
      %387 = vector.broadcast %cst_103 : f32 to vector<2x2x32xf32>
      %c0_104 = arith.constant 0 : index
      %c0_105 = arith.constant 0 : index
      %c0_106 = arith.constant 0 : index
      %388 = vector.load %arg9[%c0_104, %c0_105, %c0_106] : memref<2x2x32xf32, #tpu.memory_space<vmem>>, vector<2x2x32xf32>
      tpu.vector_store %arg9[%c0_104, %c0_105, %c0_106], %387 {strides = array<i32>} : memref<2x2x32xf32, #tpu.memory_space<vmem>>, vector<2x2x32xf32>,
      %cst_107 = arith.constant 0.000000e+00 : f32
      %389 = vector.broadcast %cst_107 : f32 to vector<2x2x32xf32>
      %c0_108 = arith.constant 0 : index
      %c0_109 = arith.constant 0 : index
      %c0_110 = arith.constant 0 : index
      %390 = vector.load %arg10[%c0_108, %c0_109, %c0_110] : memref<2x2x32xf32, #tpu.memory_space<vmem>>, vector<2x2x32xf32>
      tpu.vector_store %arg10[%c0_108, %c0_109, %c0_110], %389 {strides = array<i32>} : memref<2x2x32xf32, #tpu.memory_space<vmem>>, vector<2x2x32xf32>,
    } else {
    }
    %c0 = arith.constant 0 : index
    %c0_1 = arith.constant 0 : index
    %c0_2 = arith.constant 0 : index
    %3 = vector.load %arg3[%c0, %c0_1, %c0_2] : memref<2x4x128xf32, #tpu.memory_space<vmem>>, vector<2x4x128xf32>
    %c0_3 = arith.constant 0 : index
    %c0_4 = arith.constant 0 : index
    %c0_5 = arith.constant 0 : index
    %4 = vector.load %arg4[%c0_3, %c0_4, %c0_5] : memref<2x32x128xf32, #tpu.memory_space<vmem>>, vector<2x32x128xf32>
    %c0_6 = arith.constant 0 : index
    %c0_7 = arith.constant 0 : index
    %c0_8 = arith.constant 0 : index
    %5 = vector.load %arg5[%c0_6, %c0_7, %c0_8] : memref<2x1x128xf32, #tpu.memory_space<vmem>>, vector<2x1x128xf32>
    %c0_9 = arith.constant 0 : index
    %c0_10 = arith.constant 0 : index
    %c0_11 = arith.constant 0 : index
    %6 = vector.load %arg1[%c0_9, %c0_10, %c0_11] : memref<2x8x4xf32, #tpu.memory_space<vmem>>, vector<2x8x4xf32>
    %7 = vector.shape_cast %6 : vector<2x8x4xf32> to vector<16x4xf32>
    %c0_12 = arith.constant 0 : index
    %c0_13 = arith.constant 0 : index
    %c0_14 = arith.constant 0 : index
    %8 = vector.load %arg2[%c0_12, %c0_13, %c0_14] : memref<2x8x4xf32, #tpu.memory_space<vmem>>, vector<2x8x4xf32>
    %9 = vector.shape_cast %8 : vector<2x8x4xf32> to vector<16x4xf32>
    %10 = vector.extract_strided_slice %3 {offsets = [0, 0, 0], sizes = [1, 4, 128], strides = [1, 1, 1]} : vector<2x4x128xf32> to vector<1x4x128xf32>
    %11 = vector.shape_cast %10 : vector<1x4x128xf32> to vector<4x128xf32>
    %cst = arith.constant dense<0.000000e+00> : vector<16x128xf32>
    %12 = tpu.matmul %7, %11, %cst {dimension_numbers = #tpu.dot_dimension_numbers<[1], [0], [0], [1], [0, 0, 1, 1], [], []>} : vector<16x4xf32>, vector<4x128xf32>, vector<16x128xf32> -> vector<16x128xf32>
    %13 = vector.shape_cast %12 : vector<16x128xf32> to vector<2x8x128xf32>
    %14 = vector.extract_strided_slice %5 {offsets = [0, 0, 0], sizes = [1, 1, 128], strides = [1, 1, 1]} : vector<2x1x128xf32> to vector<1x1x128xf32>
    %15 = vector.shape_cast %14 : vector<1x1x128xf32> to vector<1x128xf32>
    %16 = vector.shape_cast %15 : vector<1x128xf32> to vector<1x1x128xf32>
    %17 = vector.broadcast %16 : vector<1x1x128xf32> to vector<2x8x128xf32>
    %18 = arith.addf %13, %17 : vector<2x8x128xf32>
    %19 = vector.extract_strided_slice %3 {offsets = [1, 0, 0], sizes = [1, 4, 128], strides = [1, 1, 1]} : vector<2x4x128xf32> to vector<1x4x128xf32>
    %20 = vector.shape_cast %19 : vector<1x4x128xf32> to vector<4x128xf32>
    %cst_15 = arith.constant dense<0.000000e+00> : vector<16x128xf32>
    %21 = tpu.matmul %9, %20, %cst_15 {dimension_numbers = #tpu.dot_dimension_numbers<[1], [0], [0], [1], [0, 0, 1, 1], [], []>} : vector<16x4xf32>, vector<4x128xf32>, vector<16x128xf32> -> vector<16x128xf32>
    %22 = vector.shape_cast %21 : vector<16x128xf32> to vector<2x8x128xf32>
    %23 = vector.extract_strided_slice %5 {offsets = [1, 0, 0], sizes = [1, 1, 128], strides = [1, 1, 1]} : vector<2x1x128xf32> to vector<1x1x128xf32>
    %24 = vector.shape_cast %23 : vector<1x1x128xf32> to vector<1x128xf32>
    %25 = vector.shape_cast %24 : vector<1x128xf32> to vector<1x1x128xf32>
    %26 = vector.broadcast %25 : vector<1x1x128xf32> to vector<2x8x128xf32>
    %27 = arith.addf %22, %26 : vector<2x8x128xf32>
    %c0_16 = arith.constant 0 : index
    %c0_17 = arith.constant 0 : index
    %c0_18 = arith.constant 0 : index
    %28 = vector.load %arg9[%c0_16, %c0_17, %c0_18] : memref<2x2x32xf32, #tpu.memory_space<vmem>>, vector<2x2x32xf32>
    %c0_19 = arith.constant 0 : index
    %c0_20 = arith.constant 0 : index
    %c0_21 = arith.constant 0 : index
    %29 = vector.load %arg10[%c0_19, %c0_20, %c0_21] : memref<2x2x32xf32, #tpu.memory_space<vmem>>, vector<2x2x32xf32>
    %30 = vector.extract_strided_slice %18 {offsets = [0, 0, 0], sizes = [2, 1, 128], strides = [1, 1, 1]} : vector<2x8x128xf32> to vector<2x1x128xf32>
    %31 = vector.shape_cast %30 : vector<2x1x128xf32> to vector<2x128xf32>
    %32 = vector.extract_strided_slice %27 {offsets = [0, 7, 0], sizes = [2, 1, 128], strides = [1, 1, 1]} : vector<2x8x128xf32> to vector<2x1x128xf32>
    %33 = vector.shape_cast %32 : vector<2x1x128xf32> to vector<2x128xf32>
    %34 = vector.shape_cast %31 : vector<2x128xf32> to vector<1x2x128xf32>
    %35 = vector.shape_cast %33 : vector<2x128xf32> to vector<1x2x128xf32>
    %36 = tpu.concatenate %34, %35 in 0 : vector<1x2x128xf32>, vector<1x2x128xf32> -> vector<2x2x128xf32>
    "tpu.trace_start"() <{level = 10 : i32, message = "dbh,dhg->dbg"}> : () -> ()
    %cst_22 = arith.constant dense<0.000000e+00> : vector<2x2x128xf32>
    %37 = tpu.matmul %28, %4, %cst_22 {dimension_numbers = #tpu.dot_dimension_numbers<[2], [1], [1], [2], [0, 0, 0, 1, 1, 2], [0], [0]>} : vector<2x2x32xf32>, vector<2x32x128xf32>, vector<2x2x128xf32> -> vector<2x2x128xf32>
    "tpu.trace_stop"() : () -> ()
    %38 = arith.addf %36, %37 : vector<2x2x128xf32>
    %39 = vector.extract_strided_slice %38 {offsets = [0, 0, 0], sizes = [2, 2, 32], strides = [1, 1, 1]} : vector<2x2x128xf32> to vector<2x2x32xf32>
    %40 = arith.negf %39 : vector<2x2x32xf32>
    %41 = math.exp %40 : vector<2x2x32xf32>
    %cst_23 = arith.constant 1.000000e+00 : f32
    %42 = vector.broadcast %cst_23 : f32 to vector<2x2x32xf32>
    %43 = arith.addf %42, %41 : vector<2x2x32xf32>
    %44 = arith.divf %42, %43 : vector<2x2x32xf32>
    %45 = vector.extract_strided_slice %38 {offsets = [0, 0, 32], sizes = [2, 2, 32], strides = [1, 1, 1]} : vector<2x2x128xf32> to vector<2x2x32xf32>
    %46 = arith.negf %45 : vector<2x2x32xf32>
    %47 = math.exp %46 : vector<2x2x32xf32>
    %cst_24 = arith.constant 1.000000e+00 : f32
    %48 = vector.broadcast %cst_24 : f32 to vector<2x2x32xf32>
    %49 = arith.addf %48, %47 : vector<2x2x32xf32>
    %50 = arith.divf %48, %49 : vector<2x2x32xf32>
    %51 = vector.extract_strided_slice %38 {offsets = [0, 0, 64], sizes = [2, 2, 32], strides = [1, 1, 1]} : vector<2x2x128xf32> to vector<2x2x32xf32>
    %52 = math.tanh %51 : vector<2x2x32xf32>
    %53 = vector.extract_strided_slice %38 {offsets = [0, 0, 96], sizes = [2, 2, 32], strides = [1, 1, 1]} : vector<2x2x128xf32> to vector<2x2x32xf32>
    %54 = arith.negf %53 : vector<2x2x32xf32>
    %55 = math.exp %54 : vector<2x2x32xf32>
    %cst_25 = arith.constant 1.000000e+00 : f32
    %56 = vector.broadcast %cst_25 : f32 to vector<2x2x32xf32>
    %57 = arith.addf %56, %55 : vector<2x2x32xf32>
    %58 = arith.divf %56, %57 : vector<2x2x32xf32>
    %59 = arith.mulf %50, %29 : vector<2x2x32xf32>
    %60 = arith.mulf %44, %52 : vector<2x2x32xf32>
    %61 = arith.addf %59, %60 : vector<2x2x32xf32>
    %62 = math.tanh %61 : vector<2x2x32xf32>
    %63 = arith.mulf %58, %62 : vector<2x2x32xf32>
    %64 = vector.extract_strided_slice %63 {offsets = [0, 0, 0], sizes = [1, 2, 32], strides = [1, 1, 1]} : vector<2x2x32xf32> to vector<1x2x32xf32>
    %65 = vector.shape_cast %64 : vector<1x2x32xf32> to vector<2x32xf32>
    %c0_26 = arith.constant 0 : index
    %c0_27 = arith.constant 0 : index
    %c0_28 = arith.constant 0 : index
    %66 = vector.load %arg6[%c0_26, %c0_27, %c0_28] : memref<2x8x32xf32, #tpu.memory_space<vmem>>, vector<2x1x32xf32>
    %67 = vector.shape_cast %66 : vector<2x1x32xf32> to vector<2x32xf32>
    %68 = vector.shape_cast %65 : vector<2x32xf32> to vector<2x1x32xf32>
    tpu.vector_store %arg6[%c0_26, %c0_27, %c0_28], %68 {strides = array<i32>} : memref<2x8x32xf32, #tpu.memory_space<vmem>>, vector<2x1x32xf32>,
    %69 = vector.extract_strided_slice %63 {offsets = [1, 0, 0], sizes = [1, 2, 32], strides = [1, 1, 1]} : vector<2x2x32xf32> to vector<1x2x32xf32>
    %70 = vector.shape_cast %69 : vector<1x2x32xf32> to vector<2x32xf32>
    %c0_29 = arith.constant 0 : index
    %c7 = arith.constant 7 : index
    %c0_30 = arith.constant 0 : index
    %71 = vector.load %arg7[%c0_29, %c7, %c0_30] : memref<2x8x32xf32, #tpu.memory_space<vmem>>, vector<2x1x32xf32>
    %72 = vector.shape_cast %71 : vector<2x1x32xf32> to vector<2x32xf32>
    %73 = vector.shape_cast %70 : vector<2x32xf32> to vector<2x1x32xf32>
    tpu.vector_store %arg7[%c0_29, %c7, %c0_30], %73 {strides = array<i32>} : memref<2x8x32xf32, #tpu.memory_space<vmem>>, vector<2x1x32xf32>,
    %74 = vector.extract_strided_slice %18 {offsets = [0, 1, 0], sizes = [2, 1, 128], strides = [1, 1, 1]} : vector<2x8x128xf32> to vector<2x1x128xf32>
    %75 = vector.shape_cast %74 : vector<2x1x128xf32> to vector<2x128xf32>
    %76 = vector.extract_strided_slice %27 {offsets = [0, 6, 0], sizes = [2, 1, 128], strides = [1, 1, 1]} : vector<2x8x128xf32> to vector<2x1x128xf32>
    %77 = vector.shape_cast %76 : vector<2x1x128xf32> to vector<2x128xf32>
    %78 = vector.shape_cast %75 : vector<2x128xf32> to vector<1x2x128xf32>
    %79 = vector.shape_cast %77 : vector<2x128xf32> to vector<1x2x128xf32>
    %80 = tpu.concatenate %78, %79 in 0 : vector<1x2x128xf32>, vector<1x2x128xf32> -> vector<2x2x128xf32>
    "tpu.trace_start"() <{level = 10 : i32, message = "dbh,dhg->dbg"}> : () -> ()
    %cst_31 = arith.constant dense<0.000000e+00> : vector<2x2x128xf32>
    %81 = tpu.matmul %63, %4, %cst_31 {dimension_numbers = #tpu.dot_dimension_numbers<[2], [1], [1], [2], [0, 0, 0, 1, 1, 2], [0], [0]>} : vector<2x2x32xf32>, vector<2x32x128xf32>, vector<2x2x128xf32> -> vector<2x2x128xf32>
    "tpu.trace_stop"() : () -> ()
    %82 = arith.addf %80, %81 : vector<2x2x128xf32>
    %83 = vector.extract_strided_slice %82 {offsets = [0, 0, 0], sizes = [2, 2, 32], strides = [1, 1, 1]} : vector<2x2x128xf32> to vector<2x2x32xf32>
    %84 = arith.negf %83 : vector<2x2x32xf32>
    %85 = math.exp %84 : vector<2x2x32xf32>
    %cst_32 = arith.constant 1.000000e+00 : f32
    %86 = vector.broadcast %cst_32 : f32 to vector<2x2x32xf32>
    %87 = arith.addf %86, %85 : vector<2x2x32xf32>
    %88 = arith.divf %86, %87 : vector<2x2x32xf32>
    %89 = vector.extract_strided_slice %82 {offsets = [0, 0, 32], sizes = [2, 2, 32], strides = [1, 1, 1]} : vector<2x2x128xf32> to vector<2x2x32xf32>
    %90 = arith.negf %89 : vector<2x2x32xf32>
    %91 = math.exp %90 : vector<2x2x32xf32>
    %cst_33 = arith.constant 1.000000e+00 : f32
    %92 = vector.broadcast %cst_33 : f32 to vector<2x2x32xf32>
    %93 = arith.addf %92, %91 : vector<2x2x32xf32>
    %94 = arith.divf %92, %93 : vector<2x2x32xf32>
    %95 = vector.extract_strided_slice %82 {offsets = [0, 0, 64], sizes = [2, 2, 32], strides = [1, 1, 1]} : vector<2x2x128xf32> to vector<2x2x32xf32>
    %96 = math.tanh %95 : vector<2x2x32xf32>
    %97 = vector.extract_strided_slice %82 {offsets = [0, 0, 96], sizes = [2, 2, 32], strides = [1, 1, 1]} : vector<2x2x128xf32> to vector<2x2x32xf32>
    %98 = arith.negf %97 : vector<2x2x32xf32>
    %99 = math.exp %98 : vector<2x2x32xf32>
    %cst_34 = arith.constant 1.000000e+00 : f32
    %100 = vector.broadcast %cst_34 : f32 to vector<2x2x32xf32>
    %101 = arith.addf %100, %99 : vector<2x2x32xf32>
    %102 = arith.divf %100, %101 : vector<2x2x32xf32>
    %103 = arith.mulf %94, %61 : vector<2x2x32xf32>
    %104 = arith.mulf %88, %96 : vector<2x2x32xf32>
    %105 = arith.addf %103, %104 : vector<2x2x32xf32>
    %106 = math.tanh %105 : vector<2x2x32xf32>
    %107 = arith.mulf %102, %106 : vector<2x2x32xf32>
    %108 = vector.extract_strided_slice %107 {offsets = [0, 0, 0], sizes = [1, 2, 32], strides = [1, 1, 1]} : vector<2x2x32xf32> to vector<1x2x32xf32>
    %109 = vector.shape_cast %108 : vector<1x2x32xf32> to vector<2x32xf32>
    %c0_35 = arith.constant 0 : index
    %c1 = arith.constant 1 : index
    %c0_36 = arith.constant 0 : index
    %110 = vector.load %arg6[%c0_35, %c1, %c0_36] : memref<2x8x32xf32, #tpu.memory_space<vmem>>, vector<2x1x32xf32>
    %111 = vector.shape_cast %110 : vector<2x1x32xf32> to vector<2x32xf32>
    %112 = vector.shape_cast %109 : vector<2x32xf32> to vector<2x1x32xf32>
    tpu.vector_store %arg6[%c0_35, %c1, %c0_36], %112 {strides = array<i32>} : memref<2x8x32xf32, #tpu.memory_space<vmem>>, vector<2x1x32xf32>,
    %113 = vector.extract_strided_slice %107 {offsets = [1, 0, 0], sizes = [1, 2, 32], strides = [1, 1, 1]} : vector<2x2x32xf32> to vector<1x2x32xf32>
    %114 = vector.shape_cast %113 : vector<1x2x32xf32> to vector<2x32xf32>
    %c0_37 = arith.constant 0 : index
    %c6 = arith.constant 6 : index
    %c0_38 = arith.constant 0 : index
    %115 = vector.load %arg7[%c0_37, %c6, %c0_38] : memref<2x8x32xf32, #tpu.memory_space<vmem>>, vector<2x1x32xf32>
    %116 = vector.shape_cast %115 : vector<2x1x32xf32> to vector<2x32xf32>
    %117 = vector.shape_cast %114 : vector<2x32xf32> to vector<2x1x32xf32>
    tpu.vector_store %arg7[%c0_37, %c6, %c0_38], %117 {strides = array<i32>} : memref<2x8x32xf32, #tpu.memory_space<vmem>>, vector<2x1x32xf32>,
    %118 = vector.extract_strided_slice %18 {offsets = [0, 2, 0], sizes = [2, 1, 128], strides = [1, 1, 1]} : vector<2x8x128xf32> to vector<2x1x128xf32>
    %119 = vector.shape_cast %118 : vector<2x1x128xf32> to vector<2x128xf32>
    %120 = vector.extract_strided_slice %27 {offsets = [0, 5, 0], sizes = [2, 1, 128], strides = [1, 1, 1]} : vector<2x8x128xf32> to vector<2x1x128xf32>
    %121 = vector.shape_cast %120 : vector<2x1x128xf32> to vector<2x128xf32>
    %122 = vector.shape_cast %119 : vector<2x128xf32> to vector<1x2x128xf32>
    %123 = vector.shape_cast %121 : vector<2x128xf32> to vector<1x2x128xf32>
    %124 = tpu.concatenate %122, %123 in 0 : vector<1x2x128xf32>, vector<1x2x128xf32> -> vector<2x2x128xf32>
    "tpu.trace_start"() <{level = 10 : i32, message = "dbh,dhg->dbg"}> : () -> ()
    %cst_39 = arith.constant dense<0.000000e+00> : vector<2x2x128xf32>
    %125 = tpu.matmul %107, %4, %cst_39 {dimension_numbers = #tpu.dot_dimension_numbers<[2], [1], [1], [2], [0, 0, 0, 1, 1, 2], [0], [0]>} : vector<2x2x32xf32>, vector<2x32x128xf32>, vector<2x2x128xf32> -> vector<2x2x128xf32>
    "tpu.trace_stop"() : () -> ()
    %126 = arith.addf %124, %125 : vector<2x2x128xf32>
    %127 = vector.extract_strided_slice %126 {offsets = [0, 0, 0], sizes = [2, 2, 32], strides = [1, 1, 1]} : vector<2x2x128xf32> to vector<2x2x32xf32>
    %128 = arith.negf %127 : vector<2x2x32xf32>
    %129 = math.exp %128 : vector<2x2x32xf32>
    %cst_40 = arith.constant 1.000000e+00 : f32
    %130 = vector.broadcast %cst_40 : f32 to vector<2x2x32xf32>
    %131 = arith.addf %130, %129 : vector<2x2x32xf32>
    %132 = arith.divf %130, %131 : vector<2x2x32xf32>
    %133 = vector.extract_strided_slice %126 {offsets = [0, 0, 32], sizes = [2, 2, 32], strides = [1, 1, 1]} : vector<2x2x128xf32> to vector<2x2x32xf32>
    %134 = arith.negf %133 : vector<2x2x32xf32>
    %135 = math.exp %134 : vector<2x2x32xf32>
    %cst_41 = arith.constant 1.000000e+00 : f32
    %136 = vector.broadcast %cst_41 : f32 to vector<2x2x32xf32>
    %137 = arith.addf %136, %135 : vector<2x2x32xf32>
    %138 = arith.divf %136, %137 : vector<2x2x32xf32>
    %139 = vector.extract_strided_slice %126 {offsets = [0, 0, 64], sizes = [2, 2, 32], strides = [1, 1, 1]} : vector<2x2x128xf32> to vector<2x2x32xf32>
    %140 = math.tanh %139 : vector<2x2x32xf32>
    %141 = vector.extract_strided_slice %126 {offsets = [0, 0, 96], sizes = [2, 2, 32], strides = [1, 1, 1]} : vector<2x2x128xf32> to vector<2x2x32xf32>
    %142 = arith.negf %141 : vector<2x2x32xf32>
    %143 = math.exp %142 : vector<2x2x32xf32>
    %cst_42 = arith.constant 1.000000e+00 : f32
    %144 = vector.broadcast %cst_42 : f32 to vector<2x2x32xf32>
    %145 = arith.addf %144, %143 : vector<2x2x32xf32>
    %146 = arith.divf %144, %145 : vector<2x2x32xf32>
    %147 = arith.mulf %138, %105 : vector<2x2x32xf32>
    %148 = arith.mulf %132, %140 : vector<2x2x32xf32>
    %149 = arith.addf %147, %148 : vector<2x2x32xf32>
    %150 = math.tanh %149 : vector<2x2x32xf32>
    %151 = arith.mulf %146, %150 : vector<2x2x32xf32>
    %152 = vector.extract_strided_slice %151 {offsets = [0, 0, 0], sizes = [1, 2, 32], strides = [1, 1, 1]} : vector<2x2x32xf32> to vector<1x2x32xf32>
    %153 = vector.shape_cast %152 : vector<1x2x32xf32> to vector<2x32xf32>
    %c0_43 = arith.constant 0 : index
    %c2 = arith.constant 2 : index
    %c0_44 = arith.constant 0 : index
    %154 = vector.load %arg6[%c0_43, %c2, %c0_44] : memref<2x8x32xf32, #tpu.memory_space<vmem>>, vector<2x1x32xf32>
    %155 = vector.shape_cast %154 : vector<2x1x32xf32> to vector<2x32xf32>
    %156 = vector.shape_cast %153 : vector<2x32xf32> to vector<2x1x32xf32>
    tpu.vector_store %arg6[%c0_43, %c2, %c0_44], %156 {strides = array<i32>} : memref<2x8x32xf32, #tpu.memory_space<vmem>>, vector<2x1x32xf32>,
    %157 = vector.extract_strided_slice %151 {offsets = [1, 0, 0], sizes = [1, 2, 32], strides = [1, 1, 1]} : vector<2x2x32xf32> to vector<1x2x32xf32>
    %158 = vector.shape_cast %157 : vector<1x2x32xf32> to vector<2x32xf32>
    %c0_45 = arith.constant 0 : index
    %c5 = arith.constant 5 : index
    %c0_46 = arith.constant 0 : index
    %159 = vector.load %arg7[%c0_45, %c5, %c0_46] : memref<2x8x32xf32, #tpu.memory_space<vmem>>, vector<2x1x32xf32>
    %160 = vector.shape_cast %159 : vector<2x1x32xf32> to vector<2x32xf32>
    %161 = vector.shape_cast %158 : vector<2x32xf32> to vector<2x1x32xf32>
    tpu.vector_store %arg7[%c0_45, %c5, %c0_46], %161 {strides = array<i32>} : memref<2x8x32xf32, #tpu.memory_space<vmem>>, vector<2x1x32xf32>,
    %162 = vector.extract_strided_slice %18 {offsets = [0, 3, 0], sizes = [2, 1, 128], strides = [1, 1, 1]} : vector<2x8x128xf32> to vector<2x1x128xf32>
    %163 = vector.shape_cast %162 : vector<2x1x128xf32> to vector<2x128xf32>
    %164 = vector.extract_strided_slice %27 {offsets = [0, 4, 0], sizes = [2, 1, 128], strides = [1, 1, 1]} : vector<2x8x128xf32> to vector<2x1x128xf32>
    %165 = vector.shape_cast %164 : vector<2x1x128xf32> to vector<2x128xf32>
    %166 = vector.shape_cast %163 : vector<2x128xf32> to vector<1x2x128xf32>
    %167 = vector.shape_cast %165 : vector<2x128xf32> to vector<1x2x128xf32>
    %168 = tpu.concatenate %166, %167 in 0 : vector<1x2x128xf32>, vector<1x2x128xf32> -> vector<2x2x128xf32>
    "tpu.trace_start"() <{level = 10 : i32, message = "dbh,dhg->dbg"}> : () -> ()
    %cst_47 = arith.constant dense<0.000000e+00> : vector<2x2x128xf32>
    %169 = tpu.matmul %151, %4, %cst_47 {dimension_numbers = #tpu.dot_dimension_numbers<[2], [1], [1], [2], [0, 0, 0, 1, 1, 2], [0], [0]>} : vector<2x2x32xf32>, vector<2x32x128xf32>, vector<2x2x128xf32> -> vector<2x2x128xf32>
    "tpu.trace_stop"() : () -> ()
    %170 = arith.addf %168, %169 : vector<2x2x128xf32>
    %171 = vector.extract_strided_slice %170 {offsets = [0, 0, 0], sizes = [2, 2, 32], strides = [1, 1, 1]} : vector<2x2x128xf32> to vector<2x2x32xf32>
    %172 = arith.negf %171 : vector<2x2x32xf32>
    %173 = math.exp %172 : vector<2x2x32xf32>
    %cst_48 = arith.constant 1.000000e+00 : f32
    %174 = vector.broadcast %cst_48 : f32 to vector<2x2x32xf32>
    %175 = arith.addf %174, %173 : vector<2x2x32xf32>
    %176 = arith.divf %174, %175 : vector<2x2x32xf32>
    %177 = vector.extract_strided_slice %170 {offsets = [0, 0, 32], sizes = [2, 2, 32], strides = [1, 1, 1]} : vector<2x2x128xf32> to vector<2x2x32xf32>
    %178 = arith.negf %177 : vector<2x2x32xf32>
    %179 = math.exp %178 : vector<2x2x32xf32>
    %cst_49 = arith.constant 1.000000e+00 : f32
    %180 = vector.broadcast %cst_49 : f32 to vector<2x2x32xf32>
    %181 = arith.addf %180, %179 : vector<2x2x32xf32>
    %182 = arith.divf %180, %181 : vector<2x2x32xf32>
    %183 = vector.extract_strided_slice %170 {offsets = [0, 0, 64], sizes = [2, 2, 32], strides = [1, 1, 1]} : vector<2x2x128xf32> to vector<2x2x32xf32>
    %184 = math.tanh %183 : vector<2x2x32xf32>
    %185 = vector.extract_strided_slice %170 {offsets = [0, 0, 96], sizes = [2, 2, 32], strides = [1, 1, 1]} : vector<2x2x128xf32> to vector<2x2x32xf32>
    %186 = arith.negf %185 : vector<2x2x32xf32>
    %187 = math.exp %186 : vector<2x2x32xf32>
    %cst_50 = arith.constant 1.000000e+00 : f32
    %188 = vector.broadcast %cst_50 : f32 to vector<2x2x32xf32>
    %189 = arith.addf %188, %187 : vector<2x2x32xf32>
    %190 = arith.divf %188, %189 : vector<2x2x32xf32>
    %191 = arith.mulf %182, %149 : vector<2x2x32xf32>
    %192 = arith.mulf %176, %184 : vector<2x2x32xf32>
    %193 = arith.addf %191, %192 : vector<2x2x32xf32>
    %194 = math.tanh %193 : vector<2x2x32xf32>
    %195 = arith.mulf %190, %194 : vector<2x2x32xf32>
    %196 = vector.extract_strided_slice %195 {offsets = [0, 0, 0], sizes = [1, 2, 32], strides = [1, 1, 1]} : vector<2x2x32xf32> to vector<1x2x32xf32>
    %197 = vector.shape_cast %196 : vector<1x2x32xf32> to vector<2x32xf32>
    %c0_51 = arith.constant 0 : index
    %c3 = arith.constant 3 : index
    %c0_52 = arith.constant 0 : index
    %198 = vector.load %arg6[%c0_51, %c3, %c0_52] : memref<2x8x32xf32, #tpu.memory_space<vmem>>, vector<2x1x32xf32>
    %199 = vector.shape_cast %198 : vector<2x1x32xf32> to vector<2x32xf32>
    %200 = vector.shape_cast %197 : vector<2x32xf32> to vector<2x1x32xf32>
    tpu.vector_store %arg6[%c0_51, %c3, %c0_52], %200 {strides = array<i32>} : memref<2x8x32xf32, #tpu.memory_space<vmem>>, vector<2x1x32xf32>,
    %201 = vector.extract_strided_slice %195 {offsets = [1, 0, 0], sizes = [1, 2, 32], strides = [1, 1, 1]} : vector<2x2x32xf32> to vector<1x2x32xf32>
    %202 = vector.shape_cast %201 : vector<1x2x32xf32> to vector<2x32xf32>
    %c0_53 = arith.constant 0 : index
    %c4 = arith.constant 4 : index
    %c0_54 = arith.constant 0 : index
    %203 = vector.load %arg7[%c0_53, %c4, %c0_54] : memref<2x8x32xf32, #tpu.memory_space<vmem>>, vector<2x1x32xf32>
    %204 = vector.shape_cast %203 : vector<2x1x32xf32> to vector<2x32xf32>
    %205 = vector.shape_cast %202 : vector<2x32xf32> to vector<2x1x32xf32>
    tpu.vector_store %arg7[%c0_53, %c4, %c0_54], %205 {strides = array<i32>} : memref<2x8x32xf32, #tpu.memory_space<vmem>>, vector<2x1x32xf32>,
    %206 = vector.extract_strided_slice %18 {offsets = [0, 4, 0], sizes = [2, 1, 128], strides = [1, 1, 1]} : vector<2x8x128xf32> to vector<2x1x128xf32>
    %207 = vector.shape_cast %206 : vector<2x1x128xf32> to vector<2x128xf32>
    %208 = vector.extract_strided_slice %27 {offsets = [0, 3, 0], sizes = [2, 1, 128], strides = [1, 1, 1]} : vector<2x8x128xf32> to vector<2x1x128xf32>
    %209 = vector.shape_cast %208 : vector<2x1x128xf32> to vector<2x128xf32>
    %210 = vector.shape_cast %207 : vector<2x128xf32> to vector<1x2x128xf32>
    %211 = vector.shape_cast %209 : vector<2x128xf32> to vector<1x2x128xf32>
    %212 = tpu.concatenate %210, %211 in 0 : vector<1x2x128xf32>, vector<1x2x128xf32> -> vector<2x2x128xf32>
    "tpu.trace_start"() <{level = 10 : i32, message = "dbh,dhg->dbg"}> : () -> ()
    %cst_55 = arith.constant dense<0.000000e+00> : vector<2x2x128xf32>
    %213 = tpu.matmul %195, %4, %cst_55 {dimension_numbers = #tpu.dot_dimension_numbers<[2], [1], [1], [2], [0, 0, 0, 1, 1, 2], [0], [0]>} : vector<2x2x32xf32>, vector<2x32x128xf32>, vector<2x2x128xf32> -> vector<2x2x128xf32>
    "tpu.trace_stop"() : () -> ()
    %214 = arith.addf %212, %213 : vector<2x2x128xf32>
    %215 = vector.extract_strided_slice %214 {offsets = [0, 0, 0], sizes = [2, 2, 32], strides = [1, 1, 1]} : vector<2x2x128xf32> to vector<2x2x32xf32>
    %216 = arith.negf %215 : vector<2x2x32xf32>
    %217 = math.exp %216 : vector<2x2x32xf32>
    %cst_56 = arith.constant 1.000000e+00 : f32
    %218 = vector.broadcast %cst_56 : f32 to vector<2x2x32xf32>
    %219 = arith.addf %218, %217 : vector<2x2x32xf32>
    %220 = arith.divf %218, %219 : vector<2x2x32xf32>
    %221 = vector.extract_strided_slice %214 {offsets = [0, 0, 32], sizes = [2, 2, 32], strides = [1, 1, 1]} : vector<2x2x128xf32> to vector<2x2x32xf32>
    %222 = arith.negf %221 : vector<2x2x32xf32>
    %223 = math.exp %222 : vector<2x2x32xf32>
    %cst_57 = arith.constant 1.000000e+00 : f32
    %224 = vector.broadcast %cst_57 : f32 to vector<2x2x32xf32>
    %225 = arith.addf %224, %223 : vector<2x2x32xf32>
    %226 = arith.divf %224, %225 : vector<2x2x32xf32>
    %227 = vector.extract_strided_slice %214 {offsets = [0, 0, 64], sizes = [2, 2, 32], strides = [1, 1, 1]} : vector<2x2x128xf32> to vector<2x2x32xf32>
    %228 = math.tanh %227 : vector<2x2x32xf32>
    %229 = vector.extract_strided_slice %214 {offsets = [0, 0, 96], sizes = [2, 2, 32], strides = [1, 1, 1]} : vector<2x2x128xf32> to vector<2x2x32xf32>
    %230 = arith.negf %229 : vector<2x2x32xf32>
    %231 = math.exp %230 : vector<2x2x32xf32>
    %cst_58 = arith.constant 1.000000e+00 : f32
    %232 = vector.broadcast %cst_58 : f32 to vector<2x2x32xf32>
    %233 = arith.addf %232, %231 : vector<2x2x32xf32>
    %234 = arith.divf %232, %233 : vector<2x2x32xf32>
    %235 = arith.mulf %226, %193 : vector<2x2x32xf32>
    %236 = arith.mulf %220, %228 : vector<2x2x32xf32>
    %237 = arith.addf %235, %236 : vector<2x2x32xf32>
    %238 = math.tanh %237 : vector<2x2x32xf32>
    %239 = arith.mulf %234, %238 : vector<2x2x32xf32>
    %240 = vector.extract_strided_slice %239 {offsets = [0, 0, 0], sizes = [1, 2, 32], strides = [1, 1, 1]} : vector<2x2x32xf32> to vector<1x2x32xf32>
    %241 = vector.shape_cast %240 : vector<1x2x32xf32> to vector<2x32xf32>
    %c0_59 = arith.constant 0 : index
    %c4_60 = arith.constant 4 : index
    %c0_61 = arith.constant 0 : index
    %242 = vector.load %arg6[%c0_59, %c4_60, %c0_61] : memref<2x8x32xf32, #tpu.memory_space<vmem>>, vector<2x1x32xf32>
    %243 = vector.shape_cast %242 : vector<2x1x32xf32> to vector<2x32xf32>
    %244 = vector.shape_cast %241 : vector<2x32xf32> to vector<2x1x32xf32>
    tpu.vector_store %arg6[%c0_59, %c4_60, %c0_61], %244 {strides = array<i32>} : memref<2x8x32xf32, #tpu.memory_space<vmem>>, vector<2x1x32xf32>,
    %245 = vector.extract_strided_slice %239 {offsets = [1, 0, 0], sizes = [1, 2, 32], strides = [1, 1, 1]} : vector<2x2x32xf32> to vector<1x2x32xf32>
    %246 = vector.shape_cast %245 : vector<1x2x32xf32> to vector<2x32xf32>
    %c0_62 = arith.constant 0 : index
    %c3_63 = arith.constant 3 : index
    %c0_64 = arith.constant 0 : index
    %247 = vector.load %arg7[%c0_62, %c3_63, %c0_64] : memref<2x8x32xf32, #tpu.memory_space<vmem>>, vector<2x1x32xf32>
    %248 = vector.shape_cast %247 : vector<2x1x32xf32> to vector<2x32xf32>
    %249 = vector.shape_cast %246 : vector<2x32xf32> to vector<2x1x32xf32>
    tpu.vector_store %arg7[%c0_62, %c3_63, %c0_64], %249 {strides = array<i32>} : memref<2x8x32xf32, #tpu.memory_space<vmem>>, vector<2x1x32xf32>,
    %250 = vector.extract_strided_slice %18 {offsets = [0, 5, 0], sizes = [2, 1, 128], strides = [1, 1, 1]} : vector<2x8x128xf32> to vector<2x1x128xf32>
    %251 = vector.shape_cast %250 : vector<2x1x128xf32> to vector<2x128xf32>
    %252 = vector.extract_strided_slice %27 {offsets = [0, 2, 0], sizes = [2, 1, 128], strides = [1, 1, 1]} : vector<2x8x128xf32> to vector<2x1x128xf32>
    %253 = vector.shape_cast %252 : vector<2x1x128xf32> to vector<2x128xf32>
    %254 = vector.shape_cast %251 : vector<2x128xf32> to vector<1x2x128xf32>
    %255 = vector.shape_cast %253 : vector<2x128xf32> to vector<1x2x128xf32>
    %256 = tpu.concatenate %254, %255 in 0 : vector<1x2x128xf32>, vector<1x2x128xf32> -> vector<2x2x128xf32>
    "tpu.trace_start"() <{level = 10 : i32, message = "dbh,dhg->dbg"}> : () -> ()
    %cst_65 = arith.constant dense<0.000000e+00> : vector<2x2x128xf32>
    %257 = tpu.matmul %239, %4, %cst_65 {dimension_numbers = #tpu.dot_dimension_numbers<[2], [1], [1], [2], [0, 0, 0, 1, 1, 2], [0], [0]>} : vector<2x2x32xf32>, vector<2x32x128xf32>, vector<2x2x128xf32> -> vector<2x2x128xf32>
    "tpu.trace_stop"() : () -> ()
    %258 = arith.addf %256, %257 : vector<2x2x128xf32>
    %259 = vector.extract_strided_slice %258 {offsets = [0, 0, 0], sizes = [2, 2, 32], strides = [1, 1, 1]} : vector<2x2x128xf32> to vector<2x2x32xf32>
    %260 = arith.negf %259 : vector<2x2x32xf32>
    %261 = math.exp %260 : vector<2x2x32xf32>
    %cst_66 = arith.constant 1.000000e+00 : f32
    %262 = vector.broadcast %cst_66 : f32 to vector<2x2x32xf32>
    %263 = arith.addf %262, %261 : vector<2x2x32xf32>
    %264 = arith.divf %262, %263 : vector<2x2x32xf32>
    %265 = vector.extract_strided_slice %258 {offsets = [0, 0, 32], sizes = [2, 2, 32], strides = [1, 1, 1]} : vector<2x2x128xf32> to vector<2x2x32xf32>
    %266 = arith.negf %265 : vector<2x2x32xf32>
    %267 = math.exp %266 : vector<2x2x32xf32>
    %cst_67 = arith.constant 1.000000e+00 : f32
    %268 = vector.broadcast %cst_67 : f32 to vector<2x2x32xf32>
    %269 = arith.addf %268, %267 : vector<2x2x32xf32>
    %270 = arith.divf %268, %269 : vector<2x2x32xf32>
    %271 = vector.extract_strided_slice %258 {offsets = [0, 0, 64], sizes = [2, 2, 32], strides = [1, 1, 1]} : vector<2x2x128xf32> to vector<2x2x32xf32>
    %272 = math.tanh %271 : vector<2x2x32xf32>
    %273 = vector.extract_strided_slice %258 {offsets = [0, 0, 96], sizes = [2, 2, 32], strides = [1, 1, 1]} : vector<2x2x128xf32> to vector<2x2x32xf32>
    %274 = arith.negf %273 : vector<2x2x32xf32>
    %275 = math.exp %274 : vector<2x2x32xf32>
    %cst_68 = arith.constant 1.000000e+00 : f32
    %276 = vector.broadcast %cst_68 : f32 to vector<2x2x32xf32>
    %277 = arith.addf %276, %275 : vector<2x2x32xf32>
    %278 = arith.divf %276, %277 : vector<2x2x32xf32>
    %279 = arith.mulf %270, %237 : vector<2x2x32xf32>
    %280 = arith.mulf %264, %272 : vector<2x2x32xf32>
    %281 = arith.addf %279, %280 : vector<2x2x32xf32>
    %282 = math.tanh %281 : vector<2x2x32xf32>
    %283 = arith.mulf %278, %282 : vector<2x2x32xf32>
    %284 = vector.extract_strided_slice %283 {offsets = [0, 0, 0], sizes = [1, 2, 32], strides = [1, 1, 1]} : vector<2x2x32xf32> to vector<1x2x32xf32>
    %285 = vector.shape_cast %284 : vector<1x2x32xf32> to vector<2x32xf32>
    %c0_69 = arith.constant 0 : index
    %c5_70 = arith.constant 5 : index
    %c0_71 = arith.constant 0 : index
    %286 = vector.load %arg6[%c0_69, %c5_70, %c0_71] : memref<2x8x32xf32, #tpu.memory_space<vmem>>, vector<2x1x32xf32>
    %287 = vector.shape_cast %286 : vector<2x1x32xf32> to vector<2x32xf32>
    %288 = vector.shape_cast %285 : vector<2x32xf32> to vector<2x1x32xf32>
    tpu.vector_store %arg6[%c0_69, %c5_70, %c0_71], %288 {strides = array<i32>} : memref<2x8x32xf32, #tpu.memory_space<vmem>>, vector<2x1x32xf32>,
    %289 = vector.extract_strided_slice %283 {offsets = [1, 0, 0], sizes = [1, 2, 32], strides = [1, 1, 1]} : vector<2x2x32xf32> to vector<1x2x32xf32>
    %290 = vector.shape_cast %289 : vector<1x2x32xf32> to vector<2x32xf32>
    %c0_72 = arith.constant 0 : index
    %c2_73 = arith.constant 2 : index
    %c0_74 = arith.constant 0 : index
    %291 = vector.load %arg7[%c0_72, %c2_73, %c0_74] : memref<2x8x32xf32, #tpu.memory_space<vmem>>, vector<2x1x32xf32>
    %292 = vector.shape_cast %291 : vector<2x1x32xf32> to vector<2x32xf32>
    %293 = vector.shape_cast %290 : vector<2x32xf32> to vector<2x1x32xf32>
    tpu.vector_store %arg7[%c0_72, %c2_73, %c0_74], %293 {strides = array<i32>} : memref<2x8x32xf32, #tpu.memory_space<vmem>>, vector<2x1x32xf32>,
    %294 = vector.extract_strided_slice %18 {offsets = [0, 6, 0], sizes = [2, 1, 128], strides = [1, 1, 1]} : vector<2x8x128xf32> to vector<2x1x128xf32>
    %295 = vector.shape_cast %294 : vector<2x1x128xf32> to vector<2x128xf32>
    %296 = vector.extract_strided_slice %27 {offsets = [0, 1, 0], sizes = [2, 1, 128], strides = [1, 1, 1]} : vector<2x8x128xf32> to vector<2x1x128xf32>
    %297 = vector.shape_cast %296 : vector<2x1x128xf32> to vector<2x128xf32>
    %298 = vector.shape_cast %295 : vector<2x128xf32> to vector<1x2x128xf32>
    %299 = vector.shape_cast %297 : vector<2x128xf32> to vector<1x2x128xf32>
    %300 = tpu.concatenate %298, %299 in 0 : vector<1x2x128xf32>, vector<1x2x128xf32> -> vector<2x2x128xf32>
    "tpu.trace_start"() <{level = 10 : i32, message = "dbh,dhg->dbg"}> : () -> ()
    %cst_75 = arith.constant dense<0.000000e+00> : vector<2x2x128xf32>
    %301 = tpu.matmul %283, %4, %cst_75 {dimension_numbers = #tpu.dot_dimension_numbers<[2], [1], [1], [2], [0, 0, 0, 1, 1, 2], [0], [0]>} : vector<2x2x32xf32>, vector<2x32x128xf32>, vector<2x2x128xf32> -> vector<2x2x128xf32>
    "tpu.trace_stop"() : () -> ()
    %302 = arith.addf %300, %301 : vector<2x2x128xf32>
    %303 = vector.extract_strided_slice %302 {offsets = [0, 0, 0], sizes = [2, 2, 32], strides = [1, 1, 1]} : vector<2x2x128xf32> to vector<2x2x32xf32>
    %304 = arith.negf %303 : vector<2x2x32xf32>
    %305 = math.exp %304 : vector<2x2x32xf32>
    %cst_76 = arith.constant 1.000000e+00 : f32
    %306 = vector.broadcast %cst_76 : f32 to vector<2x2x32xf32>
    %307 = arith.addf %306, %305 : vector<2x2x32xf32>
    %308 = arith.divf %306, %307 : vector<2x2x32xf32>
    %309 = vector.extract_strided_slice %302 {offsets = [0, 0, 32], sizes = [2, 2, 32], strides = [1, 1, 1]} : vector<2x2x128xf32> to vector<2x2x32xf32>
    %310 = arith.negf %309 : vector<2x2x32xf32>
    %311 = math.exp %310 : vector<2x2x32xf32>
    %cst_77 = arith.constant 1.000000e+00 : f32
    %312 = vector.broadcast %cst_77 : f32 to vector<2x2x32xf32>
    %313 = arith.addf %312, %311 : vector<2x2x32xf32>
    %314 = arith.divf %312, %313 : vector<2x2x32xf32>
    %315 = vector.extract_strided_slice %302 {offsets = [0, 0, 64], sizes = [2, 2, 32], strides = [1, 1, 1]} : vector<2x2x128xf32> to vector<2x2x32xf32>
    %316 = math.tanh %315 : vector<2x2x32xf32>
    %317 = vector.extract_strided_slice %302 {offsets = [0, 0, 96], sizes = [2, 2, 32], strides = [1, 1, 1]} : vector<2x2x128xf32> to vector<2x2x32xf32>
    %318 = arith.negf %317 : vector<2x2x32xf32>
    %319 = math.exp %318 : vector<2x2x32xf32>
    %cst_78 = arith.constant 1.000000e+00 : f32
    %320 = vector.broadcast %cst_78 : f32 to vector<2x2x32xf32>
    %321 = arith.addf %320, %319 : vector<2x2x32xf32>
    %322 = arith.divf %320, %321 : vector<2x2x32xf32>
    %323 = arith.mulf %314, %281 : vector<2x2x32xf32>
    %324 = arith.mulf %308, %316 : vector<2x2x32xf32>
    %325 = arith.addf %323, %324 : vector<2x2x32xf32>
    %326 = math.tanh %325 : vector<2x2x32xf32>
    %327 = arith.mulf %322, %326 : vector<2x2x32xf32>
    %328 = vector.extract_strided_slice %327 {offsets = [0, 0, 0], sizes = [1, 2, 32], strides = [1, 1, 1]} : vector<2x2x32xf32> to vector<1x2x32xf32>
    %329 = vector.shape_cast %328 : vector<1x2x32xf32> to vector<2x32xf32>
    %c0_79 = arith.constant 0 : index
    %c6_80 = arith.constant 6 : index
    %c0_81 = arith.constant 0 : index
    %330 = vector.load %arg6[%c0_79, %c6_80, %c0_81] : memref<2x8x32xf32, #tpu.memory_space<vmem>>, vector<2x1x32xf32>
    %331 = vector.shape_cast %330 : vector<2x1x32xf32> to vector<2x32xf32>
    %332 = vector.shape_cast %329 : vector<2x32xf32> to vector<2x1x32xf32>
    tpu.vector_store %arg6[%c0_79, %c6_80, %c0_81], %332 {strides = array<i32>} : memref<2x8x32xf32, #tpu.memory_space<vmem>>, vector<2x1x32xf32>,
    %333 = vector.extract_strided_slice %327 {offsets = [1, 0, 0], sizes = [1, 2, 32], strides = [1, 1, 1]} : vector<2x2x32xf32> to vector<1x2x32xf32>
    %334 = vector.shape_cast %333 : vector<1x2x32xf32> to vector<2x32xf32>
    %c0_82 = arith.constant 0 : index
    %c1_83 = arith.constant 1 : index
    %c0_84 = arith.constant 0 : index
    %335 = vector.load %arg7[%c0_82, %c1_83, %c0_84] : memref<2x8x32xf32, #tpu.memory_space<vmem>>, vector<2x1x32xf32>
    %336 = vector.shape_cast %335 : vector<2x1x32xf32> to vector<2x32xf32>
    %337 = vector.shape_cast %334 : vector<2x32xf32> to vector<2x1x32xf32>
    tpu.vector_store %arg7[%c0_82, %c1_83, %c0_84], %337 {strides = array<i32>} : memref<2x8x32xf32, #tpu.memory_space<vmem>>, vector<2x1x32xf32>,
    %338 = vector.extract_strided_slice %18 {offsets = [0, 7, 0], sizes = [2, 1, 128], strides = [1, 1, 1]} : vector<2x8x128xf32> to vector<2x1x128xf32>
    %339 = vector.shape_cast %338 : vector<2x1x128xf32> to vector<2x128xf32>
    %340 = vector.extract_strided_slice %27 {offsets = [0, 0, 0], sizes = [2, 1, 128], strides = [1, 1, 1]} : vector<2x8x128xf32> to vector<2x1x128xf32>
    %341 = vector.shape_cast %340 : vector<2x1x128xf32> to vector<2x128xf32>
    %342 = vector.shape_cast %339 : vector<2x128xf32> to vector<1x2x128xf32>
    %343 = vector.shape_cast %341 : vector<2x128xf32> to vector<1x2x128xf32>
    %344 = tpu.concatenate %342, %343 in 0 : vector<1x2x128xf32>, vector<1x2x128xf32> -> vector<2x2x128xf32>
    "tpu.trace_start"() <{level = 10 : i32, message = "dbh,dhg->dbg"}> : () -> ()
    %cst_85 = arith.constant dense<0.000000e+00> : vector<2x2x128xf32>
    %345 = tpu.matmul %327, %4, %cst_85 {dimension_numbers = #tpu.dot_dimension_numbers<[2], [1], [1], [2], [0, 0, 0, 1, 1, 2], [0], [0]>} : vector<2x2x32xf32>, vector<2x32x128xf32>, vector<2x2x128xf32> -> vector<2x2x128xf32>
    "tpu.trace_stop"() : () -> ()
    %346 = arith.addf %344, %345 : vector<2x2x128xf32>
    %347 = vector.extract_strided_slice %346 {offsets = [0, 0, 0], sizes = [2, 2, 32], strides = [1, 1, 1]} : vector<2x2x128xf32> to vector<2x2x32xf32>
    %348 = arith.negf %347 : vector<2x2x32xf32>
    %349 = math.exp %348 : vector<2x2x32xf32>
    %cst_86 = arith.constant 1.000000e+00 : f32
    %350 = vector.broadcast %cst_86 : f32 to vector<2x2x32xf32>
    %351 = arith.addf %350, %349 : vector<2x2x32xf32>
    %352 = arith.divf %350, %351 : vector<2x2x32xf32>
    %353 = vector.extract_strided_slice %346 {offsets = [0, 0, 32], sizes = [2, 2, 32], strides = [1, 1, 1]} : vector<2x2x128xf32> to vector<2x2x32xf32>
    %354 = arith.negf %353 : vector<2x2x32xf32>
    %355 = math.exp %354 : vector<2x2x32xf32>
    %cst_87 = arith.constant 1.000000e+00 : f32
    %356 = vector.broadcast %cst_87 : f32 to vector<2x2x32xf32>
    %357 = arith.addf %356, %355 : vector<2x2x32xf32>
    %358 = arith.divf %356, %357 : vector<2x2x32xf32>
    %359 = vector.extract_strided_slice %346 {offsets = [0, 0, 64], sizes = [2, 2, 32], strides = [1, 1, 1]} : vector<2x2x128xf32> to vector<2x2x32xf32>
    %360 = math.tanh %359 : vector<2x2x32xf32>
    %361 = vector.extract_strided_slice %346 {offsets = [0, 0, 96], sizes = [2, 2, 32], strides = [1, 1, 1]} : vector<2x2x128xf32> to vector<2x2x32xf32>
    %362 = arith.negf %361 : vector<2x2x32xf32>
    %363 = math.exp %362 : vector<2x2x32xf32>
    %cst_88 = arith.constant 1.000000e+00 : f32
    %364 = vector.broadcast %cst_88 : f32 to vector<2x2x32xf32>
    %365 = arith.addf %364, %363 : vector<2x2x32xf32>
    %366 = arith.divf %364, %365 : vector<2x2x32xf32>
    %367 = arith.mulf %358, %325 : vector<2x2x32xf32>
    %368 = arith.mulf %352, %360 : vector<2x2x32xf32>
    %369 = arith.addf %367, %368 : vector<2x2x32xf32>
    %370 = math.tanh %369 : vector<2x2x32xf32>
    %371 = arith.mulf %366, %370 : vector<2x2x32xf32>
    %372 = vector.extract_strided_slice %371 {offsets = [0, 0, 0], sizes = [1, 2, 32], strides = [1, 1, 1]} : vector<2x2x32xf32> to vector<1x2x32xf32>
    %373 = vector.shape_cast %372 : vector<1x2x32xf32> to vector<2x32xf32>
    %c0_89 = arith.constant 0 : index
    %c7_90 = arith.constant 7 : index
    %c0_91 = arith.constant 0 : index
    %374 = vector.load %arg6[%c0_89, %c7_90, %c0_91] : memref<2x8x32xf32, #tpu.memory_space<vmem>>, vector<2x1x32xf32>
    %375 = vector.shape_cast %374 : vector<2x1x32xf32> to vector<2x32xf32>
    %376 = vector.shape_cast %373 : vector<2x32xf32> to vector<2x1x32xf32>
    tpu.vector_store %arg6[%c0_89, %c7_90, %c0_91], %376 {strides = array<i32>} : memref<2x8x32xf32, #tpu.memory_space<vmem>>, vector<2x1x32xf32>,
    %377 = vector.extract_strided_slice %371 {offsets = [1, 0, 0], sizes = [1, 2, 32], strides = [1, 1, 1]} : vector<2x2x32xf32> to vector<1x2x32xf32>
    %378 = vector.shape_cast %377 : vector<1x2x32xf32> to vector<2x32xf32>
    %c0_92 = arith.constant 0 : index
    %c0_93 = arith.constant 0 : index
    %c0_94 = arith.constant 0 : index
    %379 = vector.load %arg7[%c0_92, %c0_93, %c0_94] : memref<2x8x32xf32, #tpu.memory_space<vmem>>, vector<2x1x32xf32>
    %380 = vector.shape_cast %379 : vector<2x1x32xf32> to vector<2x32xf32>
    %381 = vector.shape_cast %378 : vector<2x32xf32> to vector<2x1x32xf32>
    tpu.vector_store %arg7[%c0_92, %c0_93, %c0_94], %381 {strides = array<i32>} : memref<2x8x32xf32, #tpu.memory_space<vmem>>, vector<2x1x32xf32>,
    %c0_95 = arith.constant 0 : index
    %c0_96 = arith.constant 0 : index
    %c0_97 = arith.constant 0 : index
    %382 = vector.load %arg9[%c0_95, %c0_96, %c0_97] : memref<2x2x32xf32, #tpu.memory_space<vmem>>, vector<2x2x32xf32>
    tpu.vector_store %arg9[%c0_95, %c0_96, %c0_97], %371 {strides = array<i32>} : memref<2x2x32xf32, #tpu.memory_space<vmem>>, vector<2x2x32xf32>,
    %c0_98 = arith.constant 0 : index
    %c0_99 = arith.constant 0 : index
    %c0_100 = arith.constant 0 : index
    %383 = vector.load %arg10[%c0_98, %c0_99, %c0_100] : memref<2x2x32xf32, #tpu.memory_space<vmem>>, vector<2x2x32xf32>
    tpu.vector_store %arg10[%c0_98, %c0_99, %c0_100], %369 {strides = array<i32>} : memref<2x2x32xf32, #tpu.memory_space<vmem>>, vector<2x2x32xf32>,
    %c0_i32_101 = arith.constant 0 : i32
    %384 = arith.cmpi eq, %arg0, %c0_i32_101 : i32
    %385 = arith.extui %384 : i1 to i32
    %c0_i32_102 = arith.constant 0 : i32
    %386 = arith.cmpi ne, %385, %c0_i32_102 : i32
    scf.if %386 {
      %c0_103 = arith.constant 0 : index
      %c0_104 = arith.constant 0 : index
      %c0_105 = arith.constant 0 : index
      %387 = vector.load %arg8[%c0_103, %c0_104, %c0_105] : memref<2x2x32xf32, #tpu.memory_space<vmem>>, vector<2x2x32xf32>
      tpu.vector_store %arg8[%c0_103, %c0_104, %c0_105], %371 {strides = array<i32>} : memref<2x2x32xf32, #tpu.memory_space<vmem>>, vector<2x2x32xf32>,
    } else {
    }
    return
  }
  func.func @transform_0(%arg0: i32) -> (i32, i32, i32) {
    %c0_i32 = arith.constant 0 : i32
    %c0_i32_0 = arith.constant 0 : i32
    %c0_i32_1 = arith.constant 0 : i32
    return %c0_i32, %arg0, %c0_i32_0 : i32, i32, i32
  }
  func.func @transform_1(%arg0: i32) -> (i32, i32, i32) {
    %c0_i32 = arith.constant 0 : i32
    %0 = arith.subi %c0_i32, %arg0 : i32
    %c0_i32_0 = arith.constant 0 : i32
    %c0_i32_1 = arith.constant 0 : i32
    %c0_i32_2 = arith.constant 0 : i32
    return %c0_i32_0, %0, %c0_i32_1 : i32, i32, i32
  }
  func.func @transform_2(%arg0: i32) -> (i32, i32, i32) {
    %c0_i32 = arith.constant 0 : i32
    %c0_i32_0 = arith.constant 0 : i32
    %c0_i32_1 = arith.constant 0 : i32
    %c0_i32_2 = arith.constant 0 : i32
    return %c0_i32, %c0_i32_0, %c0_i32_1 : i32, i32, i32
  }
  func.func @transform_3(%arg0: i32) -> (i32, i32, i32) {
    %c0_i32 = arith.constant 0 : i32
    %c0_i32_0 = arith.constant 0 : i32
    %c0_i32_1 = arith.constant 0 : i32
    %c0_i32_2 = arith.constant 0 : i32
    return %c0_i32, %c0_i32_0, %c0_i32_1 : i32, i32, i32
  }
  func.func @transform_4(%arg0: i32) -> (i32, i32, i32) {
    %c0_i32 = arith.constant 0 : i32
    %c0_i32_0 = arith.constant 0 : i32
    %c0_i32_1 = arith.constant 0 : i32
    %c0_i32_2 = arith.constant 0 : i32
    return %c0_i32, %c0_i32_0, %c0_i32_1 : i32, i32, i32
  }
  func.func @transform_5(%arg0: i32) -> (i32, i32, i32) {
    %c0_i32 = arith.constant 0 : i32
    %c0_i32_0 = arith.constant 0 : i32
    %c0_i32_1 = arith.constant 0 : i32
    return %c0_i32, %arg0, %c0_i32_0 : i32, i32, i32
  }
  func.func @transform_6(%arg0: i32) -> (i32, i32, i32) {
    %c0_i32 = arith.constant 0 : i32
    %0 = arith.subi %c0_i32, %arg0 : i32
    %c0_i32_0 = arith.constant 0 : i32
    %c0_i32_1 = arith.constant 0 : i32
    %c0_i32_2 = arith.constant 0 : i32
    return %c0_i32_0, %0, %c0_i32_1 : i32, i32, i32
  }
  func.func @transform_7(%arg0: i32) -> (i32, i32, i32) {
    %c0_i32 = arith.constant 0 : i32
    %c0_i32_0 = arith.constant 0 : i32
    %c0_i32_1 = arith.constant 0 : i32
    %c0_i32_2 = arith.constant 0 : i32
    return %c0_i32, %c0_i32_0, %c0_i32_1 : i32, i32, i32
  }
}

</mosaic_0001>

<llo_original>
// kernel: bidirectional_lstm.1
$region0: #{bidirectional_lstm.1}
  #allocation0 [shape = 'u32[]', space=smem, size = 0x4, offset = 0x4, fixed_abs, tag = 'smem constant byte address 0x4 - core index']
  #allocation1 [shape = 'u32[144,128]{1,0:T(1,128)}', space=vmem, size = 0x12000, scoped, tag = 'internal scratch']
  #allocation2 [shape = 'f32[2,2,32]{2,1,0:T(2,128)}', space=vmem, size = 0x800, scoped, tag = 'scratch operand']
  #allocation3 [shape = 'f32[2,2,32]{2,1,0:T(2,128)}', space=vmem, size = 0x800, scoped, tag = 'scratch operand']
  %s0 = inlined_call_operand.vmem [shape: f32[2,8,4], index: 0, kind: input, shape index: {}, may-alias: {0,1}]
  %s1 = inlined_call_operand.vmem [shape: f32[2,8,4], index: 1, kind: input, shape index: {}, may-alias: {0,1}]
  %s2 = inlined_call_operand.vmem [shape: f32[2,4,128], index: 2, kind: input, shape index: {}]
  %s3 = inlined_call_operand.hbm [shape: f32[2,32,128], index: 3, kind: input, shape index: {}]
  %s4 = inlined_call_operand.vmem [shape: f32[2,1,128], index: 4, kind: input, shape index: {}]
  %s5 = inlined_call_operand.vmem [shape: f32[2,8,32], index: 5, kind: output, shape index: {0}]
  %s6 = inlined_call_operand.vmem [shape: f32[2,8,32], index: 6, kind: output, shape index: {1}]
  %s7 = inlined_call_operand.vmem [shape: f32[2,2,32], index: 7, kind: output, shape index: {2}]
  %8 = xla_tuple %s5, %s6, %s7
  %s9 = sld [smem:[#allocation0]]
  $region58: #{bidirectional_lstm.1} parent=0
    _
  %s11 = ssub.s32 1, %s9
  %s12 = scalar_select 0, %s11, %s9
  $region1: #{bidirectional_lstm.1} parent=0
    #allocation4 [shape = 'u8[32768]{0}', space=vmem, size = 0x8000, scoped, tag = 'input window, operand 3, single buffered']
    #allocation5 [shape = 's32[1]{0}', space=sflag, size = 0x4, scoped, tag = 'scoped memory for bidirectional_lstm.1']
    %13 = vsyncpa [#allocation5], 0
    // Predicated region
    $region2: #{bidirectional_lstm.1} parent=1 // pred_check
      _
    $region3: #{bidirectional_lstm.1} parent=1 // pred_check_branch
      %15 = sbr.rel (0) target = $region5
    $region4: #{bidirectional_lstm.1} parent=1 // pred_region
      _
    $region5: #{bidirectional_lstm.1} parent=1 // pred_fallthru
      _
    // Predicated region
    $region6: #{bidirectional_lstm.1} parent=1 // pred_check
      _
    $region7: #{bidirectional_lstm.1} parent=1 // pred_check_branch
      %17 = sbr.rel (0) target = $region9
    $region8: #{bidirectional_lstm.1} parent=1 // pred_region
      %s18 = ssub.s32 0, 0
      %p19 = scmp.lt.s32.totalorder %s18, 0
      %s20 = scalar_select %p19, %s18, 0
      %s21 = smul.addr %s20, 8
      %s22 = scalar_lea.vmem %s1, %s21
      %s23 = ssub.s32 0, 0
    $region9: #{bidirectional_lstm.1} parent=1 // pred_fallthru
      _
    // Predicated region
    $region10: #{bidirectional_lstm.1} parent=1 // pred_check
      _
    $region11: #{bidirectional_lstm.1} parent=1 // pred_check_branch
      %25 = sbr.rel (0) target = $region13
    $region12: #{bidirectional_lstm.1} parent=1 // pred_region
      _
    $region13: #{bidirectional_lstm.1} parent=1 // pred_fallthru
      _
    // Predicated region
    $region14: #{bidirectional_lstm.1} parent=1 // pred_check
      _
    $region15: #{bidirectional_lstm.1} parent=1 // pred_check_branch
      %27 = sbr.rel (0) target = $region17
    $region16: #{bidirectional_lstm.1} parent=1 // pred_region
      %s29 = ssub.s32 1024, 1024
      %30 = vsyncadd [#allocation5], %s29
      %s31 = sshll.u32 [#allocation4], 4
      %s32 = int_to_ptr.vmem [resolvable:$true] %s31
      %37 = dma.hbm_to_vmem [thread:$0]  %s3, 1024, %s32, [#allocation5], 128, 128, 8
    $region17: #{bidirectional_lstm.1} parent=1 // pred_fallthru
      _
    // Predicated region
    $region18: #{bidirectional_lstm.1} parent=1 // pred_check
      _
    $region19: #{bidirectional_lstm.1} parent=1 // pred_check_branch
      %39 = sbr.rel (0) target = $region21
    $region20: #{bidirectional_lstm.1} parent=1 // pred_region
      _
    $region21: #{bidirectional_lstm.1} parent=1 // pred_fallthru
      _
    // Predicated region
    $region22: #{bidirectional_lstm.1} parent=1 // pred_check
      _
    $region23: #{bidirectional_lstm.1} parent=1 // pred_check_branch
      %41 = sbr.rel (0) target = $region25
    $region24: #{bidirectional_lstm.1} parent=1 // pred_region
      %42 = dma.done [#allocation5], 1024
    $region25: #{bidirectional_lstm.1} parent=1 // pred_fallthru
      _
    %s43 = ssub.s32 0, 0
    %p44 = scmp.lt.s32.totalorder %s43, 0
    %s45 = scalar_select %p44, %s43, 0
    %s46 = smul.addr %s45, 8
    %s47 = scalar_lea.vmem %s1, %s46
    %s48 = ssub.s32 0, 0
    %p49 = scmp.lt.s32.totalorder %s48, 0
    %s50 = scalar_select %p49, %s48, 0
    %s51 = smul.addr %s50, 8
    %s52 = scalar_lea.vmem %s6, %s51
    %s53 = ssub.s32 0, 0
    %p54 = scmp.lt.s32.totalorder %s53, 0
    %s55 = scalar_select %p54, %s53, 0
    %s56 = smul.addr %s55, 8
    %s57 = scalar_lea.vmem %s1, %s56
    %s58 = ssub.s32 0, 0
    %s59 = ssub.s32 0, 0
    %p60 = scmp.lt.s32.totalorder %s59, 0
    %s61 = scalar_select %p60, %s59, 0
    %s62 = smul.addr %s61, 8
    %s63 = scalar_lea.vmem %s6, %s62
    %s64 = ssub.s32 0, 0
    %p65 = scmp.eq.s32.totalorder 0, 0
    // Predicated region
    $region26: #{bidirectional_lstm.1} parent=1 // pred_check
      %p66 = pneg %p65
    $region27: #{bidirectional_lstm.1} parent=1 // pred_check_branch
      %68 = sbr.rel (%p66) target = $region29
    $region28: #{bidirectional_lstm.1} parent=1 // pred_region
      %vm69 = vcmask 254976
      %70 = vst.msk [vmem:[#allocation2] sm:$0x3] %vm69, 0.0
      %71 = vst.msk [vmem:[#allocation2 + $0x2] sm:$0x3] %vm69, 0.0
      %72 = vst.msk [vmem:[#allocation3] sm:$0x3] %vm69, 0.0
      %73 = vst.msk [vmem:[#allocation3 + $0x2] sm:$0x3] %vm69, 0.0
    $region29: #{bidirectional_lstm.1} parent=1 // pred_fallthru
      _
    %v74 = vld [vmem:[%s2] sm:$0xf]
    %v75 = vld [vmem:[%s2 + $0x4] sm:$0xf]
    %v76 = vld [vmem:[#allocation4] sm:$0xff]
    %v77 = vld [vmem:[#allocation4 + $0x8] sm:$0xff]
    %v78 = vld [vmem:[#allocation4 + $0x10] sm:$0xff]
    %v79 = vld [vmem:[#allocation4 + $0x18] sm:$0xff]
    %v80 = vld [vmem:[#allocation4 + $0x20] sm:$0xff]
    %v81 = vld [vmem:[#allocation4 + $0x28] sm:$0xff]
    %v82 = vld [vmem:[#allocation4 + $0x30] sm:$0xff]
    %v83 = vld [vmem:[#allocation4 + $0x38] sm:$0xff]
    %v84 = vld [vmem:[%s4] sm:$0x1]
    %v85 = vld [vmem:[%s4 + $0x1] sm:$0x1]
    %v86 = vld [vmem:[%s0] sm:$0xff]
    %v87 = vld [vmem:[%s0 + $0x8] sm:$0xff]
    %v88 = vld [vmem:[%s57] sm:$0xff]
    %v89 = vld [vmem:[%s57 + $0x8] sm:$0xff]
    %vm90 = vcmask 31744
    %v92 = vsel %vm90, %v86, 0
    %v95 = vsel %vm90, %v87, 0
    %vm97 = vcmask 1043456
    %v99 = vsel %vm97, %v74, 0
    %101 = vmatprep.subr.mxu0 0.0
    %102 = vmatpush1.msra.mxu0 %v99
    %103 = vmatprep.subr.mxu0 0.0
    %104 = vmatpush1.msra.mxu0 0.0
    %105 = vmatprep.subr.mxu0 0.0
    %106 = vmatpush1.msra.mxu0 0.0
    %107 = vmatprep.subr.mxu0 0.0
    %108 = vmatpush1.msra.mxu0 0.0
    %109 = vmatprep.subr.mxu0 0.0
    %110 = vmatpush1.msra.mxu0 0.0
    %111 = vmatprep.subr.mxu0 0.0
    %112 = vmatpush1.msra.mxu0 0.0
    %113 = vmatprep.subr.mxu0 0.0
    %114 = vmatpush1.msra.mxu0 0.0
    %115 = vmatprep.subr.mxu0 0.0
    %116 = vmatpush1.msra.mxu0 0.0
    %117 = vmatprep.subr.mxu0 0.0
    %118 = vmatpush1.msra.mxu0 0.0
    %119 = vmatprep.subr.mxu0 0.0
    %120 = vmatpush1.msra.mxu0 0.0
    %121 = vmatprep.subr.mxu0 0.0
    %122 = vmatpush1.msra.mxu0 0.0
    %123 = vmatprep.subr.mxu0 0.0
    %124 = vmatpush1.msra.mxu0 0.0
    %125 = vmatprep.subr.mxu0 0.0
    %126 = vmatpush1.msra.mxu0 0.0
    %127 = vmatprep.subr.mxu0 0.0
    %128 = vmatpush1.msra.mxu0 0.0
    %129 = vmatprep.subr.mxu0 0.0
    %130 = vmatpush1.msra.mxu0 0.0
    %131 = vmatprep.subr.mxu0 0.0
    %132 = vmatpush1.msra.mxu0 0.0
    %133 = vmatprep.subr.mxu0 0.0
    %134 = vmatpush1.msra.mxu0 0.0
    %135 = vmatprep.subr.mxu0 0.0
    %136 = vmatpush1.msra.mxu0 0.0
    %137 = vmatprep.subr.mxu0 0.0
    %138 = vmatpush1.msra.mxu0 0.0
    %139 = vmatprep.subr.mxu0 0.0
    %140 = vmatpush1.msra.mxu0 0.0
    %141 = vmatprep.subr.mxu0 0.0
    %142 = vmatpush1.msra.mxu0 0.0
    %143 = vmatprep.subr.mxu0 0.0
    %144 = vmatpush1.msra.mxu0 0.0
    %145 = vmatprep.subr.mxu0 0.0
    %146 = vmatpush1.msra.mxu0 0.0
    %147 = vmatprep.subr.mxu0 0.0
    %148 = vmatpush1.msra.mxu0 0.0
    %149 = vmatprep.subr.mxu0 0.0
    %150 = vmatpush1.msra.mxu0 0.0
    %151 = vmatprep.subr.mxu0 0.0
    %152 = vmatpush1.msra.mxu0 0.0
    %153 = vmatprep.subr.mxu0 0.0
    %154 = vmatpush1.msra.mxu0 0.0
    %155 = vmatprep.subr.mxu0 0.0
    %156 = vmatpush1.msra.mxu0 0.0
    %157 = vmatprep.subr.mxu0 0.0
    %158 = vmatpush1.msra.mxu0 0.0
    %159 = vmatprep.subr.mxu0 0.0
    %160 = vmatpush1.msra.mxu0 0.0
    %161 = vmatprep.subr.mxu0 0.0
    %162 = vmatpush1.msra.mxu0 0.0
    %163 = vmatprep.subr.mxu0 0.0
    %164 = vmatpush1.msra.mxu0 0.0
    %165 = vmatprep.mubr.f32.mxu0 0.0
    %166 = vmatmul.mubr.f32.gmra.mrb[0].mxu0 %v92
    %v167 = vpop.f32.mrb[0].mxu0
    %v168 = vadd.f32 0.0, %v167
    %v169 = vpop.f32.mrb[0].mxu0
    %170 = vmatprep.mubr.f32.mxu0 0.0
    %171 = vmatmul.mubr.f32.gmra.mrb[0].mxu0 %v95
    %v172 = vpop.f32.mrb[0].mxu0
    %v173 = vadd.f32 0.0, %v172
    %v174 = vpop.f32.mrb[0].mxu0
    %175 = vdwg.mxu0
    %v177 = vlaneseq
    %v178 = vshrl.u32 %v177, 7
    %v179 = vsub.s32 0, %v178
    %v180 = vrot.slane %v84, %v179
    %v182 = vadd.f32 %v168, %v180
    %v183 = vadd.f32 %v173, %v180
    %v185 = vsel %vm90, %v88, 0
    %v188 = vsel %vm90, %v89, 0
    %v191 = vsel %vm97, %v75, 0
    %193 = vmatprep.subr.mxu0 0.0
    %194 = vmatpush1.msra.mxu0 %v191
    %195 = vmatprep.subr.mxu0 0.0
    %196 = vmatpush1.msra.mxu0 0.0
    %197 = vmatprep.subr.mxu0 0.0
    %198 = vmatpush1.msra.mxu0 0.0
    %199 = vmatprep.subr.mxu0 0.0
    %200 = vmatpush1.msra.mxu0 0.0
    %201 = vmatprep.subr.mxu0 0.0
    %202 = vmatpush1.msra.mxu0 0.0
    %203 = vmatprep.subr.mxu0 0.0
    %204 = vmatpush1.msra.mxu0 0.0
    %205 = vmatprep.subr.mxu0 0.0
    %206 = vmatpush1.msra.mxu0 0.0
    %207 = vmatprep.subr.mxu0 0.0
    %208 = vmatpush1.msra.mxu0 0.0
    %209 = vmatprep.subr.mxu0 0.0
    %210 = vmatpush1.msra.mxu0 0.0
    %211 = vmatprep.subr.mxu0 0.0
    %212 = vmatpush1.msra.mxu0 0.0
    %213 = vmatprep.subr.mxu0 0.0
    %214 = vmatpush1.msra.mxu0 0.0
    %215 = vmatprep.subr.mxu0 0.0
    %216 = vmatpush1.msra.mxu0 0.0
    %217 = vmatprep.subr.mxu0 0.0
    %218 = vmatpush1.msra.mxu0 0.0
    %219 = vmatprep.subr.mxu0 0.0
    %220 = vmatpush1.msra.mxu0 0.0
    %221 = vmatprep.subr.mxu0 0.0
    %222 = vmatpush1.msra.mxu0 0.0
    %223 = vmatprep.subr.mxu0 0.0
    %224 = vmatpush1.msra.mxu0 0.0
    %225 = vmatprep.subr.mxu0 0.0
    %226 = vmatpush1.msra.mxu0 0.0
    %227 = vmatprep.subr.mxu0 0.0
    %228 = vmatpush1.msra.mxu0 0.0
    %229 = vmatprep.subr.mxu0 0.0
    %230 = vmatpush1.msra.mxu0 0.0
    %231 = vmatprep.subr.mxu0 0.0
    %232 = vmatpush1.msra.mxu0 0.0
    %233 = vmatprep.subr.mxu0 0.0
    %234 = vmatpush1.msra.mxu0 0.0
    %235 = vmatprep.subr.mxu0 0.0
    %236 = vmatpush1.msra.mxu0 0.0
    %237 = vmatprep.subr.mxu0 0.0
    %238 = vmatpush1.msra.mxu0 0.0
    %239 = vmatprep.subr.mxu0 0.0
    %240 = vmatpush1.msra.mxu0 0.0
    %241 = vmatprep.subr.mxu0 0.0
    %242 = vmatpush1.msra.mxu0 0.0
    %243 = vmatprep.subr.mxu0 0.0
    %244 = vmatpush1.msra.mxu0 0.0
    %245 = vmatprep.subr.mxu0 0.0
    %246 = vmatpush1.msra.mxu0 0.0
    %247 = vmatprep.subr.mxu0 0.0
    %248 = vmatpush1.msra.mxu0 0.0
    %249 = vmatprep.subr.mxu0 0.0
    %250 = vmatpush1.msra.mxu0 0.0
    %251 = vmatprep.subr.mxu0 0.0
    %252 = vmatpush1.msra.mxu0 0.0
    %253 = vmatprep.subr.mxu0 0.0
    %254 = vmatpush1.msra.mxu0 0.0
    %255 = vmatprep.subr.mxu0 0.0
    %256 = vmatpush1.msra.mxu0 0.0
    %257 = vmatprep.mubr.f32.mxu0 0.0
    %258 = vmatmul.mubr.f32.gmra.mrb[0].mxu0 %v185
    %v259 = vpop.f32.mrb[0].mxu0
    %v260 = vadd.f32 0.0, %v259
    %v261 = vpop.f32.mrb[0].mxu0
    %262 = vmatprep.mubr.f32.mxu0 0.0
    %263 = vmatmul.mubr.f32.gmra.mrb[0].mxu0 %v188
    %v264 = vpop.f32.mrb[0].mxu0
    %v265 = vadd.f32 0.0, %v264
    %v266 = vpop.f32.mrb[0].mxu0
    %267 = vdwg.mxu0
    %v269 = vlaneseq
    %v270 = vshrl.u32 %v269, 7
    %v271 = vsub.s32 0, %v270
    %v272 = vrot.slane %v85, %v271
    %v274 = vadd.f32 %v260, %v272
    %v275 = vadd.f32 %v265, %v272
    %v276 = vld [vmem:[#allocation2] sm:$0x3]
    %v277 = vld [vmem:[#allocation2 + $0x2] sm:$0x3]
    %v278 = vld [vmem:[#allocation3] sm:$0x3]
    %v279 = vld [vmem:[#allocation3 + $0x2] sm:$0x3]
    %v282 = vrot.slane %v274, 7
    %v283 = vrot.slane %v275, 7
    %vm286 = vcmask 261120
    %v288 = vsel %vm286, %v276, 0
    %290 = vmatprep.subr.mxu0 0.0
    %291 = vmatpush1.msra.mxu0 %v76
    %292 = vmatprep.subr.mxu0 0.0
    %293 = vmatpush1.msra.mxu0 %v77
    %294 = vmatprep.subr.mxu0 0.0
    %295 = vmatpush1.msra.mxu0 %v78
    %296 = vmatprep.subr.mxu0 0.0
    %297 = vmatpush1.msra.mxu0 %v79
    %298 = vmatprep.subr.mxu0 0.0
    %299 = vmatpush1.msra.mxu0 0.0
    %300 = vmatprep.subr.mxu0 0.0
    %301 = vmatpush1.msra.mxu0 0.0
    %302 = vmatprep.subr.mxu0 0.0
    %303 = vmatpush1.msra.mxu0 0.0
    %304 = vmatprep.subr.mxu0 0.0
    %305 = vmatpush1.msra.mxu0 0.0
    %306 = vmatprep.subr.mxu0 0.0
    %307 = vmatpush1.msra.mxu0 0.0
    %308 = vmatprep.subr.mxu0 0.0
    %309 = vmatpush1.msra.mxu0 0.0
    %310 = vmatprep.subr.mxu0 0.0
    %311 = vmatpush1.msra.mxu0 0.0
    %312 = vmatprep.subr.mxu0 0.0
    %313 = vmatpush1.msra.mxu0 0.0
    %314 = vmatprep.subr.mxu0 0.0
    %315 = vmatpush1.msra.mxu0 0.0
    %316 = vmatprep.subr.mxu0 0.0
    %317 = vmatpush1.msra.mxu0 0.0
    %318 = vmatprep.subr.mxu0 0.0
    %319 = vmatpush1.msra.mxu0 0.0
    %320 = vmatprep.subr.mxu0 0.0
    %321 = vmatpush1.msra.mxu0 0.0
    %322 = vmatprep.subr.mxu0 0.0
    %323 = vmatpush1.msra.mxu0 0.0
    %324 = vmatprep.subr.mxu0 0.0
    %325 = vmatpush1.msra.mxu0 0.0
    %326 = vmatprep.subr.mxu0 0.0
    %327 = vmatpush1.msra.mxu0 0.0
    %328 = vmatprep.subr.mxu0 0.0
    %329 = vmatpush1.msra.mxu0 0.0
    %330 = vmatprep.subr.mxu0 0.0
    %331 = vmatpush1.msra.mxu0 0.0
    %332 = vmatprep.subr.mxu0 0.0
    %333 = vmatpush1.msra.mxu0 0.0
    %334 = vmatprep.subr.mxu0 0.0
    %335 = vmatpush1.msra.mxu0 0.0
    %336 = vmatprep.subr.mxu0 0.0
    %337 = vmatpush1.msra.mxu0 0.0
    %338 = vmatprep.subr.mxu0 0.0
    %339 = vmatpush1.msra.mxu0 0.0
    %340 = vmatprep.subr.mxu0 0.0
    %341 = vmatpush1.msra.mxu0 0.0
    %342 = vmatprep.subr.mxu0 0.0
    %343 = vmatpush1.msra.mxu0 0.0
    %344 = vmatprep.subr.mxu0 0.0
    %345 = vmatpush1.msra.mxu0 0.0
    %346 = vmatprep.subr.mxu0 0.0
    %347 = vmatpush1.msra.mxu0 0.0
    %348 = vmatprep.subr.mxu0 0.0
    %349 = vmatpush1.msra.mxu0 0.0
    %350 = vmatprep.subr.mxu0 0.0
    %351 = vmatpush1.msra.mxu0 0.0
    %352 = vmatprep.subr.mxu0 0.0
    %353 = vmatpush1.msra.mxu0 0.0
    %354 = vmatprep.mubr.f32.mxu0 0.0
    %355 = vmatmul.mubr.f32.gmra.mrb[0].mxu0 %v288
    %v356 = vpop.f32.mrb[0].mxu0
    %v357 = vadd.f32 0.0, %v356
    %v358 = vpop.f32.mrb[0].mxu0
    %359 = vdwg.mxu0
    %v361 = vsel %vm286, %v277, 0
    %363 = vmatprep.subr.mxu0 0.0
    %364 = vmatpush1.msra.mxu0 %v80
    %365 = vmatprep.subr.mxu0 0.0
    %366 = vmatpush1.msra.mxu0 %v81
    %367 = vmatprep.subr.mxu0 0.0
    %368 = vmatpush1.msra.mxu0 %v82
    %369 = vmatprep.subr.mxu0 0.0
    %370 = vmatpush1.msra.mxu0 %v83
    %371 = vmatprep.subr.mxu0 0.0
    %372 = vmatpush1.msra.mxu0 0.0
    %373 = vmatprep.subr.mxu0 0.0
    %374 = vmatpush1.msra.mxu0 0.0
    %375 = vmatprep.subr.mxu0 0.0
    %376 = vmatpush1.msra.mxu0 0.0
    %377 = vmatprep.subr.mxu0 0.0
    %378 = vmatpush1.msra.mxu0 0.0
    %379 = vmatprep.subr.mxu0 0.0
    %380 = vmatpush1.msra.mxu0 0.0
    %381 = vmatprep.subr.mxu0 0.0
    %382 = vmatpush1.msra.mxu0 0.0
    %383 = vmatprep.subr.mxu0 0.0
    %384 = vmatpush1.msra.mxu0 0.0
    %385 = vmatprep.subr.mxu0 0.0
    %386 = vmatpush1.msra.mxu0 0.0
    %387 = vmatprep.subr.mxu0 0.0
    %388 = vmatpush1.msra.mxu0 0.0
    %389 = vmatprep.subr.mxu0 0.0
    %390 = vmatpush1.msra.mxu0 0.0
    %391 = vmatprep.subr.mxu0 0.0
    %392 = vmatpush1.msra.mxu0 0.0
    %393 = vmatprep.subr.mxu0 0.0
    %394 = vmatpush1.msra.mxu0 0.0
    %395 = vmatprep.subr.mxu0 0.0
    %396 = vmatpush1.msra.mxu0 0.0
    %397 = vmatprep.subr.mxu0 0.0
    %398 = vmatpush1.msra.mxu0 0.0
    %399 = vmatprep.subr.mxu0 0.0
    %400 = vmatpush1.msra.mxu0 0.0
    %401 = vmatprep.subr.mxu0 0.0
    %402 = vmatpush1.msra.mxu0 0.0
    %403 = vmatprep.subr.mxu0 0.0
    %404 = vmatpush1.msra.mxu0 0.0
    %405 = vmatprep.subr.mxu0 0.0
    %406 = vmatpush1.msra.mxu0 0.0
    %407 = vmatprep.subr.mxu0 0.0
    %408 = vmatpush1.msra.mxu0 0.0
    %409 = vmatprep.subr.mxu0 0.0
    %410 = vmatpush1.msra.mxu0 0.0
    %411 = vmatprep.subr.mxu0 0.0
    %412 = vmatpush1.msra.mxu0 0.0
    %413 = vmatprep.subr.mxu0 0.0
    %414 = vmatpush1.msra.mxu0 0.0
    %415 = vmatprep.subr.mxu0 0.0
    %416 = vmatpush1.msra.mxu0 0.0
    %417 = vmatprep.subr.mxu0 0.0
    %418 = vmatpush1.msra.mxu0 0.0
    %419 = vmatprep.subr.mxu0 0.0
    %420 = vmatpush1.msra.mxu0 0.0
    %421 = vmatprep.subr.mxu0 0.0
    %422 = vmatpush1.msra.mxu0 0.0
    %423 = vmatprep.subr.mxu0 0.0
    %424 = vmatpush1.msra.mxu0 0.0
    %425 = vmatprep.subr.mxu0 0.0
    %426 = vmatpush1.msra.mxu0 0.0
    %427 = vmatprep.mubr.f32.mxu0 0.0
    %428 = vmatmul.mubr.f32.gmra.mrb[0].mxu0 %v361
    %v429 = vpop.f32.mrb[0].mxu0
    %v430 = vadd.f32 0.0, %v429
    %v431 = vpop.f32.mrb[0].mxu0
    %432 = vdwg.mxu0
    %v435 = vrot.slane %v357, 1
    %v436 = vrot.slane %v430, 1
    %v441 = vadd.f32 %v182, %v357
    %v442 = vadd.f32 %v183, %v435
    %v443 = vadd.f32 %v282, %v430
    %v444 = vadd.f32 %v283, %v436
    %v445 = vxor.u32 %v441, 2147483648
    %v446 = vxor.u32 %v442, 2147483648
    %v447 = vxor.u32 %v443, 2147483648
    %v448 = vxor.u32 %v444, 2147483648
    %v449 = vmul.f32 %v445, 1.442695
    %v450 = vpow.pop %v449
    %v451 = vmul.f32 %v446, 1.442695
    %v452 = vpow.pop %v451
    %v453 = vmul.f32 %v447, 1.442695
    %v454 = vpow.pop %v453
    %v455 = vmul.f32 %v448, 1.442695
    %v456 = vpow.pop %v455
    %v457 = vadd.f32 %v450, 1.0
    %v458 = vadd.f32 %v452, 1.0
    %v459 = vadd.f32 %v454, 1.0
    %v460 = vadd.f32 %v456, 1.0
    %v461 = vrcp.pop %v457
    %v462 = vmul.f32 1.0, %v461
    %v463 = vrcp.pop %v458
    %v464 = vmul.f32 1.0, %v463
    %v465 = vrcp.pop %v459
    %v466 = vmul.f32 1.0, %v465
    %v467 = vrcp.pop %v460
    %v468 = vmul.f32 1.0, %v467
    %v469 = vtanh.pop %v441
    %v470 = vtanh.pop %v442
    %v471 = vtanh.pop %v443
    %v472 = vtanh.pop %v444
    %v475 = vrot.slane %v278, 1
    %v476 = vrot.slane %v279, 1
    %477 = vrot.lane.b32.xlu0 %v278, 32
    %v478 = vpop.permute.xlu0 %477
    %479 = vrot.lane.b32.xlu0 %v475, 32
    %v480 = vpop.permute.xlu0 %479
    %481 = vrot.lane.b32.xlu0 %v279, 32
    %v482 = vpop.permute.xlu0 %481
    %483 = vrot.lane.b32.xlu0 %v476, 32
    %v484 = vpop.permute.xlu0 %483
    %v489 = vmul.f32 %v462, %v478
    %v490 = vmul.f32 %v464, %v480
    %v491 = vmul.f32 %v466, %v482
    %v492 = vmul.f32 %v468, %v484
    %497 = vrot.lane.b32.xlu0 %v469, 64
    %v498 = vpop.permute.xlu0 %497
    %499 = vrot.lane.b32.xlu0 %v470, 64
    %v500 = vpop.permute.xlu0 %499
    %501 = vrot.lane.b32.xlu0 %v471, 64
    %v502 = vpop.permute.xlu0 %501
    %503 = vrot.lane.b32.xlu0 %v472, 64
    %v504 = vpop.permute.xlu0 %503
    %v509 = vmul.f32 %v462, %v498
    %v510 = vmul.f32 %v464, %v500
    %v511 = vmul.f32 %v466, %v502
    %v512 = vmul.f32 %v468, %v504
    %517 = vrot.lane.b32.xlu0 %v509, 32
    %v518 = vpop.permute.xlu0 %517
    %519 = vrot.lane.b32.xlu0 %v510, 32
    %v520 = vpop.permute.xlu0 %519
    %521 = vrot.lane.b32.xlu0 %v511, 32
    %v522 = vpop.permute.xlu0 %521
    %523 = vrot.lane.b32.xlu0 %v512, 32
    %v524 = vpop.permute.xlu0 %523
    %v529 = vadd.f32 %v489, %v518
    %v530 = vadd.f32 %v490, %v520
    %v531 = vadd.f32 %v491, %v522
    %v532 = vadd.f32 %v492, %v524
    %v533 = vtanh.pop %v529
    %v534 = vtanh.pop %v530
    %v535 = vtanh.pop %v531
    %v536 = vtanh.pop %v532
    %541 = vrot.lane.b32.xlu0 %v533, 64
    %v542 = vpop.permute.xlu0 %541
    %543 = vrot.lane.b32.xlu0 %v534, 64
    %v544 = vpop.permute.xlu0 %543
    %545 = vrot.lane.b32.xlu0 %v535, 64
    %v546 = vpop.permute.xlu0 %545
    %547 = vrot.lane.b32.xlu0 %v536, 64
    %v548 = vpop.permute.xlu0 %547
    %v553 = vmul.f32 %v462, %v542
    %v554 = vmul.f32 %v464, %v544
    %v555 = vmul.f32 %v466, %v546
    %v556 = vmul.f32 %v468, %v548
    %559 = vrot.lane.b32.xlu0 %v553, 32
    %v560 = vpop.permute.xlu0 %559
    %561 = vrot.lane.b32.xlu0 %v554, 32
    %v562 = vpop.permute.xlu0 %561
    %vm565 = vcmask 253952
    %566 = vst.msk [vmem:[%s5] sm:$0x1] %vm565, %v560
    %567 = vst.msk [vmem:[%s5 + $0x8] sm:$0x1] %vm565, %v562
    %570 = vrot.lane.b32.xlu0 %v555, 32
    %v571 = vpop.permute.xlu0 %570
    %572 = vrot.lane.b32.xlu0 %v556, 32
    %v573 = vpop.permute.xlu0 %572
    %576 = vst.msk [vmem:[%s63 + $0x7] sm:$0x1] %vm565, %v571
    %577 = vst.msk [vmem:[%s63 + $0xf] sm:$0x1] %vm565, %v573
    %v578 = vrot.slane %v274, 5
    %v579 = vrot.slane %v275, 5
    %v582 = vrot.slane %v554, 7
    %vm583 = vcmask 1041409
    %v584 = vsel %vm583, %v582, %v553
    %585 = vrot.lane.b32.xlu0 %v584, 32
    %v586 = vpop.permute.xlu0 %585
    %v587 = vsel %vm286, %v586, 0
    %589 = vmatprep.subr.mxu0 0.0
    %590 = vmatpush1.msra.mxu0 %v76
    %591 = vmatprep.subr.mxu0 0.0
    %592 = vmatpush1.msra.mxu0 %v77
    %593 = vmatprep.subr.mxu0 0.0
    %594 = vmatpush1.msra.mxu0 %v78
    %595 = vmatprep.subr.mxu0 0.0
    %596 = vmatpush1.msra.mxu0 %v79
    %597 = vmatprep.subr.mxu0 0.0
    %598 = vmatpush1.msra.mxu0 0.0
    %599 = vmatprep.subr.mxu0 0.0
    %600 = vmatpush1.msra.mxu0 0.0
    %601 = vmatprep.subr.mxu0 0.0
    %602 = vmatpush1.msra.mxu0 0.0
    %603 = vmatprep.subr.mxu0 0.0
    %604 = vmatpush1.msra.mxu0 0.0
    %605 = vmatprep.subr.mxu0 0.0
    %606 = vmatpush1.msra.mxu0 0.0
    %607 = vmatprep.subr.mxu0 0.0
    %608 = vmatpush1.msra.mxu0 0.0
    %609 = vmatprep.subr.mxu0 0.0
    %610 = vmatpush1.msra.mxu0 0.0
    %611 = vmatprep.subr.mxu0 0.0
    %612 = vmatpush1.msra.mxu0 0.0
    %613 = vmatprep.subr.mxu0 0.0
    %614 = vmatpush1.msra.mxu0 0.0
    %615 = vmatprep.subr.mxu0 0.0
    %616 = vmatpush1.msra.mxu0 0.0
    %617 = vmatprep.subr.mxu0 0.0
    %618 = vmatpush1.msra.mxu0 0.0
    %619 = vmatprep.subr.mxu0 0.0
    %620 = vmatpush1.msra.mxu0 0.0
    %621 = vmatprep.subr.mxu0 0.0
    %622 = vmatpush1.msra.mxu0 0.0
    %623 = vmatprep.subr.mxu0 0.0
    %624 = vmatpush1.msra.mxu0 0.0
    %625 = vmatprep.subr.mxu0 0.0
    %626 = vmatpush1.msra.mxu0 0.0
    %627 = vmatprep.subr.mxu0 0.0
    %628 = vmatpush1.msra.mxu0 0.0
    %629 = vmatprep.subr.mxu0 0.0
    %630 = vmatpush1.msra.mxu0 0.0
    %631 = vmatprep.subr.mxu0 0.0
    %632 = vmatpush1.msra.mxu0 0.0
    %633 = vmatprep.subr.mxu0 0.0
    %634 = vmatpush1.msra.mxu0 0.0
    %635 = vmatprep.subr.mxu0 0.0
    %636 = vmatpush1.msra.mxu0 0.0
    %637 = vmatprep.subr.mxu0 0.0
    %638 = vmatpush1.msra.mxu0 0.0
    %639 = vmatprep.subr.mxu0 0.0
    %640 = vmatpush1.msra.mxu0 0.0
    %641 = vmatprep.subr.mxu0 0.0
    %642 = vmatpush1.msra.mxu0 0.0
    %643 = vmatprep.subr.mxu0 0.0
    %644 = vmatpush1.msra.mxu0 0.0
    %645 = vmatprep.subr.mxu0 0.0
    %646 = vmatpush1.msra.mxu0 0.0
    %647 = vmatprep.subr.mxu0 0.0
    %648 = vmatpush1.msra.mxu0 0.0
    %649 = vmatprep.subr.mxu0 0.0
    %650 = vmatpush1.msra.mxu0 0.0
    %651 = vmatprep.subr.mxu0 0.0
    %652 = vmatpush1.msra.mxu0 0.0
    %653 = vmatprep.mubr.f32.mxu0 0.0
    %654 = vmatmul.mubr.f32.gmra.mrb[0].mxu0 %v587
    %v655 = vpop.f32.mrb[0].mxu0
    %v656 = vadd.f32 0.0, %v655
    %v657 = vpop.f32.mrb[0].mxu0
    %658 = vdwg.mxu0
    %v659 = vrot.slane %v556, 7
    %v660 = vsel %vm583, %v659, %v555
    %661 = vrot.lane.b32.xlu0 %v660, 32
    %v662 = vpop.permute.xlu0 %661
    %v663 = vsel %vm286, %v662, 0
    %665 = vmatprep.subr.mxu0 0.0
    %666 = vmatpush1.msra.mxu0 %v80
    %667 = vmatprep.subr.mxu0 0.0
    %668 = vmatpush1.msra.mxu0 %v81
    %669 = vmatprep.subr.mxu0 0.0
    %670 = vmatpush1.msra.mxu0 %v82
    %671 = vmatprep.subr.mxu0 0.0
    %672 = vmatpush1.msra.mxu0 %v83
    %673 = vmatprep.subr.mxu0 0.0
    %674 = vmatpush1.msra.mxu0 0.0
    %675 = vmatprep.subr.mxu0 0.0
    %676 = vmatpush1.msra.mxu0 0.0
    %677 = vmatprep.subr.mxu0 0.0
    %678 = vmatpush1.msra.mxu0 0.0
    %679 = vmatprep.subr.mxu0 0.0
    %680 = vmatpush1.msra.mxu0 0.0
    %681 = vmatprep.subr.mxu0 0.0
    %682 = vmatpush1.msra.mxu0 0.0
    %683 = vmatprep.subr.mxu0 0.0
    %684 = vmatpush1.msra.mxu0 0.0
    %685 = vmatprep.subr.mxu0 0.0
    %686 = vmatpush1.msra.mxu0 0.0
    %687 = vmatprep.subr.mxu0 0.0
    %688 = vmatpush1.msra.mxu0 0.0
    %689 = vmatprep.subr.mxu0 0.0
    %690 = vmatpush1.msra.mxu0 0.0
    %691 = vmatprep.subr.mxu0 0.0
    %692 = vmatpush1.msra.mxu0 0.0
    %693 = vmatprep.subr.mxu0 0.0
    %694 = vmatpush1.msra.mxu0 0.0
    %695 = vmatprep.subr.mxu0 0.0
    %696 = vmatpush1.msra.mxu0 0.0
    %697 = vmatprep.subr.mxu0 0.0
    %698 = vmatpush1.msra.mxu0 0.0
    %699 = vmatprep.subr.mxu0 0.0
    %700 = vmatpush1.msra.mxu0 0.0
    %701 = vmatprep.subr.mxu0 0.0
    %702 = vmatpush1.msra.mxu0 0.0
    %703 = vmatprep.subr.mxu0 0.0
    %704 = vmatpush1.msra.mxu0 0.0
    %705 = vmatprep.subr.mxu0 0.0
    %706 = vmatpush1.msra.mxu0 0.0
    %707 = vmatprep.subr.mxu0 0.0
    %708 = vmatpush1.msra.mxu0 0.0
    %709 = vmatprep.subr.mxu0 0.0
    %710 = vmatpush1.msra.mxu0 0.0
    %711 = vmatprep.subr.mxu0 0.0
    %712 = vmatpush1.msra.mxu0 0.0
    %713 = vmatprep.subr.mxu0 0.0
    %714 = vmatpush1.msra.mxu0 0.0
    %715 = vmatprep.subr.mxu0 0.0
    %716 = vmatpush1.msra.mxu0 0.0
    %717 = vmatprep.subr.mxu0 0.0
    %718 = vmatpush1.msra.mxu0 0.0
    %719 = vmatprep.subr.mxu0 0.0
    %720 = vmatpush1.msra.mxu0 0.0
    %721 = vmatprep.subr.mxu0 0.0
    %722 = vmatpush1.msra.mxu0 0.0
    %723 = vmatprep.subr.mxu0 0.0
    %724 = vmatpush1.msra.mxu0 0.0
    %725 = vmatprep.subr.mxu0 0.0
    %726 = vmatpush1.msra.mxu0 0.0
    %727 = vmatprep.subr.mxu0 0.0
    %728 = vmatpush1.msra.mxu0 0.0
    %729 = vmatprep.mubr.f32.mxu0 0.0
    %730 = vmatmul.mubr.f32.gmra.mrb[0].mxu0 %v663
    %v731 = vpop.f32.mrb[0].mxu0
    %v732 = vadd.f32 0.0, %v731
    %v733 = vpop.f32.mrb[0].mxu0
    %734 = vdwg.mxu0
    %v737 = vrot.slane %v656, 7
    %v738 = vrot.slane %v732, 7
    %v743 = vadd.f32 %v182, %v737
    %v744 = vadd.f32 %v183, %v656
    %v745 = vadd.f32 %v578, %v738
    %v746 = vadd.f32 %v579, %v732
    %v747 = vxor.u32 %v743, 2147483648
    %v748 = vxor.u32 %v744, 2147483648
    %v749 = vxor.u32 %v745, 2147483648
    %v750 = vxor.u32 %v746, 2147483648
    %v751 = vmul.f32 %v747, 1.442695
    %v752 = vpow.pop %v751
    %v753 = vmul.f32 %v748, 1.442695
    %v754 = vpow.pop %v753
    %v755 = vmul.f32 %v749, 1.442695
    %v756 = vpow.pop %v755
    %v757 = vmul.f32 %v750, 1.442695
    %v758 = vpow.pop %v757
    %v759 = vadd.f32 %v752, 1.0
    %v760 = vadd.f32 %v754, 1.0
    %v761 = vadd.f32 %v756, 1.0
    %v762 = vadd.f32 %v758, 1.0
    %v763 = vrcp.pop %v759
    %v764 = vmul.f32 1.0, %v763
    %v765 = vrcp.pop %v760
    %v766 = vmul.f32 1.0, %v765
    %v767 = vrcp.pop %v761
    %v768 = vmul.f32 1.0, %v767
    %v769 = vrcp.pop %v762
    %v770 = vmul.f32 1.0, %v769
    %v771 = vtanh.pop %v743
    %v772 = vtanh.pop %v744
    %v773 = vtanh.pop %v745
    %v774 = vtanh.pop %v746
    %v779 = vrot.slane %v529, 7
    %v780 = vrot.slane %v530, 7
    %v781 = vrot.slane %v531, 7
    %v782 = vrot.slane %v532, 7
    %v787 = vmul.f32 %v764, %v779
    %v788 = vmul.f32 %v766, %v780
    %v789 = vmul.f32 %v768, %v781
    %v790 = vmul.f32 %v770, %v782
    %795 = vrot.lane.b32.xlu0 %v771, 64
    %v796 = vpop.permute.xlu0 %795
    %797 = vrot.lane.b32.xlu0 %v772, 64
    %v798 = vpop.permute.xlu0 %797
    %799 = vrot.lane.b32.xlu0 %v773, 64
    %v800 = vpop.permute.xlu0 %799
    %801 = vrot.lane.b32.xlu0 %v774, 64
    %v802 = vpop.permute.xlu0 %801
    %v807 = vmul.f32 %v764, %v796
    %v808 = vmul.f32 %v766, %v798
    %v809 = vmul.f32 %v768, %v800
    %v810 = vmul.f32 %v770, %v802
    %815 = vrot.lane.b32.xlu0 %v807, 32
    %v816 = vpop.permute.xlu0 %815
    %817 = vrot.lane.b32.xlu0 %v808, 32
    %v818 = vpop.permute.xlu0 %817
    %819 = vrot.lane.b32.xlu0 %v809, 32
    %v820 = vpop.permute.xlu0 %819
    %821 = vrot.lane.b32.xlu0 %v810, 32
    %v822 = vpop.permute.xlu0 %821
    %v827 = vadd.f32 %v787, %v816
    %v828 = vadd.f32 %v788, %v818
    %v829 = vadd.f32 %v789, %v820
    %v830 = vadd.f32 %v790, %v822
    %v831 = vtanh.pop %v827
    %v832 = vtanh.pop %v828
    %v833 = vtanh.pop %v829
    %v834 = vtanh.pop %v830
    %839 = vrot.lane.b32.xlu0 %v831, 64
    %v840 = vpop.permute.xlu0 %839
    %841 = vrot.lane.b32.xlu0 %v832, 64
    %v842 = vpop.permute.xlu0 %841
    %843 = vrot.lane.b32.xlu0 %v833, 64
    %v844 = vpop.permute.xlu0 %843
    %845 = vrot.lane.b32.xlu0 %v834, 64
    %v846 = vpop.permute.xlu0 %845
    %v851 = vmul.f32 %v764, %v840
    %v852 = vmul.f32 %v766, %v842
    %v853 = vmul.f32 %v768, %v844
    %v854 = vmul.f32 %v770, %v846
    %857 = vrot.lane.b32.xlu0 %v851, 32
    %v858 = vpop.permute.xlu0 %857
    %859 = vrot.lane.b32.xlu0 %v852, 32
    %v860 = vpop.permute.xlu0 %859
    %vm863 = vcmask 254977
    %864 = vst.msk [vmem:[%s5] sm:$0x2] %vm863, %v858
    %865 = vst.msk [vmem:[%s5 + $0x8] sm:$0x2] %vm863, %v860
    %868 = vrot.lane.b32.xlu0 %v853, 32
    %v869 = vpop.permute.xlu0 %868
    %870 = vrot.lane.b32.xlu0 %v854, 32
    %v871 = vpop.permute.xlu0 %870
    %874 = vst.msk [vmem:[%s63 + $0x5] sm:$0x2] %vm863, %v869
    %875 = vst.msk [vmem:[%s63 + $0xd] sm:$0x2] %vm863, %v871
    %v876 = vrot.slane %v274, 3
    %v877 = vrot.slane %v275, 3
    %v880 = vrot.slane %v851, 1
    %v881 = vsel %vm583, %v852, %v880
    %882 = vrot.lane.b32.xlu0 %v881, 32
    %v883 = vpop.permute.xlu0 %882
    %v884 = vsel %vm286, %v883, 0
    %886 = vmatprep.subr.mxu0 0.0
    %887 = vmatpush1.msra.mxu0 %v76
    %888 = vmatprep.subr.mxu0 0.0
    %889 = vmatpush1.msra.mxu0 %v77
    %890 = vmatprep.subr.mxu0 0.0
    %891 = vmatpush1.msra.mxu0 %v78
    %892 = vmatprep.subr.mxu0 0.0
    %893 = vmatpush1.msra.mxu0 %v79
    %894 = vmatprep.subr.mxu0 0.0
    %895 = vmatpush1.msra.mxu0 0.0
    %896 = vmatprep.subr.mxu0 0.0
    %897 = vmatpush1.msra.mxu0 0.0
    %898 = vmatprep.subr.mxu0 0.0
    %899 = vmatpush1.msra.mxu0 0.0
    %900 = vmatprep.subr.mxu0 0.0
    %901 = vmatpush1.msra.mxu0 0.0
    %902 = vmatprep.subr.mxu0 0.0
    %903 = vmatpush1.msra.mxu0 0.0
    %904 = vmatprep.subr.mxu0 0.0
    %905 = vmatpush1.msra.mxu0 0.0
    %906 = vmatprep.subr.mxu0 0.0
    %907 = vmatpush1.msra.mxu0 0.0
    %908 = vmatprep.subr.mxu0 0.0
    %909 = vmatpush1.msra.mxu0 0.0
    %910 = vmatprep.subr.mxu0 0.0
    %911 = vmatpush1.msra.mxu0 0.0
    %912 = vmatprep.subr.mxu0 0.0
    %913 = vmatpush1.msra.mxu0 0.0
    %914 = vmatprep.subr.mxu0 0.0
    %915 = vmatpush1.msra.mxu0 0.0
    %916 = vmatprep.subr.mxu0 0.0
    %917 = vmatpush1.msra.mxu0 0.0
    %918 = vmatprep.subr.mxu0 0.0
    %919 = vmatpush1.msra.mxu0 0.0
    %920 = vmatprep.subr.mxu0 0.0
    %921 = vmatpush1.msra.mxu0 0.0
    %922 = vmatprep.subr.mxu0 0.0
    %923 = vmatpush1.msra.mxu0 0.0
    %924 = vmatprep.subr.mxu0 0.0
    %925 = vmatpush1.msra.mxu0 0.0
    %926 = vmatprep.subr.mxu0 0.0
    %927 = vmatpush1.msra.mxu0 0.0
    %928 = vmatprep.subr.mxu0 0.0
    %929 = vmatpush1.msra.mxu0 0.0
    %930 = vmatprep.subr.mxu0 0.0
    %931 = vmatpush1.msra.mxu0 0.0
    %932 = vmatprep.subr.mxu0 0.0
    %933 = vmatpush1.msra.mxu0 0.0
    %934 = vmatprep.subr.mxu0 0.0
    %935 = vmatpush1.msra.mxu0 0.0
    %936 = vmatprep.subr.mxu0 0.0
    %937 = vmatpush1.msra.mxu0 0.0
    %938 = vmatprep.subr.mxu0 0.0
    %939 = vmatpush1.msra.mxu0 0.0
    %940 = vmatprep.subr.mxu0 0.0
    %941 = vmatpush1.msra.mxu0 0.0
    %942 = vmatprep.subr.mxu0 0.0
    %943 = vmatpush1.msra.mxu0 0.0
    %944 = vmatprep.subr.mxu0 0.0
    %945 = vmatpush1.msra.mxu0 0.0
    %946 = vmatprep.subr.mxu0 0.0
    %947 = vmatpush1.msra.mxu0 0.0
    %948 = vmatprep.subr.mxu0 0.0
    %949 = vmatpush1.msra.mxu0 0.0
    %950 = vmatprep.mubr.f32.mxu0 0.0
    %951 = vmatmul.mubr.f32.gmra.mrb[0].mxu0 %v884
    %v952 = vpop.f32.mrb[0].mxu0
    %v953 = vadd.f32 0.0, %v952
    %v954 = vpop.f32.mrb[0].mxu0
    %955 = vdwg.mxu0
    %v956 = vrot.slane %v853, 1
    %v957 = vsel %vm583, %v854, %v956
    %958 = vrot.lane.b32.xlu0 %v957, 32
    %v959 = vpop.permute.xlu0 %958
    %v960 = vsel %vm286, %v959, 0
    %962 = vmatprep.subr.mxu0 0.0
    %963 = vmatpush1.msra.mxu0 %v80
    %964 = vmatprep.subr.mxu0 0.0
    %965 = vmatpush1.msra.mxu0 %v81
    %966 = vmatprep.subr.mxu0 0.0
    %967 = vmatpush1.msra.mxu0 %v82
    %968 = vmatprep.subr.mxu0 0.0
    %969 = vmatpush1.msra.mxu0 %v83
    %970 = vmatprep.subr.mxu0 0.0
    %971 = vmatpush1.msra.mxu0 0.0
    %972 = vmatprep.subr.mxu0 0.0
    %973 = vmatpush1.msra.mxu0 0.0
    %974 = vmatprep.subr.mxu0 0.0
    %975 = vmatpush1.msra.mxu0 0.0
    %976 = vmatprep.subr.mxu0 0.0
    %977 = vmatpush1.msra.mxu0 0.0
    %978 = vmatprep.subr.mxu0 0.0
    %979 = vmatpush1.msra.mxu0 0.0
    %980 = vmatprep.subr.mxu0 0.0
    %981 = vmatpush1.msra.mxu0 0.0
    %982 = vmatprep.subr.mxu0 0.0
    %983 = vmatpush1.msra.mxu0 0.0
    %984 = vmatprep.subr.mxu0 0.0
    %985 = vmatpush1.msra.mxu0 0.0
    %986 = vmatprep.subr.mxu0 0.0
    %987 = vmatpush1.msra.mxu0 0.0
    %988 = vmatprep.subr.mxu0 0.0
    %989 = vmatpush1.msra.mxu0 0.0
    %990 = vmatprep.subr.mxu0 0.0
    %991 = vmatpush1.msra.mxu0 0.0
    %992 = vmatprep.subr.mxu0 0.0
    %993 = vmatpush1.msra.mxu0 0.0
    %994 = vmatprep.subr.mxu0 0.0
    %995 = vmatpush1.msra.mxu0 0.0
    %996 = vmatprep.subr.mxu0 0.0
    %997 = vmatpush1.msra.mxu0 0.0
    %998 = vmatprep.subr.mxu0 0.0
    %999 = vmatpush1.msra.mxu0 0.0
    %1000 = vmatprep.subr.mxu0 0.0
    %1001 = vmatpush1.msra.mxu0 0.0
    %1002 = vmatprep.subr.mxu0 0.0
    %1003 = vmatpush1.msra.mxu0 0.0
    %1004 = vmatprep.subr.mxu0 0.0
    %1005 = vmatpush1.msra.mxu0 0.0
    %1006 = vmatprep.subr.mxu0 0.0
    %1007 = vmatpush1.msra.mxu0 0.0
    %1008 = vmatprep.subr.mxu0 0.0
    %1009 = vmatpush1.msra.mxu0 0.0
    %1010 = vmatprep.subr.mxu0 0.0
    %1011 = vmatpush1.msra.mxu0 0.0
    %1012 = vmatprep.subr.mxu0 0.0
    %1013 = vmatpush1.msra.mxu0 0.0
    %1014 = vmatprep.subr.mxu0 0.0
    %1015 = vmatpush1.msra.mxu0 0.0
    %1016 = vmatprep.subr.mxu0 0.0
    %1017 = vmatpush1.msra.mxu0 0.0
    %1018 = vmatprep.subr.mxu0 0.0
    %1019 = vmatpush1.msra.mxu0 0.0
    %1020 = vmatprep.subr.mxu0 0.0
    %1021 = vmatpush1.msra.mxu0 0.0
    %1022 = vmatprep.subr.mxu0 0.0
    %1023 = vmatpush1.msra.mxu0 0.0
    %1024 = vmatprep.subr.mxu0 0.0
    %1025 = vmatpush1.msra.mxu0 0.0
    %1026 = vmatprep.mubr.f32.mxu0 0.0
    %1027 = vmatmul.mubr.f32.gmra.mrb[0].mxu0 %v960
    %v1028 = vpop.f32.mrb[0].mxu0
    %v1029 = vadd.f32 0.0, %v1028
    %v1030 = vpop.f32.mrb[0].mxu0
    %1031 = vdwg.mxu0
    %v1034 = vrot.slane %v953, 6
    %v1035 = vrot.slane %v953, 7
    %v1036 = vrot.slane %v1029, 6
    %v1037 = vrot.slane %v1029, 7
    %v1042 = vadd.f32 %v182, %v1034
    %v1043 = vadd.f32 %v183, %v1035
    %v1044 = vadd.f32 %v876, %v1036
    %v1045 = vadd.f32 %v877, %v1037
    %v1046 = vxor.u32 %v1042, 2147483648
    %v1047 = vxor.u32 %v1043, 2147483648
    %v1048 = vxor.u32 %v1044, 2147483648
    %v1049 = vxor.u32 %v1045, 2147483648
    %v1050 = vmul.f32 %v1046, 1.442695
    %v1051 = vpow.pop %v1050
    %v1052 = vmul.f32 %v1047, 1.442695
    %v1053 = vpow.pop %v1052
    %v1054 = vmul.f32 %v1048, 1.442695
    %v1055 = vpow.pop %v1054
    %v1056 = vmul.f32 %v1049, 1.442695
    %v1057 = vpow.pop %v1056
    %v1058 = vadd.f32 %v1051, 1.0
    %v1059 = vadd.f32 %v1053, 1.0
    %v1060 = vadd.f32 %v1055, 1.0
    %v1061 = vadd.f32 %v1057, 1.0
    %v1062 = vrcp.pop %v1058
    %v1063 = vmul.f32 1.0, %v1062
    %v1064 = vrcp.pop %v1059
    %v1065 = vmul.f32 1.0, %v1064
    %v1066 = vrcp.pop %v1060
    %v1067 = vmul.f32 1.0, %v1066
    %v1068 = vrcp.pop %v1061
    %v1069 = vmul.f32 1.0, %v1068
    %v1070 = vtanh.pop %v1042
    %v1071 = vtanh.pop %v1043
    %v1072 = vtanh.pop %v1044
    %v1073 = vtanh.pop %v1045
    %v1078 = vrot.slane %v827, 7
    %v1079 = vrot.slane %v828, 7
    %v1080 = vrot.slane %v829, 7
    %v1081 = vrot.slane %v830, 7
    %v1086 = vmul.f32 %v1063, %v1078
    %v1087 = vmul.f32 %v1065, %v1079
    %v1088 = vmul.f32 %v1067, %v1080
    %v1089 = vmul.f32 %v1069, %v1081
    %1094 = vrot.lane.b32.xlu0 %v1070, 64
    %v1095 = vpop.permute.xlu0 %1094
    %1096 = vrot.lane.b32.xlu0 %v1071, 64
    %v1097 = vpop.permute.xlu0 %1096
    %1098 = vrot.lane.b32.xlu0 %v1072, 64
    %v1099 = vpop.permute.xlu0 %1098
    %1100 = vrot.lane.b32.xlu0 %v1073, 64
    %v1101 = vpop.permute.xlu0 %1100
    %v1106 = vmul.f32 %v1063, %v1095
    %v1107 = vmul.f32 %v1065, %v1097
    %v1108 = vmul.f32 %v1067, %v1099
    %v1109 = vmul.f32 %v1069, %v1101
    %1114 = vrot.lane.b32.xlu0 %v1106, 32
    %v1115 = vpop.permute.xlu0 %1114
    %1116 = vrot.lane.b32.xlu0 %v1107, 32
    %v1117 = vpop.permute.xlu0 %1116
    %1118 = vrot.lane.b32.xlu0 %v1108, 32
    %v1119 = vpop.permute.xlu0 %1118
    %1120 = vrot.lane.b32.xlu0 %v1109, 32
    %v1121 = vpop.permute.xlu0 %1120
    %v1126 = vadd.f32 %v1086, %v1115
    %v1127 = vadd.f32 %v1087, %v1117
    %v1128 = vadd.f32 %v1088, %v1119
    %v1129 = vadd.f32 %v1089, %v1121
    %v1130 = vtanh.pop %v1126
    %v1131 = vtanh.pop %v1127
    %v1132 = vtanh.pop %v1128
    %v1133 = vtanh.pop %v1129
    %1138 = vrot.lane.b32.xlu0 %v1130, 64
    %v1139 = vpop.permute.xlu0 %1138
    %1140 = vrot.lane.b32.xlu0 %v1131, 64
    %v1141 = vpop.permute.xlu0 %1140
    %1142 = vrot.lane.b32.xlu0 %v1132, 64
    %v1143 = vpop.permute.xlu0 %1142
    %1144 = vrot.lane.b32.xlu0 %v1133, 64
    %v1145 = vpop.permute.xlu0 %1144
    %v1150 = vmul.f32 %v1063, %v1139
    %v1151 = vmul.f32 %v1065, %v1141
    %v1152 = vmul.f32 %v1067, %v1143
    %v1153 = vmul.f32 %v1069, %v1145
    %1156 = vrot.lane.b32.xlu0 %v1150, 32
    %v1157 = vpop.permute.xlu0 %1156
    %1158 = vrot.lane.b32.xlu0 %v1151, 32
    %v1159 = vpop.permute.xlu0 %1158
    %vm1162 = vcmask 256002
    %1163 = vst.msk [vmem:[%s5] sm:$0x4] %vm1162, %v1157
    %1164 = vst.msk [vmem:[%s5 + $0x8] sm:$0x4] %vm1162, %v1159
    %1167 = vrot.lane.b32.xlu0 %v1152, 32
    %v1168 = vpop.permute.xlu0 %1167
    %1169 = vrot.lane.b32.xlu0 %v1153, 32
    %v1170 = vpop.permute.xlu0 %1169
    %1173 = vst.msk [vmem:[%s63 + $0x3] sm:$0x4] %vm1162, %v1168
    %1174 = vst.msk [vmem:[%s63 + $0xb] sm:$0x4] %vm1162, %v1170
    %v1175 = vrot.slane %v274, 1
    %v1176 = vrot.slane %v275, 1
    %v1179 = vrot.slane %v1150, 2
    %v1180 = vrot.slane %v1151, 1
    %v1181 = vsel %vm583, %v1180, %v1179
    %1182 = vrot.lane.b32.xlu0 %v1181, 32
    %v1183 = vpop.permute.xlu0 %1182
    %v1184 = vsel %vm286, %v1183, 0
    %1186 = vmatprep.subr.mxu0 0.0
    %1187 = vmatpush1.msra.mxu0 %v76
    %1188 = vmatprep.subr.mxu0 0.0
    %1189 = vmatpush1.msra.mxu0 %v77
    %1190 = vmatprep.subr.mxu0 0.0
    %1191 = vmatpush1.msra.mxu0 %v78
    %1192 = vmatprep.subr.mxu0 0.0
    %1193 = vmatpush1.msra.mxu0 %v79
    %1194 = vmatprep.subr.mxu0 0.0
    %1195 = vmatpush1.msra.mxu0 0.0
    %1196 = vmatprep.subr.mxu0 0.0
    %1197 = vmatpush1.msra.mxu0 0.0
    %1198 = vmatprep.subr.mxu0 0.0
    %1199 = vmatpush1.msra.mxu0 0.0
    %1200 = vmatprep.subr.mxu0 0.0
    %1201 = vmatpush1.msra.mxu0 0.0
    %1202 = vmatprep.subr.mxu0 0.0
    %1203 = vmatpush1.msra.mxu0 0.0
    %1204 = vmatprep.subr.mxu0 0.0
    %1205 = vmatpush1.msra.mxu0 0.0
    %1206 = vmatprep.subr.mxu0 0.0
    %1207 = vmatpush1.msra.mxu0 0.0
    %1208 = vmatprep.subr.mxu0 0.0
    %1209 = vmatpush1.msra.mxu0 0.0
    %1210 = vmatprep.subr.mxu0 0.0
    %1211 = vmatpush1.msra.mxu0 0.0
    %1212 = vmatprep.subr.mxu0 0.0
    %1213 = vmatpush1.msra.mxu0 0.0
    %1214 = vmatprep.subr.mxu0 0.0
    %1215 = vmatpush1.msra.mxu0 0.0
    %1216 = vmatprep.subr.mxu0 0.0
    %1217 = vmatpush1.msra.mxu0 0.0
    %1218 = vmatprep.subr.mxu0 0.0
    %1219 = vmatpush1.msra.mxu0 0.0
    %1220 = vmatprep.subr.mxu0 0.0
    %1221 = vmatpush1.msra.mxu0 0.0
    %1222 = vmatprep.subr.mxu0 0.0
    %1223 = vmatpush1.msra.mxu0 0.0
    %1224 = vmatprep.subr.mxu0 0.0
    %1225 = vmatpush1.msra.mxu0 0.0
    %1226 = vmatprep.subr.mxu0 0.0
    %1227 = vmatpush1.msra.mxu0 0.0
    %1228 = vmatprep.subr.mxu0 0.0
    %1229 = vmatpush1.msra.mxu0 0.0
    %1230 = vmatprep.subr.mxu0 0.0
    %1231 = vmatpush1.msra.mxu0 0.0
    %1232 = vmatprep.subr.mxu0 0.0
    %1233 = vmatpush1.msra.mxu0 0.0
    %1234 = vmatprep.subr.mxu0 0.0
    %1235 = vmatpush1.msra.mxu0 0.0
    %1236 = vmatprep.subr.mxu0 0.0
    %1237 = vmatpush1.msra.mxu0 0.0
    %1238 = vmatprep.subr.mxu0 0.0
    %1239 = vmatpush1.msra.mxu0 0.0
    %1240 = vmatprep.subr.mxu0 0.0
    %1241 = vmatpush1.msra.mxu0 0.0
    %1242 = vmatprep.subr.mxu0 0.0
    %1243 = vmatpush1.msra.mxu0 0.0
    %1244 = vmatprep.subr.mxu0 0.0
    %1245 = vmatpush1.msra.mxu0 0.0
    %1246 = vmatprep.subr.mxu0 0.0
    %1247 = vmatpush1.msra.mxu0 0.0
    %1248 = vmatprep.subr.mxu0 0.0
    %1249 = vmatpush1.msra.mxu0 0.0
    %1250 = vmatprep.mubr.f32.mxu0 0.0
    %1251 = vmatmul.mubr.f32.gmra.mrb[0].mxu0 %v1184
    %v1252 = vpop.f32.mrb[0].mxu0
    %v1253 = vadd.f32 0.0, %v1252
    %v1254 = vpop.f32.mrb[0].mxu0
    %1255 = vdwg.mxu0
    %v1256 = vrot.slane %v1152, 2
    %v1257 = vrot.slane %v1153, 1
    %v1258 = vsel %vm583, %v1257, %v1256
    %1259 = vrot.lane.b32.xlu0 %v1258, 32
    %v1260 = vpop.permute.xlu0 %1259
    %v1261 = vsel %vm286, %v1260, 0
    %1263 = vmatprep.subr.mxu0 0.0
    %1264 = vmatpush1.msra.mxu0 %v80
    %1265 = vmatprep.subr.mxu0 0.0
    %1266 = vmatpush1.msra.mxu0 %v81
    %1267 = vmatprep.subr.mxu0 0.0
    %1268 = vmatpush1.msra.mxu0 %v82
    %1269 = vmatprep.subr.mxu0 0.0
    %1270 = vmatpush1.msra.mxu0 %v83
    %1271 = vmatprep.subr.mxu0 0.0
    %1272 = vmatpush1.msra.mxu0 0.0
    %1273 = vmatprep.subr.mxu0 0.0
    %1274 = vmatpush1.msra.mxu0 0.0
    %1275 = vmatprep.subr.mxu0 0.0
    %1276 = vmatpush1.msra.mxu0 0.0
    %1277 = vmatprep.subr.mxu0 0.0
    %1278 = vmatpush1.msra.mxu0 0.0
    %1279 = vmatprep.subr.mxu0 0.0
    %1280 = vmatpush1.msra.mxu0 0.0
    %1281 = vmatprep.subr.mxu0 0.0
    %1282 = vmatpush1.msra.mxu0 0.0
    %1283 = vmatprep.subr.mxu0 0.0
    %1284 = vmatpush1.msra.mxu0 0.0
    %1285 = vmatprep.subr.mxu0 0.0
    %1286 = vmatpush1.msra.mxu0 0.0
    %1287 = vmatprep.subr.mxu0 0.0
    %1288 = vmatpush1.msra.mxu0 0.0
    %1289 = vmatprep.subr.mxu0 0.0
    %1290 = vmatpush1.msra.mxu0 0.0
    %1291 = vmatprep.subr.mxu0 0.0
    %1292 = vmatpush1.msra.mxu0 0.0
    %1293 = vmatprep.subr.mxu0 0.0
    %1294 = vmatpush1.msra.mxu0 0.0
    %1295 = vmatprep.subr.mxu0 0.0
    %1296 = vmatpush1.msra.mxu0 0.0
    %1297 = vmatprep.subr.mxu0 0.0
    %1298 = vmatpush1.msra.mxu0 0.0
    %1299 = vmatprep.subr.mxu0 0.0
    %1300 = vmatpush1.msra.mxu0 0.0
    %1301 = vmatprep.subr.mxu0 0.0
    %1302 = vmatpush1.msra.mxu0 0.0
    %1303 = vmatprep.subr.mxu0 0.0
    %1304 = vmatpush1.msra.mxu0 0.0
    %1305 = vmatprep.subr.mxu0 0.0
    %1306 = vmatpush1.msra.mxu0 0.0
    %1307 = vmatprep.subr.mxu0 0.0
    %1308 = vmatpush1.msra.mxu0 0.0
    %1309 = vmatprep.subr.mxu0 0.0
    %1310 = vmatpush1.msra.mxu0 0.0
    %1311 = vmatprep.subr.mxu0 0.0
    %1312 = vmatpush1.msra.mxu0 0.0
    %1313 = vmatprep.subr.mxu0 0.0
    %1314 = vmatpush1.msra.mxu0 0.0
    %1315 = vmatprep.subr.mxu0 0.0
    %1316 = vmatpush1.msra.mxu0 0.0
    %1317 = vmatprep.subr.mxu0 0.0
    %1318 = vmatpush1.msra.mxu0 0.0
    %1319 = vmatprep.subr.mxu0 0.0
    %1320 = vmatpush1.msra.mxu0 0.0
    %1321 = vmatprep.subr.mxu0 0.0
    %1322 = vmatpush1.msra.mxu0 0.0
    %1323 = vmatprep.subr.mxu0 0.0
    %1324 = vmatpush1.msra.mxu0 0.0
    %1325 = vmatprep.subr.mxu0 0.0
    %1326 = vmatpush1.msra.mxu0 0.0
    %1327 = vmatprep.mubr.f32.mxu0 0.0
    %1328 = vmatmul.mubr.f32.gmra.mrb[0].mxu0 %v1261
    %v1329 = vpop.f32.mrb[0].mxu0
    %v1330 = vadd.f32 0.0, %v1329
    %v1331 = vpop.f32.mrb[0].mxu0
    %1332 = vdwg.mxu0
    %v1335 = vrot.slane %v1253, 5
    %v1336 = vrot.slane %v1253, 6
    %v1337 = vrot.slane %v1330, 5
    %v1338 = vrot.slane %v1330, 6
    %v1343 = vadd.f32 %v182, %v1335
    %v1344 = vadd.f32 %v183, %v1336
    %v1345 = vadd.f32 %v1175, %v1337
    %v1346 = vadd.f32 %v1176, %v1338
    %v1347 = vxor.u32 %v1343, 2147483648
    %v1348 = vxor.u32 %v1344, 2147483648
    %v1349 = vxor.u32 %v1345, 2147483648
    %v1350 = vxor.u32 %v1346, 2147483648
    %v1351 = vmul.f32 %v1347, 1.442695
    %v1352 = vpow.pop %v1351
    %v1353 = vmul.f32 %v1348, 1.442695
    %v1354 = vpow.pop %v1353
    %v1355 = vmul.f32 %v1349, 1.442695
    %v1356 = vpow.pop %v1355
    %v1357 = vmul.f32 %v1350, 1.442695
    %v1358 = vpow.pop %v1357
    %v1359 = vadd.f32 %v1352, 1.0
    %v1360 = vadd.f32 %v1354, 1.0
    %v1361 = vadd.f32 %v1356, 1.0
    %v1362 = vadd.f32 %v1358, 1.0
    %v1363 = vrcp.pop %v1359
    %v1364 = vmul.f32 1.0, %v1363
    %v1365 = vrcp.pop %v1360
    %v1366 = vmul.f32 1.0, %v1365
    %v1367 = vrcp.pop %v1361
    %v1368 = vmul.f32 1.0, %v1367
    %v1369 = vrcp.pop %v1362
    %v1370 = vmul.f32 1.0, %v1369
    %v1371 = vtanh.pop %v1343
    %v1372 = vtanh.pop %v1344
    %v1373 = vtanh.pop %v1345
    %v1374 = vtanh.pop %v1346
    %v1379 = vrot.slane %v1126, 7
    %v1380 = vrot.slane %v1127, 7
    %v1381 = vrot.slane %v1128, 7
    %v1382 = vrot.slane %v1129, 7
    %v1387 = vmul.f32 %v1364, %v1379
    %v1388 = vmul.f32 %v1366, %v1380
    %v1389 = vmul.f32 %v1368, %v1381
    %v1390 = vmul.f32 %v1370, %v1382
    %1395 = vrot.lane.b32.xlu0 %v1371, 64
    %v1396 = vpop.permute.xlu0 %1395
    %1397 = vrot.lane.b32.xlu0 %v1372, 64
    %v1398 = vpop.permute.xlu0 %1397
    %1399 = vrot.lane.b32.xlu0 %v1373, 64
    %v1400 = vpop.permute.xlu0 %1399
    %1401 = vrot.lane.b32.xlu0 %v1374, 64
    %v1402 = vpop.permute.xlu0 %1401
    %v1407 = vmul.f32 %v1364, %v1396
    %v1408 = vmul.f32 %v1366, %v1398
    %v1409 = vmul.f32 %v1368, %v1400
    %v1410 = vmul.f32 %v1370, %v1402
    %1415 = vrot.lane.b32.xlu0 %v1407, 32
    %v1416 = vpop.permute.xlu0 %1415
    %1417 = vrot.lane.b32.xlu0 %v1408, 32
    %v1418 = vpop.permute.xlu0 %1417
    %1419 = vrot.lane.b32.xlu0 %v1409, 32
    %v1420 = vpop.permute.xlu0 %1419
    %1421 = vrot.lane.b32.xlu0 %v1410, 32
    %v1422 = vpop.permute.xlu0 %1421
    %v1427 = vadd.f32 %v1387, %v1416
    %v1428 = vadd.f32 %v1388, %v1418
    %v1429 = vadd.f32 %v1389, %v1420
    %v1430 = vadd.f32 %v1390, %v1422
    %v1431 = vtanh.pop %v1427
    %v1432 = vtanh.pop %v1428
    %v1433 = vtanh.pop %v1429
    %v1434 = vtanh.pop %v1430
    %1439 = vrot.lane.b32.xlu0 %v1431, 64
    %v1440 = vpop.permute.xlu0 %1439
    %1441 = vrot.lane.b32.xlu0 %v1432, 64
    %v1442 = vpop.permute.xlu0 %1441
    %1443 = vrot.lane.b32.xlu0 %v1433, 64
    %v1444 = vpop.permute.xlu0 %1443
    %1445 = vrot.lane.b32.xlu0 %v1434, 64
    %v1446 = vpop.permute.xlu0 %1445
    %v1451 = vmul.f32 %v1364, %v1440
    %v1452 = vmul.f32 %v1366, %v1442
    %v1453 = vmul.f32 %v1368, %v1444
    %v1454 = vmul.f32 %v1370, %v1446
    %1457 = vrot.lane.b32.xlu0 %v1451, 32
    %v1458 = vpop.permute.xlu0 %1457
    %1459 = vrot.lane.b32.xlu0 %v1452, 32
    %v1460 = vpop.permute.xlu0 %1459
    %vm1463 = vcmask 257027
    %1464 = vst.msk [vmem:[%s5] sm:$0x8] %vm1463, %v1458
    %1465 = vst.msk [vmem:[%s5 + $0x8] sm:$0x8] %vm1463, %v1460
    %1468 = vrot.lane.b32.xlu0 %v1453, 32
    %v1469 = vpop.permute.xlu0 %1468
    %1470 = vrot.lane.b32.xlu0 %v1454, 32
    %v1471 = vpop.permute.xlu0 %1470
    %1474 = vst.msk [vmem:[%s63 + $0x1] sm:$0x8] %vm1463, %v1469
    %1475 = vst.msk [vmem:[%s63 + $0x9] sm:$0x8] %vm1463, %v1471
    %v1476 = vrot.slane %v1451, 3
    %v1477 = vrot.slane %v1452, 2
    %v1478 = vsel %vm583, %v1477, %v1476
    %1479 = vrot.lane.b32.xlu0 %v1478, 32
    %v1480 = vpop.permute.xlu0 %1479
    %v1481 = vsel %vm286, %v1480, 0
    %1483 = vmatprep.subr.mxu0 0.0
    %1484 = vmatpush1.msra.mxu0 %v76
    %1485 = vmatprep.subr.mxu0 0.0
    %1486 = vmatpush1.msra.mxu0 %v77
    %1487 = vmatprep.subr.mxu0 0.0
    %1488 = vmatpush1.msra.mxu0 %v78
    %1489 = vmatprep.subr.mxu0 0.0
    %1490 = vmatpush1.msra.mxu0 %v79
    %1491 = vmatprep.subr.mxu0 0.0
    %1492 = vmatpush1.msra.mxu0 0.0
    %1493 = vmatprep.subr.mxu0 0.0
    %1494 = vmatpush1.msra.mxu0 0.0
    %1495 = vmatprep.subr.mxu0 0.0
    %1496 = vmatpush1.msra.mxu0 0.0
    %1497 = vmatprep.subr.mxu0 0.0
    %1498 = vmatpush1.msra.mxu0 0.0
    %1499 = vmatprep.subr.mxu0 0.0
    %1500 = vmatpush1.msra.mxu0 0.0
    %1501 = vmatprep.subr.mxu0 0.0
    %1502 = vmatpush1.msra.mxu0 0.0
    %1503 = vmatprep.subr.mxu0 0.0
    %1504 = vmatpush1.msra.mxu0 0.0
    %1505 = vmatprep.subr.mxu0 0.0
    %1506 = vmatpush1.msra.mxu0 0.0
    %1507 = vmatprep.subr.mxu0 0.0
    %1508 = vmatpush1.msra.mxu0 0.0
    %1509 = vmatprep.subr.mxu0 0.0
    %1510 = vmatpush1.msra.mxu0 0.0
    %1511 = vmatprep.subr.mxu0 0.0
    %1512 = vmatpush1.msra.mxu0 0.0
    %1513 = vmatprep.subr.mxu0 0.0
    %1514 = vmatpush1.msra.mxu0 0.0
    %1515 = vmatprep.subr.mxu0 0.0
    %1516 = vmatpush1.msra.mxu0 0.0
    %1517 = vmatprep.subr.mxu0 0.0
    %1518 = vmatpush1.msra.mxu0 0.0
    %1519 = vmatprep.subr.mxu0 0.0
    %1520 = vmatpush1.msra.mxu0 0.0
    %1521 = vmatprep.subr.mxu0 0.0
    %1522 = vmatpush1.msra.mxu0 0.0
    %1523 = vmatprep.subr.mxu0 0.0
    %1524 = vmatpush1.msra.mxu0 0.0
    %1525 = vmatprep.subr.mxu0 0.0
    %1526 = vmatpush1.msra.mxu0 0.0
    %1527 = vmatprep.subr.mxu0 0.0
    %1528 = vmatpush1.msra.mxu0 0.0
    %1529 = vmatprep.subr.mxu0 0.0
    %1530 = vmatpush1.msra.mxu0 0.0
    %1531 = vmatprep.subr.mxu0 0.0
    %1532 = vmatpush1.msra.mxu0 0.0
    %1533 = vmatprep.subr.mxu0 0.0
    %1534 = vmatpush1.msra.mxu0 0.0
    %1535 = vmatprep.subr.mxu0 0.0
    %1536 = vmatpush1.msra.mxu0 0.0
    %1537 = vmatprep.subr.mxu0 0.0
    %1538 = vmatpush1.msra.mxu0 0.0
    %1539 = vmatprep.subr.mxu0 0.0
    %1540 = vmatpush1.msra.mxu0 0.0
    %1541 = vmatprep.subr.mxu0 0.0
    %1542 = vmatpush1.msra.mxu0 0.0
    %1543 = vmatprep.subr.mxu0 0.0
    %1544 = vmatpush1.msra.mxu0 0.0
    %1545 = vmatprep.subr.mxu0 0.0
    %1546 = vmatpush1.msra.mxu0 0.0
    %1547 = vmatprep.mubr.f32.mxu0 0.0
    %1548 = vmatmul.mubr.f32.gmra.mrb[0].mxu0 %v1481
    %v1549 = vpop.f32.mrb[0].mxu0
    %v1550 = vadd.f32 0.0, %v1549
    %v1551 = vpop.f32.mrb[0].mxu0
    %1552 = vdwg.mxu0
    %v1553 = vrot.slane %v1453, 3
    %v1554 = vrot.slane %v1454, 2
    %v1555 = vsel %vm583, %v1554, %v1553
    %1556 = vrot.lane.b32.xlu0 %v1555, 32
    %v1557 = vpop.permute.xlu0 %1556
    %v1558 = vsel %vm286, %v1557, 0
    %1560 = vmatprep.subr.mxu0 0.0
    %1561 = vmatpush1.msra.mxu0 %v80
    %1562 = vmatprep.subr.mxu0 0.0
    %1563 = vmatpush1.msra.mxu0 %v81
    %1564 = vmatprep.subr.mxu0 0.0
    %1565 = vmatpush1.msra.mxu0 %v82
    %1566 = vmatprep.subr.mxu0 0.0
    %1567 = vmatpush1.msra.mxu0 %v83
    %1568 = vmatprep.subr.mxu0 0.0
    %1569 = vmatpush1.msra.mxu0 0.0
    %1570 = vmatprep.subr.mxu0 0.0
    %1571 = vmatpush1.msra.mxu0 0.0
    %1572 = vmatprep.subr.mxu0 0.0
    %1573 = vmatpush1.msra.mxu0 0.0
    %1574 = vmatprep.subr.mxu0 0.0
    %1575 = vmatpush1.msra.mxu0 0.0
    %1576 = vmatprep.subr.mxu0 0.0
    %1577 = vmatpush1.msra.mxu0 0.0
    %1578 = vmatprep.subr.mxu0 0.0
    %1579 = vmatpush1.msra.mxu0 0.0
    %1580 = vmatprep.subr.mxu0 0.0
    %1581 = vmatpush1.msra.mxu0 0.0
    %1582 = vmatprep.subr.mxu0 0.0
    %1583 = vmatpush1.msra.mxu0 0.0
    %1584 = vmatprep.subr.mxu0 0.0
    %1585 = vmatpush1.msra.mxu0 0.0
    %1586 = vmatprep.subr.mxu0 0.0
    %1587 = vmatpush1.msra.mxu0 0.0
    %1588 = vmatprep.subr.mxu0 0.0
    %1589 = vmatpush1.msra.mxu0 0.0
    %1590 = vmatprep.subr.mxu0 0.0
    %1591 = vmatpush1.msra.mxu0 0.0
    %1592 = vmatprep.subr.mxu0 0.0
    %1593 = vmatpush1.msra.mxu0 0.0
    %1594 = vmatprep.subr.mxu0 0.0
    %1595 = vmatpush1.msra.mxu0 0.0
    %1596 = vmatprep.subr.mxu0 0.0
    %1597 = vmatpush1.msra.mxu0 0.0
    %1598 = vmatprep.subr.mxu0 0.0
    %1599 = vmatpush1.msra.mxu0 0.0
    %1600 = vmatprep.subr.mxu0 0.0
    %1601 = vmatpush1.msra.mxu0 0.0
    %1602 = vmatprep.subr.mxu0 0.0
    %1603 = vmatpush1.msra.mxu0 0.0
    %1604 = vmatprep.subr.mxu0 0.0
    %1605 = vmatpush1.msra.mxu0 0.0
    %1606 = vmatprep.subr.mxu0 0.0
    %1607 = vmatpush1.msra.mxu0 0.0
    %1608 = vmatprep.subr.mxu0 0.0
    %1609 = vmatpush1.msra.mxu0 0.0
    %1610 = vmatprep.subr.mxu0 0.0
    %1611 = vmatpush1.msra.mxu0 0.0
    %1612 = vmatprep.subr.mxu0 0.0
    %1613 = vmatpush1.msra.mxu0 0.0
    %1614 = vmatprep.subr.mxu0 0.0
    %1615 = vmatpush1.msra.mxu0 0.0
    %1616 = vmatprep.subr.mxu0 0.0
    %1617 = vmatpush1.msra.mxu0 0.0
    %1618 = vmatprep.subr.mxu0 0.0
    %1619 = vmatpush1.msra.mxu0 0.0
    %1620 = vmatprep.subr.mxu0 0.0
    %1621 = vmatpush1.msra.mxu0 0.0
    %1622 = vmatprep.subr.mxu0 0.0
    %1623 = vmatpush1.msra.mxu0 0.0
    %1624 = vmatprep.mubr.f32.mxu0 0.0
    %1625 = vmatmul.mubr.f32.gmra.mrb[0].mxu0 %v1558
    %v1626 = vpop.f32.mrb[0].mxu0
    %v1627 = vadd.f32 0.0, %v1626
    %v1628 = vpop.f32.mrb[0].mxu0
    %1629 = vdwg.mxu0
    %v1632 = vrot.slane %v1550, 4
    %v1633 = vrot.slane %v1550, 5
    %v1634 = vrot.slane %v1627, 4
    %v1635 = vrot.slane %v1627, 5
    %v1640 = vadd.f32 %v182, %v1632
    %v1641 = vadd.f32 %v183, %v1633
    %v1642 = vadd.f32 %v282, %v1634
    %v1643 = vadd.f32 %v283, %v1635
    %v1644 = vxor.u32 %v1640, 2147483648
    %v1645 = vxor.u32 %v1641, 2147483648
    %v1646 = vxor.u32 %v1642, 2147483648
    %v1647 = vxor.u32 %v1643, 2147483648
    %v1648 = vmul.f32 %v1644, 1.442695
    %v1649 = vpow.pop %v1648
    %v1650 = vmul.f32 %v1645, 1.442695
    %v1651 = vpow.pop %v1650
    %v1652 = vmul.f32 %v1646, 1.442695
    %v1653 = vpow.pop %v1652
    %v1654 = vmul.f32 %v1647, 1.442695
    %v1655 = vpow.pop %v1654
    %v1656 = vadd.f32 %v1649, 1.0
    %v1657 = vadd.f32 %v1651, 1.0
    %v1658 = vadd.f32 %v1653, 1.0
    %v1659 = vadd.f32 %v1655, 1.0
    %v1660 = vrcp.pop %v1656
    %v1661 = vmul.f32 1.0, %v1660
    %v1662 = vrcp.pop %v1657
    %v1663 = vmul.f32 1.0, %v1662
    %v1664 = vrcp.pop %v1658
    %v1665 = vmul.f32 1.0, %v1664
    %v1666 = vrcp.pop %v1659
    %v1667 = vmul.f32 1.0, %v1666
    %v1668 = vtanh.pop %v1640
    %v1669 = vtanh.pop %v1641
    %v1670 = vtanh.pop %v1642
    %v1671 = vtanh.pop %v1643
    %v1676 = vrot.slane %v1427, 7
    %v1677 = vrot.slane %v1428, 7
    %v1678 = vrot.slane %v1429, 7
    %v1679 = vrot.slane %v1430, 7
    %v1684 = vmul.f32 %v1661, %v1676
    %v1685 = vmul.f32 %v1663, %v1677
    %v1686 = vmul.f32 %v1665, %v1678
    %v1687 = vmul.f32 %v1667, %v1679
    %1692 = vrot.lane.b32.xlu0 %v1668, 64
    %v1693 = vpop.permute.xlu0 %1692
    %1694 = vrot.lane.b32.xlu0 %v1669, 64
    %v1695 = vpop.permute.xlu0 %1694
    %1696 = vrot.lane.b32.xlu0 %v1670, 64
    %v1697 = vpop.permute.xlu0 %1696
    %1698 = vrot.lane.b32.xlu0 %v1671, 64
    %v1699 = vpop.permute.xlu0 %1698
    %v1704 = vmul.f32 %v1661, %v1693
    %v1705 = vmul.f32 %v1663, %v1695
    %v1706 = vmul.f32 %v1665, %v1697
    %v1707 = vmul.f32 %v1667, %v1699
    %1712 = vrot.lane.b32.xlu0 %v1704, 32
    %v1713 = vpop.permute.xlu0 %1712
    %1714 = vrot.lane.b32.xlu0 %v1705, 32
    %v1715 = vpop.permute.xlu0 %1714
    %1716 = vrot.lane.b32.xlu0 %v1706, 32
    %v1717 = vpop.permute.xlu0 %1716
    %1718 = vrot.lane.b32.xlu0 %v1707, 32
    %v1719 = vpop.permute.xlu0 %1718
    %v1724 = vadd.f32 %v1684, %v1713
    %v1725 = vadd.f32 %v1685, %v1715
    %v1726 = vadd.f32 %v1686, %v1717
    %v1727 = vadd.f32 %v1687, %v1719
    %v1728 = vtanh.pop %v1724
    %v1729 = vtanh.pop %v1725
    %v1730 = vtanh.pop %v1726
    %v1731 = vtanh.pop %v1727
    %1736 = vrot.lane.b32.xlu0 %v1728, 64
    %v1737 = vpop.permute.xlu0 %1736
    %1738 = vrot.lane.b32.xlu0 %v1729, 64
    %v1739 = vpop.permute.xlu0 %1738
    %1740 = vrot.lane.b32.xlu0 %v1730, 64
    %v1741 = vpop.permute.xlu0 %1740
    %1742 = vrot.lane.b32.xlu0 %v1731, 64
    %v1743 = vpop.permute.xlu0 %1742
    %v1748 = vmul.f32 %v1661, %v1737
    %v1749 = vmul.f32 %v1663, %v1739
    %v1750 = vmul.f32 %v1665, %v1741
    %v1751 = vmul.f32 %v1667, %v1743
    %1754 = vrot.lane.b32.xlu0 %v1748, 32
    %v1755 = vpop.permute.xlu0 %1754
    %1756 = vrot.lane.b32.xlu0 %v1749, 32
    %v1757 = vpop.permute.xlu0 %1756
    %vm1760 = vcmask 258052
    %1761 = vst.msk [vmem:[%s5] sm:$0x10] %vm1760, %v1755
    %1762 = vst.msk [vmem:[%s5 + $0x8] sm:$0x10] %vm1760, %v1757
    %1765 = vrot.lane.b32.xlu0 %v1750, 32
    %v1766 = vpop.permute.xlu0 %1765
    %1767 = vrot.lane.b32.xlu0 %v1751, 32
    %v1768 = vpop.permute.xlu0 %1767
    %1771 = vst.msk [vmem:[%s63 - $0x1] sm:$0x10] %vm1760, %v1766
    %1772 = vst.msk [vmem:[%s63 + $0x7] sm:$0x10] %vm1760, %v1768
    %v1773 = vrot.slane %v1748, 4
    %v1774 = vrot.slane %v1749, 3
    %v1775 = vsel %vm583, %v1774, %v1773
    %1776 = vrot.lane.b32.xlu0 %v1775, 32
    %v1777 = vpop.permute.xlu0 %1776
    %v1778 = vsel %vm286, %v1777, 0
    %1780 = vmatprep.subr.mxu0 0.0
    %1781 = vmatpush1.msra.mxu0 %v76
    %1782 = vmatprep.subr.mxu0 0.0
    %1783 = vmatpush1.msra.mxu0 %v77
    %1784 = vmatprep.subr.mxu0 0.0
    %1785 = vmatpush1.msra.mxu0 %v78
    %1786 = vmatprep.subr.mxu0 0.0
    %1787 = vmatpush1.msra.mxu0 %v79
    %1788 = vmatprep.subr.mxu0 0.0
    %1789 = vmatpush1.msra.mxu0 0.0
    %1790 = vmatprep.subr.mxu0 0.0
    %1791 = vmatpush1.msra.mxu0 0.0
    %1792 = vmatprep.subr.mxu0 0.0
    %1793 = vmatpush1.msra.mxu0 0.0
    %1794 = vmatprep.subr.mxu0 0.0
    %1795 = vmatpush1.msra.mxu0 0.0
    %1796 = vmatprep.subr.mxu0 0.0
    %1797 = vmatpush1.msra.mxu0 0.0
    %1798 = vmatprep.subr.mxu0 0.0
    %1799 = vmatpush1.msra.mxu0 0.0
    %1800 = vmatprep.subr.mxu0 0.0
    %1801 = vmatpush1.msra.mxu0 0.0
    %1802 = vmatprep.subr.mxu0 0.0
    %1803 = vmatpush1.msra.mxu0 0.0
    %1804 = vmatprep.subr.mxu0 0.0
    %1805 = vmatpush1.msra.mxu0 0.0
    %1806 = vmatprep.subr.mxu0 0.0
    %1807 = vmatpush1.msra.mxu0 0.0
    %1808 = vmatprep.subr.mxu0 0.0
    %1809 = vmatpush1.msra.mxu0 0.0
    %1810 = vmatprep.subr.mxu0 0.0
    %1811 = vmatpush1.msra.mxu0 0.0
    %1812 = vmatprep.subr.mxu0 0.0
    %1813 = vmatpush1.msra.mxu0 0.0
    %1814 = vmatprep.subr.mxu0 0.0
    %1815 = vmatpush1.msra.mxu0 0.0
    %1816 = vmatprep.subr.mxu0 0.0
    %1817 = vmatpush1.msra.mxu0 0.0
    %1818 = vmatprep.subr.mxu0 0.0
    %1819 = vmatpush1.msra.mxu0 0.0
    %1820 = vmatprep.subr.mxu0 0.0
    %1821 = vmatpush1.msra.mxu0 0.0
    %1822 = vmatprep.subr.mxu0 0.0
    %1823 = vmatpush1.msra.mxu0 0.0
    %1824 = vmatprep.subr.mxu0 0.0
    %1825 = vmatpush1.msra.mxu0 0.0
    %1826 = vmatprep.subr.mxu0 0.0
    %1827 = vmatpush1.msra.mxu0 0.0
    %1828 = vmatprep.subr.mxu0 0.0
    %1829 = vmatpush1.msra.mxu0 0.0
    %1830 = vmatprep.subr.mxu0 0.0
    %1831 = vmatpush1.msra.mxu0 0.0
    %1832 = vmatprep.subr.mxu0 0.0
    %1833 = vmatpush1.msra.mxu0 0.0
    %1834 = vmatprep.subr.mxu0 0.0
    %1835 = vmatpush1.msra.mxu0 0.0
    %1836 = vmatprep.subr.mxu0 0.0
    %1837 = vmatpush1.msra.mxu0 0.0
    %1838 = vmatprep.subr.mxu0 0.0
    %1839 = vmatpush1.msra.mxu0 0.0
    %1840 = vmatprep.subr.mxu0 0.0
    %1841 = vmatpush1.msra.mxu0 0.0
    %1842 = vmatprep.subr.mxu0 0.0
    %1843 = vmatpush1.msra.mxu0 0.0
    %1844 = vmatprep.mubr.f32.mxu0 0.0
    %1845 = vmatmul.mubr.f32.gmra.mrb[0].mxu0 %v1778
    %v1846 = vpop.f32.mrb[0].mxu0
    %v1847 = vadd.f32 0.0, %v1846
    %v1848 = vpop.f32.mrb[0].mxu0
    %1849 = vdwg.mxu0
    %v1850 = vrot.slane %v1750, 4
    %v1851 = vrot.slane %v1751, 3
    %v1852 = vsel %vm583, %v1851, %v1850
    %1853 = vrot.lane.b32.xlu0 %v1852, 32
    %v1854 = vpop.permute.xlu0 %1853
    %v1855 = vsel %vm286, %v1854, 0
    %1857 = vmatprep.subr.mxu0 0.0
    %1858 = vmatpush1.msra.mxu0 %v80
    %1859 = vmatprep.subr.mxu0 0.0
    %1860 = vmatpush1.msra.mxu0 %v81
    %1861 = vmatprep.subr.mxu0 0.0
    %1862 = vmatpush1.msra.mxu0 %v82
    %1863 = vmatprep.subr.mxu0 0.0
    %1864 = vmatpush1.msra.mxu0 %v83
    %1865 = vmatprep.subr.mxu0 0.0
    %1866 = vmatpush1.msra.mxu0 0.0
    %1867 = vmatprep.subr.mxu0 0.0
    %1868 = vmatpush1.msra.mxu0 0.0
    %1869 = vmatprep.subr.mxu0 0.0
    %1870 = vmatpush1.msra.mxu0 0.0
    %1871 = vmatprep.subr.mxu0 0.0
    %1872 = vmatpush1.msra.mxu0 0.0
    %1873 = vmatprep.subr.mxu0 0.0
    %1874 = vmatpush1.msra.mxu0 0.0
    %1875 = vmatprep.subr.mxu0 0.0
    %1876 = vmatpush1.msra.mxu0 0.0
    %1877 = vmatprep.subr.mxu0 0.0
    %1878 = vmatpush1.msra.mxu0 0.0
    %1879 = vmatprep.subr.mxu0 0.0
    %1880 = vmatpush1.msra.mxu0 0.0
    %1881 = vmatprep.subr.mxu0 0.0
    %1882 = vmatpush1.msra.mxu0 0.0
    %1883 = vmatprep.subr.mxu0 0.0
    %1884 = vmatpush1.msra.mxu0 0.0
    %1885 = vmatprep.subr.mxu0 0.0
    %1886 = vmatpush1.msra.mxu0 0.0
    %1887 = vmatprep.subr.mxu0 0.0
    %1888 = vmatpush1.msra.mxu0 0.0
    %1889 = vmatprep.subr.mxu0 0.0
    %1890 = vmatpush1.msra.mxu0 0.0
    %1891 = vmatprep.subr.mxu0 0.0
    %1892 = vmatpush1.msra.mxu0 0.0
    %1893 = vmatprep.subr.mxu0 0.0
    %1894 = vmatpush1.msra.mxu0 0.0
    %1895 = vmatprep.subr.mxu0 0.0
    %1896 = vmatpush1.msra.mxu0 0.0
    %1897 = vmatprep.subr.mxu0 0.0
    %1898 = vmatpush1.msra.mxu0 0.0
    %1899 = vmatprep.subr.mxu0 0.0
    %1900 = vmatpush1.msra.mxu0 0.0
    %1901 = vmatprep.subr.mxu0 0.0
    %1902 = vmatpush1.msra.mxu0 0.0
    %1903 = vmatprep.subr.mxu0 0.0
    %1904 = vmatpush1.msra.mxu0 0.0
    %1905 = vmatprep.subr.mxu0 0.0
    %1906 = vmatpush1.msra.mxu0 0.0
    %1907 = vmatprep.subr.mxu0 0.0
    %1908 = vmatpush1.msra.mxu0 0.0
    %1909 = vmatprep.subr.mxu0 0.0
    %1910 = vmatpush1.msra.mxu0 0.0
    %1911 = vmatprep.subr.mxu0 0.0
    %1912 = vmatpush1.msra.mxu0 0.0
    %1913 = vmatprep.subr.mxu0 0.0
    %1914 = vmatpush1.msra.mxu0 0.0
    %1915 = vmatprep.subr.mxu0 0.0
    %1916 = vmatpush1.msra.mxu0 0.0
    %1917 = vmatprep.subr.mxu0 0.0
    %1918 = vmatpush1.msra.mxu0 0.0
    %1919 = vmatprep.subr.mxu0 0.0
    %1920 = vmatpush1.msra.mxu0 0.0
    %1921 = vmatprep.mubr.f32.mxu0 0.0
    %1922 = vmatmul.mubr.f32.gmra.mrb[0].mxu0 %v1855
    %v1923 = vpop.f32.mrb[0].mxu0
    %v1924 = vadd.f32 0.0, %v1923
    %v1925 = vpop.f32.mrb[0].mxu0
    %1926 = vdwg.mxu0
    %v1929 = vrot.slane %v1847, 3
    %v1930 = vrot.slane %v1847, 4
    %v1931 = vrot.slane %v1924, 3
    %v1932 = vrot.slane %v1924, 4
    %v1937 = vadd.f32 %v182, %v1929
    %v1938 = vadd.f32 %v183, %v1930
    %v1939 = vadd.f32 %v578, %v1931
    %v1940 = vadd.f32 %v579, %v1932
    %v1941 = vxor.u32 %v1937, 2147483648
    %v1942 = vxor.u32 %v1938, 2147483648
    %v1943 = vxor.u32 %v1939, 2147483648
    %v1944 = vxor.u32 %v1940, 2147483648
    %v1945 = vmul.f32 %v1941, 1.442695
    %v1946 = vpow.pop %v1945
    %v1947 = vmul.f32 %v1942, 1.442695
    %v1948 = vpow.pop %v1947
    %v1949 = vmul.f32 %v1943, 1.442695
    %v1950 = vpow.pop %v1949
    %v1951 = vmul.f32 %v1944, 1.442695
    %v1952 = vpow.pop %v1951
    %v1953 = vadd.f32 %v1946, 1.0
    %v1954 = vadd.f32 %v1948, 1.0
    %v1955 = vadd.f32 %v1950, 1.0
    %v1956 = vadd.f32 %v1952, 1.0
    %v1957 = vrcp.pop %v1953
    %v1958 = vmul.f32 1.0, %v1957
    %v1959 = vrcp.pop %v1954
    %v1960 = vmul.f32 1.0, %v1959
    %v1961 = vrcp.pop %v1955
    %v1962 = vmul.f32 1.0, %v1961
    %v1963 = vrcp.pop %v1956
    %v1964 = vmul.f32 1.0, %v1963
    %v1965 = vtanh.pop %v1937
    %v1966 = vtanh.pop %v1938
    %v1967 = vtanh.pop %v1939
    %v1968 = vtanh.pop %v1940
    %v1973 = vrot.slane %v1724, 7
    %v1974 = vrot.slane %v1725, 7
    %v1975 = vrot.slane %v1726, 7
    %v1976 = vrot.slane %v1727, 7
    %v1981 = vmul.f32 %v1958, %v1973
    %v1982 = vmul.f32 %v1960, %v1974
    %v1983 = vmul.f32 %v1962, %v1975
    %v1984 = vmul.f32 %v1964, %v1976
    %1989 = vrot.lane.b32.xlu0 %v1965, 64
    %v1990 = vpop.permute.xlu0 %1989
    %1991 = vrot.lane.b32.xlu0 %v1966, 64
    %v1992 = vpop.permute.xlu0 %1991
    %1993 = vrot.lane.b32.xlu0 %v1967, 64
    %v1994 = vpop.permute.xlu0 %1993
    %1995 = vrot.lane.b32.xlu0 %v1968, 64
    %v1996 = vpop.permute.xlu0 %1995
    %v2001 = vmul.f32 %v1958, %v1990
    %v2002 = vmul.f32 %v1960, %v1992
    %v2003 = vmul.f32 %v1962, %v1994
    %v2004 = vmul.f32 %v1964, %v1996
    %2009 = vrot.lane.b32.xlu0 %v2001, 32
    %v2010 = vpop.permute.xlu0 %2009
    %2011 = vrot.lane.b32.xlu0 %v2002, 32
    %v2012 = vpop.permute.xlu0 %2011
    %2013 = vrot.lane.b32.xlu0 %v2003, 32
    %v2014 = vpop.permute.xlu0 %2013
    %2015 = vrot.lane.b32.xlu0 %v2004, 32
    %v2016 = vpop.permute.xlu0 %2015
    %v2021 = vadd.f32 %v1981, %v2010
    %v2022 = vadd.f32 %v1982, %v2012
    %v2023 = vadd.f32 %v1983, %v2014
    %v2024 = vadd.f32 %v1984, %v2016
    %v2025 = vtanh.pop %v2021
    %v2026 = vtanh.pop %v2022
    %v2027 = vtanh.pop %v2023
    %v2028 = vtanh.pop %v2024
    %2033 = vrot.lane.b32.xlu0 %v2025, 64
    %v2034 = vpop.permute.xlu0 %2033
    %2035 = vrot.lane.b32.xlu0 %v2026, 64
    %v2036 = vpop.permute.xlu0 %2035
    %2037 = vrot.lane.b32.xlu0 %v2027, 64
    %v2038 = vpop.permute.xlu0 %2037
    %2039 = vrot.lane.b32.xlu0 %v2028, 64
    %v2040 = vpop.permute.xlu0 %2039
    %v2045 = vmul.f32 %v1958, %v2034
    %v2046 = vmul.f32 %v1960, %v2036
    %v2047 = vmul.f32 %v1962, %v2038
    %v2048 = vmul.f32 %v1964, %v2040
    %2051 = vrot.lane.b32.xlu0 %v2045, 32
    %v2052 = vpop.permute.xlu0 %2051
    %2053 = vrot.lane.b32.xlu0 %v2046, 32
    %v2054 = vpop.permute.xlu0 %2053
    %vm2057 = vcmask 259077
    %2058 = vst.msk [vmem:[%s5] sm:$0x20] %vm2057, %v2052
    %2059 = vst.msk [vmem:[%s5 + $0x8] sm:$0x20] %vm2057, %v2054
    %2062 = vrot.lane.b32.xlu0 %v2047, 32
    %v2063 = vpop.permute.xlu0 %2062
    %2064 = vrot.lane.b32.xlu0 %v2048, 32
    %v2065 = vpop.permute.xlu0 %2064
    %2068 = vst.msk [vmem:[%s63 - $0x3] sm:$0x20] %vm2057, %v2063
    %2069 = vst.msk [vmem:[%s63 + $0x5] sm:$0x20] %vm2057, %v2065
    %v2070 = vrot.slane %v2045, 5
    %v2071 = vrot.slane %v2046, 4
    %v2072 = vsel %vm583, %v2071, %v2070
    %2073 = vrot.lane.b32.xlu0 %v2072, 32
    %v2074 = vpop.permute.xlu0 %2073
    %v2075 = vsel %vm286, %v2074, 0
    %2077 = vmatprep.subr.mxu0 0.0
    %2078 = vmatpush1.msra.mxu0 %v76
    %2079 = vmatprep.subr.mxu0 0.0
    %2080 = vmatpush1.msra.mxu0 %v77
    %2081 = vmatprep.subr.mxu0 0.0
    %2082 = vmatpush1.msra.mxu0 %v78
    %2083 = vmatprep.subr.mxu0 0.0
    %2084 = vmatpush1.msra.mxu0 %v79
    %2085 = vmatprep.subr.mxu0 0.0
    %2086 = vmatpush1.msra.mxu0 0.0
    %2087 = vmatprep.subr.mxu0 0.0
    %2088 = vmatpush1.msra.mxu0 0.0
    %2089 = vmatprep.subr.mxu0 0.0
    %2090 = vmatpush1.msra.mxu0 0.0
    %2091 = vmatprep.subr.mxu0 0.0
    %2092 = vmatpush1.msra.mxu0 0.0
    %2093 = vmatprep.subr.mxu0 0.0
    %2094 = vmatpush1.msra.mxu0 0.0
    %2095 = vmatprep.subr.mxu0 0.0
    %2096 = vmatpush1.msra.mxu0 0.0
    %2097 = vmatprep.subr.mxu0 0.0
    %2098 = vmatpush1.msra.mxu0 0.0
    %2099 = vmatprep.subr.mxu0 0.0
    %2100 = vmatpush1.msra.mxu0 0.0
    %2101 = vmatprep.subr.mxu0 0.0
    %2102 = vmatpush1.msra.mxu0 0.0
    %2103 = vmatprep.subr.mxu0 0.0
    %2104 = vmatpush1.msra.mxu0 0.0
    %2105 = vmatprep.subr.mxu0 0.0
    %2106 = vmatpush1.msra.mxu0 0.0
    %2107 = vmatprep.subr.mxu0 0.0
    %2108 = vmatpush1.msra.mxu0 0.0
    %2109 = vmatprep.subr.mxu0 0.0
    %2110 = vmatpush1.msra.mxu0 0.0
    %2111 = vmatprep.subr.mxu0 0.0
    %2112 = vmatpush1.msra.mxu0 0.0
    %2113 = vmatprep.subr.mxu0 0.0
    %2114 = vmatpush1.msra.mxu0 0.0
    %2115 = vmatprep.subr.mxu0 0.0
    %2116 = vmatpush1.msra.mxu0 0.0
    %2117 = vmatprep.subr.mxu0 0.0
    %2118 = vmatpush1.msra.mxu0 0.0
    %2119 = vmatprep.subr.mxu0 0.0
    %2120 = vmatpush1.msra.mxu0 0.0
    %2121 = vmatprep.subr.mxu0 0.0
    %2122 = vmatpush1.msra.mxu0 0.0
    %2123 = vmatprep.subr.mxu0 0.0
    %2124 = vmatpush1.msra.mxu0 0.0
    %2125 = vmatprep.subr.mxu0 0.0
    %2126 = vmatpush1.msra.mxu0 0.0
    %2127 = vmatprep.subr.mxu0 0.0
    %2128 = vmatpush1.msra.mxu0 0.0
    %2129 = vmatprep.subr.mxu0 0.0
    %2130 = vmatpush1.msra.mxu0 0.0
    %2131 = vmatprep.subr.mxu0 0.0
    %2132 = vmatpush1.msra.mxu0 0.0
    %2133 = vmatprep.subr.mxu0 0.0
    %2134 = vmatpush1.msra.mxu0 0.0
    %2135 = vmatprep.subr.mxu0 0.0
    %2136 = vmatpush1.msra.mxu0 0.0
    %2137 = vmatprep.subr.mxu0 0.0
    %2138 = vmatpush1.msra.mxu0 0.0
    %2139 = vmatprep.subr.mxu0 0.0
    %2140 = vmatpush1.msra.mxu0 0.0
    %2141 = vmatprep.mubr.f32.mxu0 0.0
    %2142 = vmatmul.mubr.f32.gmra.mrb[0].mxu0 %v2075
    %v2143 = vpop.f32.mrb[0].mxu0
    %v2144 = vadd.f32 0.0, %v2143
    %v2145 = vpop.f32.mrb[0].mxu0
    %2146 = vdwg.mxu0
    %v2147 = vrot.slane %v2047, 5
    %v2148 = vrot.slane %v2048, 4
    %v2149 = vsel %vm583, %v2148, %v2147
    %2150 = vrot.lane.b32.xlu0 %v2149, 32
    %v2151 = vpop.permute.xlu0 %2150
    %v2152 = vsel %vm286, %v2151, 0
    %2154 = vmatprep.subr.mxu0 0.0
    %2155 = vmatpush1.msra.mxu0 %v80
    %2156 = vmatprep.subr.mxu0 0.0
    %2157 = vmatpush1.msra.mxu0 %v81
    %2158 = vmatprep.subr.mxu0 0.0
    %2159 = vmatpush1.msra.mxu0 %v82
    %2160 = vmatprep.subr.mxu0 0.0
    %2161 = vmatpush1.msra.mxu0 %v83
    %2162 = vmatprep.subr.mxu0 0.0
    %2163 = vmatpush1.msra.mxu0 0.0
    %2164 = vmatprep.subr.mxu0 0.0
    %2165 = vmatpush1.msra.mxu0 0.0
    %2166 = vmatprep.subr.mxu0 0.0
    %2167 = vmatpush1.msra.mxu0 0.0
    %2168 = vmatprep.subr.mxu0 0.0
    %2169 = vmatpush1.msra.mxu0 0.0
    %2170 = vmatprep.subr.mxu0 0.0
    %2171 = vmatpush1.msra.mxu0 0.0
    %2172 = vmatprep.subr.mxu0 0.0
    %2173 = vmatpush1.msra.mxu0 0.0
    %2174 = vmatprep.subr.mxu0 0.0
    %2175 = vmatpush1.msra.mxu0 0.0
    %2176 = vmatprep.subr.mxu0 0.0
    %2177 = vmatpush1.msra.mxu0 0.0
    %2178 = vmatprep.subr.mxu0 0.0
    %2179 = vmatpush1.msra.mxu0 0.0
    %2180 = vmatprep.subr.mxu0 0.0
    %2181 = vmatpush1.msra.mxu0 0.0
    %2182 = vmatprep.subr.mxu0 0.0
    %2183 = vmatpush1.msra.mxu0 0.0
    %2184 = vmatprep.subr.mxu0 0.0
    %2185 = vmatpush1.msra.mxu0 0.0
    %2186 = vmatprep.subr.mxu0 0.0
    %2187 = vmatpush1.msra.mxu0 0.0
    %2188 = vmatprep.subr.mxu0 0.0
    %2189 = vmatpush1.msra.mxu0 0.0
    %2190 = vmatprep.subr.mxu0 0.0
    %2191 = vmatpush1.msra.mxu0 0.0
    %2192 = vmatprep.subr.mxu0 0.0
    %2193 = vmatpush1.msra.mxu0 0.0
    %2194 = vmatprep.subr.mxu0 0.0
    %2195 = vmatpush1.msra.mxu0 0.0
    %2196 = vmatprep.subr.mxu0 0.0
    %2197 = vmatpush1.msra.mxu0 0.0
    %2198 = vmatprep.subr.mxu0 0.0
    %2199 = vmatpush1.msra.mxu0 0.0
    %2200 = vmatprep.subr.mxu0 0.0
    %2201 = vmatpush1.msra.mxu0 0.0
    %2202 = vmatprep.subr.mxu0 0.0
    %2203 = vmatpush1.msra.mxu0 0.0
    %2204 = vmatprep.subr.mxu0 0.0
    %2205 = vmatpush1.msra.mxu0 0.0
    %2206 = vmatprep.subr.mxu0 0.0
    %2207 = vmatpush1.msra.mxu0 0.0
    %2208 = vmatprep.subr.mxu0 0.0
    %2209 = vmatpush1.msra.mxu0 0.0
    %2210 = vmatprep.subr.mxu0 0.0
    %2211 = vmatpush1.msra.mxu0 0.0
    %2212 = vmatprep.subr.mxu0 0.0
    %2213 = vmatpush1.msra.mxu0 0.0
    %2214 = vmatprep.subr.mxu0 0.0
    %2215 = vmatpush1.msra.mxu0 0.0
    %2216 = vmatprep.subr.mxu0 0.0
    %2217 = vmatpush1.msra.mxu0 0.0
    %2218 = vmatprep.mubr.f32.mxu0 0.0
    %2219 = vmatmul.mubr.f32.gmra.mrb[0].mxu0 %v2152
    %v2220 = vpop.f32.mrb[0].mxu0
    %v2221 = vadd.f32 0.0, %v2220
    %v2222 = vpop.f32.mrb[0].mxu0
    %2223 = vdwg.mxu0
    %v2226 = vrot.slane %v2144, 2
    %v2227 = vrot.slane %v2144, 3
    %v2228 = vrot.slane %v2221, 2
    %v2229 = vrot.slane %v2221, 3
    %v2234 = vadd.f32 %v182, %v2226
    %v2235 = vadd.f32 %v183, %v2227
    %v2236 = vadd.f32 %v876, %v2228
    %v2237 = vadd.f32 %v877, %v2229
    %v2238 = vxor.u32 %v2234, 2147483648
    %v2239 = vxor.u32 %v2235, 2147483648
    %v2240 = vxor.u32 %v2236, 2147483648
    %v2241 = vxor.u32 %v2237, 2147483648
    %v2242 = vmul.f32 %v2238, 1.442695
    %v2243 = vpow.pop %v2242
    %v2244 = vmul.f32 %v2239, 1.442695
    %v2245 = vpow.pop %v2244
    %v2246 = vmul.f32 %v2240, 1.442695
    %v2247 = vpow.pop %v2246
    %v2248 = vmul.f32 %v2241, 1.442695
    %v2249 = vpow.pop %v2248
    %v2250 = vadd.f32 %v2243, 1.0
    %v2251 = vadd.f32 %v2245, 1.0
    %v2252 = vadd.f32 %v2247, 1.0
    %v2253 = vadd.f32 %v2249, 1.0
    %v2254 = vrcp.pop %v2250
    %v2255 = vmul.f32 1.0, %v2254
    %v2256 = vrcp.pop %v2251
    %v2257 = vmul.f32 1.0, %v2256
    %v2258 = vrcp.pop %v2252
    %v2259 = vmul.f32 1.0, %v2258
    %v2260 = vrcp.pop %v2253
    %v2261 = vmul.f32 1.0, %v2260
    %v2262 = vtanh.pop %v2234
    %v2263 = vtanh.pop %v2235
    %v2264 = vtanh.pop %v2236
    %v2265 = vtanh.pop %v2237
    %v2270 = vrot.slane %v2021, 7
    %v2271 = vrot.slane %v2022, 7
    %v2272 = vrot.slane %v2023, 7
    %v2273 = vrot.slane %v2024, 7
    %v2278 = vmul.f32 %v2255, %v2270
    %v2279 = vmul.f32 %v2257, %v2271
    %v2280 = vmul.f32 %v2259, %v2272
    %v2281 = vmul.f32 %v2261, %v2273
    %2286 = vrot.lane.b32.xlu0 %v2262, 64
    %v2287 = vpop.permute.xlu0 %2286
    %2288 = vrot.lane.b32.xlu0 %v2263, 64
    %v2289 = vpop.permute.xlu0 %2288
    %2290 = vrot.lane.b32.xlu0 %v2264, 64
    %v2291 = vpop.permute.xlu0 %2290
    %2292 = vrot.lane.b32.xlu0 %v2265, 64
    %v2293 = vpop.permute.xlu0 %2292
    %v2298 = vmul.f32 %v2255, %v2287
    %v2299 = vmul.f32 %v2257, %v2289
    %v2300 = vmul.f32 %v2259, %v2291
    %v2301 = vmul.f32 %v2261, %v2293
    %2306 = vrot.lane.b32.xlu0 %v2298, 32
    %v2307 = vpop.permute.xlu0 %2306
    %2308 = vrot.lane.b32.xlu0 %v2299, 32
    %v2309 = vpop.permute.xlu0 %2308
    %2310 = vrot.lane.b32.xlu0 %v2300, 32
    %v2311 = vpop.permute.xlu0 %2310
    %2312 = vrot.lane.b32.xlu0 %v2301, 32
    %v2313 = vpop.permute.xlu0 %2312
    %v2318 = vadd.f32 %v2278, %v2307
    %v2319 = vadd.f32 %v2279, %v2309
    %v2320 = vadd.f32 %v2280, %v2311
    %v2321 = vadd.f32 %v2281, %v2313
    %v2322 = vtanh.pop %v2318
    %v2323 = vtanh.pop %v2319
    %v2324 = vtanh.pop %v2320
    %v2325 = vtanh.pop %v2321
    %2330 = vrot.lane.b32.xlu0 %v2322, 64
    %v2331 = vpop.permute.xlu0 %2330
    %2332 = vrot.lane.b32.xlu0 %v2323, 64
    %v2333 = vpop.permute.xlu0 %2332
    %2334 = vrot.lane.b32.xlu0 %v2324, 64
    %v2335 = vpop.permute.xlu0 %2334
    %2336 = vrot.lane.b32.xlu0 %v2325, 64
    %v2337 = vpop.permute.xlu0 %2336
    %v2342 = vmul.f32 %v2255, %v2331
    %v2343 = vmul.f32 %v2257, %v2333
    %v2344 = vmul.f32 %v2259, %v2335
    %v2345 = vmul.f32 %v2261, %v2337
    %2348 = vrot.lane.b32.xlu0 %v2342, 32
    %v2349 = vpop.permute.xlu0 %2348
    %2350 = vrot.lane.b32.xlu0 %v2343, 32
    %v2351 = vpop.permute.xlu0 %2350
    %vm2354 = vcmask 260102
    %2355 = vst.msk [vmem:[%s5] sm:$0x40] %vm2354, %v2349
    %2356 = vst.msk [vmem:[%s5 + $0x8] sm:$0x40] %vm2354, %v2351
    %2359 = vrot.lane.b32.xlu0 %v2344, 32
    %v2360 = vpop.permute.xlu0 %2359
    %2361 = vrot.lane.b32.xlu0 %v2345, 32
    %v2362 = vpop.permute.xlu0 %2361
    %2365 = vst.msk [vmem:[%s63 - $0x5] sm:$0x40] %vm2354, %v2360
    %2366 = vst.msk [vmem:[%s63 + $0x3] sm:$0x40] %vm2354, %v2362
    %v2367 = vrot.slane %v2342, 6
    %v2368 = vrot.slane %v2343, 5
    %v2369 = vsel %vm583, %v2368, %v2367
    %2370 = vrot.lane.b32.xlu0 %v2369, 32
    %v2371 = vpop.permute.xlu0 %2370
    %v2372 = vsel %vm286, %v2371, 0
    %2374 = vmatprep.subr.mxu0 0.0
    %2375 = vmatpush1.msra.mxu0 %v76
    %2376 = vmatprep.subr.mxu0 0.0
    %2377 = vmatpush1.msra.mxu0 %v77
    %2378 = vmatprep.subr.mxu0 0.0
    %2379 = vmatpush1.msra.mxu0 %v78
    %2380 = vmatprep.subr.mxu0 0.0
    %2381 = vmatpush1.msra.mxu0 %v79
    %2382 = vmatprep.subr.mxu0 0.0
    %2383 = vmatpush1.msra.mxu0 0.0
    %2384 = vmatprep.subr.mxu0 0.0
    %2385 = vmatpush1.msra.mxu0 0.0
    %2386 = vmatprep.subr.mxu0 0.0
    %2387 = vmatpush1.msra.mxu0 0.0
    %2388 = vmatprep.subr.mxu0 0.0
    %2389 = vmatpush1.msra.mxu0 0.0
    %2390 = vmatprep.subr.mxu0 0.0
    %2391 = vmatpush1.msra.mxu0 0.0
    %2392 = vmatprep.subr.mxu0 0.0
    %2393 = vmatpush1.msra.mxu0 0.0
    %2394 = vmatprep.subr.mxu0 0.0
    %2395 = vmatpush1.msra.mxu0 0.0
    %2396 = vmatprep.subr.mxu0 0.0
    %2397 = vmatpush1.msra.mxu0 0.0
    %2398 = vmatprep.subr.mxu0 0.0
    %2399 = vmatpush1.msra.mxu0 0.0
    %2400 = vmatprep.subr.mxu0 0.0
    %2401 = vmatpush1.msra.mxu0 0.0
    %2402 = vmatprep.subr.mxu0 0.0
    %2403 = vmatpush1.msra.mxu0 0.0
    %2404 = vmatprep.subr.mxu0 0.0
    %2405 = vmatpush1.msra.mxu0 0.0
    %2406 = vmatprep.subr.mxu0 0.0
    %2407 = vmatpush1.msra.mxu0 0.0
    %2408 = vmatprep.subr.mxu0 0.0
    %2409 = vmatpush1.msra.mxu0 0.0
    %2410 = vmatprep.subr.mxu0 0.0
    %2411 = vmatpush1.msra.mxu0 0.0
    %2412 = vmatprep.subr.mxu0 0.0
    %2413 = vmatpush1.msra.mxu0 0.0
    %2414 = vmatprep.subr.mxu0 0.0
    %2415 = vmatpush1.msra.mxu0 0.0
    %2416 = vmatprep.subr.mxu0 0.0
    %2417 = vmatpush1.msra.mxu0 0.0
    %2418 = vmatprep.subr.mxu0 0.0
    %2419 = vmatpush1.msra.mxu0 0.0
    %2420 = vmatprep.subr.mxu0 0.0
    %2421 = vmatpush1.msra.mxu0 0.0
    %2422 = vmatprep.subr.mxu0 0.0
    %2423 = vmatpush1.msra.mxu0 0.0
    %2424 = vmatprep.subr.mxu0 0.0
    %2425 = vmatpush1.msra.mxu0 0.0
    %2426 = vmatprep.subr.mxu0 0.0
    %2427 = vmatpush1.msra.mxu0 0.0
    %2428 = vmatprep.subr.mxu0 0.0
    %2429 = vmatpush1.msra.mxu0 0.0
    %2430 = vmatprep.subr.mxu0 0.0
    %2431 = vmatpush1.msra.mxu0 0.0
    %2432 = vmatprep.subr.mxu0 0.0
    %2433 = vmatpush1.msra.mxu0 0.0
    %2434 = vmatprep.subr.mxu0 0.0
    %2435 = vmatpush1.msra.mxu0 0.0
    %2436 = vmatprep.subr.mxu0 0.0
    %2437 = vmatpush1.msra.mxu0 0.0
    %2438 = vmatprep.mubr.f32.mxu0 0.0
    %2439 = vmatmul.mubr.f32.gmra.mrb[0].mxu0 %v2372
    %v2440 = vpop.f32.mrb[0].mxu0
    %v2441 = vadd.f32 0.0, %v2440
    %v2442 = vpop.f32.mrb[0].mxu0
    %2443 = vdwg.mxu0
    %v2444 = vrot.slane %v2344, 6
    %v2445 = vrot.slane %v2345, 5
    %v2446 = vsel %vm583, %v2445, %v2444
    %2447 = vrot.lane.b32.xlu0 %v2446, 32
    %v2448 = vpop.permute.xlu0 %2447
    %v2449 = vsel %vm286, %v2448, 0
    %2451 = vmatprep.subr.mxu0 0.0
    %2452 = vmatpush1.msra.mxu0 %v80
    %2453 = vmatprep.subr.mxu0 0.0
    %2454 = vmatpush1.msra.mxu0 %v81
    %2455 = vmatprep.subr.mxu0 0.0
    %2456 = vmatpush1.msra.mxu0 %v82
    %2457 = vmatprep.subr.mxu0 0.0
    %2458 = vmatpush1.msra.mxu0 %v83
    %2459 = vmatprep.subr.mxu0 0.0
    %2460 = vmatpush1.msra.mxu0 0.0
    %2461 = vmatprep.subr.mxu0 0.0
    %2462 = vmatpush1.msra.mxu0 0.0
    %2463 = vmatprep.subr.mxu0 0.0
    %2464 = vmatpush1.msra.mxu0 0.0
    %2465 = vmatprep.subr.mxu0 0.0
    %2466 = vmatpush1.msra.mxu0 0.0
    %2467 = vmatprep.subr.mxu0 0.0
    %2468 = vmatpush1.msra.mxu0 0.0
    %2469 = vmatprep.subr.mxu0 0.0
    %2470 = vmatpush1.msra.mxu0 0.0
    %2471 = vmatprep.subr.mxu0 0.0
    %2472 = vmatpush1.msra.mxu0 0.0
    %2473 = vmatprep.subr.mxu0 0.0
    %2474 = vmatpush1.msra.mxu0 0.0
    %2475 = vmatprep.subr.mxu0 0.0
    %2476 = vmatpush1.msra.mxu0 0.0
    %2477 = vmatprep.subr.mxu0 0.0
    %2478 = vmatpush1.msra.mxu0 0.0
    %2479 = vmatprep.subr.mxu0 0.0
    %2480 = vmatpush1.msra.mxu0 0.0
    %2481 = vmatprep.subr.mxu0 0.0
    %2482 = vmatpush1.msra.mxu0 0.0
    %2483 = vmatprep.subr.mxu0 0.0
    %2484 = vmatpush1.msra.mxu0 0.0
    %2485 = vmatprep.subr.mxu0 0.0
    %2486 = vmatpush1.msra.mxu0 0.0
    %2487 = vmatprep.subr.mxu0 0.0
    %2488 = vmatpush1.msra.mxu0 0.0
    %2489 = vmatprep.subr.mxu0 0.0
    %2490 = vmatpush1.msra.mxu0 0.0
    %2491 = vmatprep.subr.mxu0 0.0
    %2492 = vmatpush1.msra.mxu0 0.0
    %2493 = vmatprep.subr.mxu0 0.0
    %2494 = vmatpush1.msra.mxu0 0.0
    %2495 = vmatprep.subr.mxu0 0.0
    %2496 = vmatpush1.msra.mxu0 0.0
    %2497 = vmatprep.subr.mxu0 0.0
    %2498 = vmatpush1.msra.mxu0 0.0
    %2499 = vmatprep.subr.mxu0 0.0
    %2500 = vmatpush1.msra.mxu0 0.0
    %2501 = vmatprep.subr.mxu0 0.0
    %2502 = vmatpush1.msra.mxu0 0.0
    %2503 = vmatprep.subr.mxu0 0.0
    %2504 = vmatpush1.msra.mxu0 0.0
    %2505 = vmatprep.subr.mxu0 0.0
    %2506 = vmatpush1.msra.mxu0 0.0
    %2507 = vmatprep.subr.mxu0 0.0
    %2508 = vmatpush1.msra.mxu0 0.0
    %2509 = vmatprep.subr.mxu0 0.0
    %2510 = vmatpush1.msra.mxu0 0.0
    %2511 = vmatprep.subr.mxu0 0.0
    %2512 = vmatpush1.msra.mxu0 0.0
    %2513 = vmatprep.subr.mxu0 0.0
    %2514 = vmatpush1.msra.mxu0 0.0
    %2515 = vmatprep.mubr.f32.mxu0 0.0
    %2516 = vmatmul.mubr.f32.gmra.mrb[0].mxu0 %v2449
    %v2517 = vpop.f32.mrb[0].mxu0
    %v2518 = vadd.f32 0.0, %v2517
    %v2519 = vpop.f32.mrb[0].mxu0
    %2520 = vdwg.mxu0
    %v2523 = vrot.slane %v2441, 1
    %v2524 = vrot.slane %v2441, 2
    %v2525 = vrot.slane %v2518, 1
    %v2526 = vrot.slane %v2518, 2
    %v2531 = vadd.f32 %v182, %v2523
    %v2532 = vadd.f32 %v183, %v2524
    %v2533 = vadd.f32 %v1175, %v2525
    %v2534 = vadd.f32 %v1176, %v2526
    %v2535 = vxor.u32 %v2531, 2147483648
    %v2536 = vxor.u32 %v2532, 2147483648
    %v2537 = vxor.u32 %v2533, 2147483648
    %v2538 = vxor.u32 %v2534, 2147483648
    %v2539 = vmul.f32 %v2535, 1.442695
    %v2540 = vpow.pop %v2539
    %v2541 = vmul.f32 %v2536, 1.442695
    %v2542 = vpow.pop %v2541
    %v2543 = vmul.f32 %v2537, 1.442695
    %v2544 = vpow.pop %v2543
    %v2545 = vmul.f32 %v2538, 1.442695
    %v2546 = vpow.pop %v2545
    %v2547 = vadd.f32 %v2540, 1.0
    %v2548 = vadd.f32 %v2542, 1.0
    %v2549 = vadd.f32 %v2544, 1.0
    %v2550 = vadd.f32 %v2546, 1.0
    %v2551 = vrcp.pop %v2547
    %v2552 = vmul.f32 1.0, %v2551
    %v2553 = vrcp.pop %v2548
    %v2554 = vmul.f32 1.0, %v2553
    %v2555 = vrcp.pop %v2549
    %v2556 = vmul.f32 1.0, %v2555
    %v2557 = vrcp.pop %v2550
    %v2558 = vmul.f32 1.0, %v2557
    %v2559 = vtanh.pop %v2531
    %v2560 = vtanh.pop %v2532
    %v2561 = vtanh.pop %v2533
    %v2562 = vtanh.pop %v2534
    %v2567 = vrot.slane %v2318, 7
    %v2568 = vrot.slane %v2319, 7
    %v2569 = vrot.slane %v2320, 7
    %v2570 = vrot.slane %v2321, 7
    %v2575 = vmul.f32 %v2552, %v2567
    %v2576 = vmul.f32 %v2554, %v2568
    %v2577 = vmul.f32 %v2556, %v2569
    %v2578 = vmul.f32 %v2558, %v2570
    %2583 = vrot.lane.b32.xlu0 %v2559, 64
    %v2584 = vpop.permute.xlu0 %2583
    %2585 = vrot.lane.b32.xlu0 %v2560, 64
    %v2586 = vpop.permute.xlu0 %2585
    %2587 = vrot.lane.b32.xlu0 %v2561, 64
    %v2588 = vpop.permute.xlu0 %2587
    %2589 = vrot.lane.b32.xlu0 %v2562, 64
    %v2590 = vpop.permute.xlu0 %2589
    %v2595 = vmul.f32 %v2552, %v2584
    %v2596 = vmul.f32 %v2554, %v2586
    %v2597 = vmul.f32 %v2556, %v2588
    %v2598 = vmul.f32 %v2558, %v2590
    %2603 = vrot.lane.b32.xlu0 %v2595, 32
    %v2604 = vpop.permute.xlu0 %2603
    %2605 = vrot.lane.b32.xlu0 %v2596, 32
    %v2606 = vpop.permute.xlu0 %2605
    %2607 = vrot.lane.b32.xlu0 %v2597, 32
    %v2608 = vpop.permute.xlu0 %2607
    %2609 = vrot.lane.b32.xlu0 %v2598, 32
    %v2610 = vpop.permute.xlu0 %2609
    %v2615 = vadd.f32 %v2575, %v2604
    %v2616 = vadd.f32 %v2576, %v2606
    %v2617 = vadd.f32 %v2577, %v2608
    %v2618 = vadd.f32 %v2578, %v2610
    %v2619 = vtanh.pop %v2615
    %v2620 = vtanh.pop %v2616
    %v2621 = vtanh.pop %v2617
    %v2622 = vtanh.pop %v2618
    %2627 = vrot.lane.b32.xlu0 %v2619, 64
    %v2628 = vpop.permute.xlu0 %2627
    %2629 = vrot.lane.b32.xlu0 %v2620, 64
    %v2630 = vpop.permute.xlu0 %2629
    %2631 = vrot.lane.b32.xlu0 %v2621, 64
    %v2632 = vpop.permute.xlu0 %2631
    %2633 = vrot.lane.b32.xlu0 %v2622, 64
    %v2634 = vpop.permute.xlu0 %2633
    %v2639 = vmul.f32 %v2552, %v2628
    %v2640 = vmul.f32 %v2554, %v2630
    %v2641 = vmul.f32 %v2556, %v2632
    %v2642 = vmul.f32 %v2558, %v2634
    %2645 = vrot.lane.b32.xlu0 %v2639, 32
    %v2646 = vpop.permute.xlu0 %2645
    %2647 = vrot.lane.b32.xlu0 %v2640, 32
    %v2648 = vpop.permute.xlu0 %2647
    %vm2651 = vcmask 261127
    %2652 = vst.msk [vmem:[%s5] sm:$0x80] %vm2651, %v2646
    %2653 = vst.msk [vmem:[%s5 + $0x8] sm:$0x80] %vm2651, %v2648
    %2656 = vrot.lane.b32.xlu0 %v2641, 32
    %v2657 = vpop.permute.xlu0 %2656
    %2658 = vrot.lane.b32.xlu0 %v2642, 32
    %v2659 = vpop.permute.xlu0 %2658
    %2662 = vst.msk [vmem:[%s63 - $0x7] sm:$0x80] %vm2651, %v2657
    %2663 = vst.msk [vmem:[%s63 + $0x1] sm:$0x80] %vm2651, %v2659
    %v2664 = vrot.slane %v2640, 7
    %v2665 = vrot.slane %v2642, 7
    %2666 = vrot.lane.b32.xlu0 %v2664, 32
    %v2667 = vpop.permute.xlu0 %2666
    %2668 = vrot.lane.b32.xlu0 %v2665, 32
    %v2669 = vpop.permute.xlu0 %2668
    %2672 = vst.msk [vmem:[#allocation2 - $0x7] sm:$0x80] %vm2651, %v2646
    %2673 = vst.msk [vmem:[#allocation2 + $0x1] sm:$0x1] %vm565, %v2667
    %2674 = vst.msk [vmem:[#allocation2 - $0x5] sm:$0x80] %vm2651, %v2657
    %2675 = vst.msk [vmem:[#allocation2 + $0x3] sm:$0x1] %vm565, %v2669
    %v2680 = vrot.slane %v2616, 7
    %v2681 = vrot.slane %v2618, 7
    %2682 = vrot.lane.b32.xlu0 %v2615, 96
    %v2683 = vpop.permute.xlu0 %2682
    %2684 = vrot.lane.b32.xlu0 %v2680, 96
    %v2685 = vpop.permute.xlu0 %2684
    %2686 = vrot.lane.b32.xlu0 %v2617, 96
    %v2687 = vpop.permute.xlu0 %2686
    %2688 = vrot.lane.b32.xlu0 %v2681, 96
    %v2689 = vpop.permute.xlu0 %2688
    %2694 = vst.msk [vmem:[#allocation3 - $0x7] sm:$0x80] %vm2651, %v2683
    %2695 = vst.msk [vmem:[#allocation3 + $0x1] sm:$0x1] %vm565, %v2685
    %2696 = vst.msk [vmem:[#allocation3 - $0x5] sm:$0x80] %vm2651, %v2687
    %2697 = vst.msk [vmem:[#allocation3 + $0x3] sm:$0x1] %vm565, %v2689
    // Predicated region
    $region30: #{bidirectional_lstm.1} parent=1 // pred_check
      %p2698 = pneg %p65
    $region31: #{bidirectional_lstm.1} parent=1 // pred_check_branch
      %2700 = sbr.rel (%p2698) target = $region33
    $region32: #{bidirectional_lstm.1} parent=1 // pred_region
      %2701 = vst.msk [vmem:[%s7 - $0x7] sm:$0x80] %vm2651, %v2646
      %2702 = vst.msk [vmem:[%s7 + $0x1] sm:$0x1] %vm565, %v2667
      %2703 = vst.msk [vmem:[%s7 - $0x5] sm:$0x80] %vm2651, %v2657
      %2704 = vst.msk [vmem:[%s7 + $0x3] sm:$0x1] %vm565, %v2669
    $region33: #{bidirectional_lstm.1} parent=1 // pred_fallthru
      _
    %s2705 = ssub.s32 0, 0
    %p2706 = scmp.lt.s32.totalorder %s2705, 0
    %s2707 = scalar_select %p2706, %s2705, 0
    %s2708 = smul.addr %s2707, 8
    %s2709 = scalar_lea.vmem %s6, %s2708
    // Predicated region
    $region34: #{bidirectional_lstm.1} parent=1 // pred_check
      _
    $region35: #{bidirectional_lstm.1} parent=1 // pred_check_branch
      %2711 = sbr.rel (0) target = $region37
    $region36: #{bidirectional_lstm.1} parent=1 // pred_region
      _
    $region37: #{bidirectional_lstm.1} parent=1 // pred_fallthru
      _
    // Predicated region
    $region38: #{bidirectional_lstm.1} parent=1 // pred_check
      _
    $region39: #{bidirectional_lstm.1} parent=1 // pred_check_branch
      %2713 = sbr.rel (0) target = $region41
    $region40: #{bidirectional_lstm.1} parent=1 // pred_region
      %s2714 = ssub.s32 0, 0
    $region41: #{bidirectional_lstm.1} parent=1 // pred_fallthru
      _
    // Predicated region
    $region42: #{bidirectional_lstm.1} parent=1 // pred_check
      _
    $region43: #{bidirectional_lstm.1} parent=1 // pred_check_branch
      %2716 = sbr.rel (0) target = $region45
    $region44: #{bidirectional_lstm.1} parent=1 // pred_region
      _
    $region45: #{bidirectional_lstm.1} parent=1 // pred_fallthru
      _
    // Predicated region
    $region46: #{bidirectional_lstm.1} parent=1 // pred_check
      _
    $region47: #{bidirectional_lstm.1} parent=1 // pred_check_branch
      %2718 = sbr.rel (0) target = $region49
    $region48: #{bidirectional_lstm.1} parent=1 // pred_region
      _
    $region49: #{bidirectional_lstm.1} parent=1 // pred_fallthru
      _
    // Predicated region
    $region50: #{bidirectional_lstm.1} parent=1 // pred_check
      _
    $region51: #{bidirectional_lstm.1} parent=1 // pred_check_branch
      %2720 = sbr.rel (0) target = $region53
    $region52: #{bidirectional_lstm.1} parent=1 // pred_region
      %s2721 = ssub.s32 0, 0
      %p2722 = scmp.lt.s32.totalorder %s2721, 0
      %s2723 = scalar_select %p2722, %s2721, 0
      %s2724 = smul.addr %s2723, 8
      %s2725 = scalar_lea.vmem %s6, %s2724
    $region53: #{bidirectional_lstm.1} parent=1 // pred_fallthru
      _
    // Predicated region
    $region54: #{bidirectional_lstm.1} parent=1 // pred_check
      _
    $region55: #{bidirectional_lstm.1} parent=1 // pred_check_branch
      %2727 = sbr.rel (0) target = $region57
    $region56: #{bidirectional_lstm.1} parent=1 // pred_region
      _
    $region57: #{bidirectional_lstm.1} parent=1 // pred_fallthru
      _
    %2728 = vsyncpa [#allocation5], 1

</llo_original>
